<compile_context>
chip_gen: v7x
topology: tpu7x:2x2x1
jax: 0.10.0
libtpu: 0.0.40
codegen_flags: <defaults>
</compile_context>

<pallas_src>
import functools

import jax
import jax.numpy as jnp
from jax.experimental import pallas as pl
from jax.experimental.pallas import tpu as pltpu


def _round_up(x, m):
    return ((x + m - 1) // m) * m


# ----------------------------------------------------------------------------
# Fused kernel: whole MLP in one pallas_call (weights resident in VMEM)
# ----------------------------------------------------------------------------
def _fused_mlp_kernel(*refs):
    # refs = [x, w1, b1, w2, b2, ..., wn, bn, out]
    n_layers = (len(refs) - 2) // 2
    x_ref = refs[0]
    o_ref = refs[-1]

    h = x_ref[...]
    for i in range(n_layers):
        w_ref = refs[1 + 2 * i]
        b_ref = refs[2 + 2 * i]
        # bf16 MXU inputs, f32 accumulation.
        h = jnp.dot(h.astype(w_ref.dtype), w_ref[...],
                    preferred_element_type=jnp.float32)
        h = h + b_ref[...].astype(jnp.float32)
        if i < n_layers - 1:
            h = jnp.maximum(h, 0.0)
    o_ref[...] = h.astype(o_ref.dtype)


def _mlp_fused(x, prepared):
    """prepared = [(w_bf16 (K,N), b_f32 (1,N)), ...].  Returns (M, N_last) f32."""
    M = x.shape[0]

    # Lane-dense output: pad the final layer's N up to a multiple of 128 with
    # zero columns; slice back after the call.
    w_last, b_last = prepared[-1]
    n_out = w_last.shape[1]
    n_pad = _round_up(max(n_out, 128), 128)
    if n_pad != n_out:
        w_last = jnp.pad(w_last, ((0, 0), (0, n_pad - n_out)))
        b_last = jnp.pad(b_last, ((0, 0), (0, n_pad - n_out)))
    layers = list(prepared[:-1]) + [(w_last, b_last)]

    args = [x]
    in_specs = [pl.BlockSpec(x.shape, lambda i: (0, 0))]
    for (w, b) in layers:
        args += [w, b]
        in_specs += [pl.BlockSpec(w.shape, lambda i: (0, 0)),
                     pl.BlockSpec(b.shape, lambda i: (0, 0))]

    out = pl.pallas_call(
        _fused_mlp_kernel,
        out_shape=jax.ShapeDtypeStruct((M, n_pad), jnp.float32),
        grid_spec=pltpu.PrefetchScalarGridSpec(
            num_scalar_prefetch=0,
            grid=(1,),  # single step: everything resident in VMEM
            in_specs=in_specs,
            out_specs=pl.BlockSpec((M, n_pad), lambda i: (0, 0)),
        ),
        compiler_params=pltpu.CompilerParams(
            dimension_semantics=("arbitrary",),
        ),
    )(*args)
    return out[:, :n_out] if n_pad != n_out else out


def _fused_fits_vmem(x, prepared, budget_bytes=12 * 1024 * 1024):
    """Conservative VMEM estimate (2x headroom) vs. a budget that fits even
    v5e's 16 MiB scoped default and v7x's smaller physical VMEM."""
    total = x.size * x.dtype.itemsize
    widest = 1
    for (w, b) in prepared:
        total += w.size * w.dtype.itemsize + b.size * b.dtype.itemsize
        widest = max(widest, w.shape[1])
    # output block + largest f32 intermediate activation
    total += 2 * x.shape[0] * _round_up(widest, 128) * 4
    return 2 * total <= budget_bytes


# ----------------------------------------------------------------------------
# Fallback: per-layer  y = relu?(x @ W + b)  with a collapsed (N-only) grid
# ----------------------------------------------------------------------------
def _linear_kernel(x_ref, w_ref, b_ref, o_ref, *, apply_relu):
    y = jnp.dot(x_ref[...].astype(w_ref.dtype), w_ref[...],
                preferred_element_type=jnp.float32)
    y = y + b_ref[...].astype(jnp.float32)
    if apply_relu:
        y = jnp.maximum(y, 0.0)
    o_ref[...] = y.astype(o_ref.dtype)


def pallas_linear(x, w, b, *, apply_relu, weight_tile_bytes=2 * 1024 * 1024):
    """y = x @ w + b (optional ReLU).  x:(M,K), w:(K,N), b:(1,N)."""
    M, K = x.shape
    Kw, N = w.shape
    assert K == Kw and b.shape == (1, N)

    itemsize = jnp.dtype(w.dtype).itemsize
    # No K tiling (x is tiny); weight streams as (K, tn) column panels of
    # roughly `weight_tile_bytes` each (double-buffered by Pallas).
    tn_cap = max(128, (weight_tile_bytes // max(K * itemsize, 1)) // 128 * 128)
    n_pad128 = _round_up(max(N, 128), 128)
    tn = min(tn_cap, n_pad128)
    n_pad = _round_up(n_pad128, tn)
    if n_pad != N:
        w = jnp.pad(w, ((0, 0), (0, n_pad - N)))
        b = jnp.pad(b, ((0, 0), (0, n_pad - N)))

    out = pl.pallas_call(
        functools.partial(_linear_kernel, apply_relu=apply_relu),
        out_shape=jax.ShapeDtypeStruct((M, n_pad), jnp.float32),
        grid_spec=pltpu.PrefetchScalarGridSpec(
            num_scalar_prefetch=0,
            grid=(n_pad // tn,),
            in_specs=[
                pl.BlockSpec((M, K), lambda j: (0, 0)),   # activations (whole)
                pl.BlockSpec((K, tn), lambda j: (0, j)),  # weight column panel
                pl.BlockSpec((1, tn), lambda j: (0, j)),  # bias panel
            ],
            out_specs=pl.BlockSpec((M, tn), lambda j: (0, j)),
        ),
        compiler_params=pltpu.CompilerParams(
            dimension_semantics=("parallel",),  # v7x: shards panels across TCs
        ),
    )(x.astype(w.dtype), w, b)
    return out[:, :N] if n_pad != N else out


# ----------------------------------------------------------------------------
# Model definition (mirrors MLP.__init__ layer-size logic exactly)
# ----------------------------------------------------------------------------
def mlp_layer_dims(input_dim, depth, output_dim):
    dims = []
    hidden_dim = 4096
    d = input_dim
    for i in range(depth - 1):
        dims.append((d, hidden_dim))
        d = hidden_dim
        if i % 2 == 0 and i > 0:
            hidden_dim = hidden_dim // 2
    hidden_dim = 256
    dims.append((d, hidden_dim))
    dims.append((hidden_dim, output_dim))
    return dims


def init_params(key, dims, dtype=jnp.float32):
    params = []
    for (din, dout) in dims:
        key, kw, kb = jax.random.split(key, 3)
        bound = 1.0 / jnp.sqrt(din)
        w = jax.random.uniform(kw, (din, dout), dtype, -bound, bound)
        b = jax.random.uniform(kb, (dout,), dtype, -bound, bound)
        params.append((w, b))
    return params


def mlp_forward(x, params, *, weight_dtype=jnp.bfloat16, force_per_layer=False):
    """MLP forward pass (eval mode: dropout = identity)."""
    prepared = [(w.astype(weight_dtype), b.astype(jnp.float32).reshape(1, -1))
                for (w, b) in params]

    if (not force_per_layer) and _fused_fits_vmem(x, prepared):
        return _mlp_fused(x, prepared)

    # Per-layer streaming fallback for configs too big to keep resident.
    # TODO(synk): cross-call weight prefetch (P10) could hide the next layer's
    # weight DMA behind the current layer's execution in this path.
    h = x
    n = len(prepared)
    for i, (w, b) in enumerate(prepared):
        h = pallas_linear(h, w, b, apply_relu=(i < n - 1))
    return h


def mlp_forward_ref(x, params, weight_dtype=jnp.bfloat16):
    """Pure-JAX reference mirroring the kernel numerics (bf16 in, f32 acc)."""
    h = x
    n = len(params)
    for i, (w, b) in enumerate(params):
        h = jnp.dot(h.astype(weight_dtype), w.astype(weight_dtype),
                    preferred_element_type=jnp.float32)
        h = h + b.astype(jnp.float32)
        if i < n - 1:
            h = jnp.maximum(h, 0.0)
    return h


# ----------------------------------------------------------------------------
if __name__ == "__main__":
    # Small config consistent with the module: MLP(input_dim=32, depth=2,
    # output_dim=8)  ->  Linear(32,4096) -> Linear(4096,256) -> Linear(256,8)
    input_dim, depth, output_dim = 32, 2, 8
    batch = 8

    key = jax.random.PRNGKey(0)
    kx, kp = jax.random.split(key)
    x = jax.random.normal(kx, (batch, input_dim), jnp.float32)

    dims = mlp_layer_dims(input_dim, depth, output_dim)
    params = init_params(kp, dims)

    fwd_fused = jax.jit(mlp_forward)
    fwd_layered = jax.jit(functools.partial(mlp_forward, force_per_layer=True))

    ref = mlp_forward_ref(x, params)

    # Primary path: fully fused single pallas_call.
    out = jax.block_until_ready(fwd_fused(x, params))
    assert out.shape == (batch, output_dim)
    assert jnp.allclose(out, ref, atol=1e-2, rtol=1e-2)

    # Also exercise the per-layer streaming fallback path.
    out2 = jax.block_until_ready(fwd_layered(x, params))
    assert out2.shape == (batch, output_dim)
    assert jnp.allclose(out2, ref, atol=1e-2, rtol=1e-2)

    print("KERNEL_OK")
</pallas_src>

<mosaic_0001>
module attributes {stable_mosaic.version = 11 : i64} {
  func.func @_fused_mlp_kernel(%arg0: i32, %arg1: memref<8x32xf32, #tpu.memory_space<vmem>>, %arg2: memref<32x4096xbf16, #tpu.memory_space<vmem>>, %arg3: memref<1x4096xf32, #tpu.memory_space<vmem>>, %arg4: memref<4096x256xbf16, #tpu.memory_space<vmem>>, %arg5: memref<1x256xf32, #tpu.memory_space<vmem>>, %arg6: memref<256x128xbf16, #tpu.memory_space<vmem>>, %arg7: memref<1x128xf32, #tpu.memory_space<vmem>>, %arg8: memref<8x128xf32, #tpu.memory_space<vmem>>) attributes {dimension_semantics = [#tpu.dimension_semantics<arbitrary>], iteration_bounds = array<i64: 1>, scalar_prefetch = 0 : i64, scratch_operands = 0 : i64, tpu.core_type = #tpu.core_type<tc>, window_params = [{pipeline_mode = #tpu.pipeline_mode<synchronous>, transform_indices = @transform_0, window_bounds = array<i64: 8, 32>}, {pipeline_mode = #tpu.pipeline_mode<synchronous>, transform_indices = @transform_1, window_bounds = array<i64: 32, 4096>}, {pipeline_mode = #tpu.pipeline_mode<synchronous>, transform_indices = @transform_2, window_bounds = array<i64: 1, 4096>}, {pipeline_mode = #tpu.pipeline_mode<synchronous>, transform_indices = @transform_3, window_bounds = array<i64: 4096, 256>}, {pipeline_mode = #tpu.pipeline_mode<synchronous>, transform_indices = @transform_4, window_bounds = array<i64: 1, 256>}, {pipeline_mode = #tpu.pipeline_mode<synchronous>, transform_indices = @transform_5, window_bounds = array<i64: 256, 128>}, {pipeline_mode = #tpu.pipeline_mode<synchronous>, transform_indices = @transform_6, window_bounds = array<i64: 1, 128>}, {pipeline_mode = #tpu.pipeline_mode<synchronous>, transform_indices = @transform_7, window_bounds = array<i64: 8, 128>}]} {
    %c0 = arith.constant 0 : index
    %c0_0 = arith.constant 0 : index
    %0 = vector.load %arg1[%c0, %c0_0] : memref<8x32xf32, #tpu.memory_space<vmem>>, vector<8x32xf32>
    %1 = arith.truncf %0 : vector<8x32xf32> to vector<8x32xbf16>
    %c0_1 = arith.constant 0 : index
    %c0_2 = arith.constant 0 : index
    %2 = vector.load %arg2[%c0_1, %c0_2] : memref<32x4096xbf16, #tpu.memory_space<vmem>>, vector<32x4096xbf16>
    %cst = arith.constant dense<0.000000e+00> : vector<8x4096xf32>
    %3 = tpu.matmul %1, %2, %cst {dimension_numbers = #tpu.dot_dimension_numbers<[1], [0], [0], [1], [0, 0, 1, 1], [], []>} : vector<8x32xbf16>, vector<32x4096xbf16>, vector<8x4096xf32> -> vector<8x4096xf32>
    %c0_3 = arith.constant 0 : index
    %c0_4 = arith.constant 0 : index
    %4 = vector.load %arg3[%c0_3, %c0_4] : memref<1x4096xf32, #tpu.memory_space<vmem>>, vector<1x4096xf32>
    %5 = vector.broadcast %4 : vector<1x4096xf32> to vector<8x4096xf32>
    %6 = arith.addf %3, %5 : vector<8x4096xf32>
    %cst_5 = arith.constant 0.000000e+00 : f32
    %7 = vector.broadcast %cst_5 : f32 to vector<8x4096xf32>
    %8 = arith.maximumf %6, %7 : vector<8x4096xf32>
    %9 = arith.truncf %8 : vector<8x4096xf32> to vector<8x4096xbf16>
    %c0_6 = arith.constant 0 : index
    %c0_7 = arith.constant 0 : index
    %10 = vector.load %arg4[%c0_6, %c0_7] : memref<4096x256xbf16, #tpu.memory_space<vmem>>, vector<4096x256xbf16>
    %cst_8 = arith.constant dense<0.000000e+00> : vector<8x256xf32>
    %11 = tpu.matmul %9, %10, %cst_8 {dimension_numbers = #tpu.dot_dimension_numbers<[1], [0], [0], [1], [0, 0, 1, 1], [], []>} : vector<8x4096xbf16>, vector<4096x256xbf16>, vector<8x256xf32> -> vector<8x256xf32>
    %c0_9 = arith.constant 0 : index
    %c0_10 = arith.constant 0 : index
    %12 = vector.load %arg5[%c0_9, %c0_10] : memref<1x256xf32, #tpu.memory_space<vmem>>, vector<1x256xf32>
    %13 = vector.broadcast %12 : vector<1x256xf32> to vector<8x256xf32>
    %14 = arith.addf %11, %13 : vector<8x256xf32>
    %cst_11 = arith.constant 0.000000e+00 : f32
    %15 = vector.broadcast %cst_11 : f32 to vector<8x256xf32>
    %16 = arith.maximumf %14, %15 : vector<8x256xf32>
    %17 = arith.truncf %16 : vector<8x256xf32> to vector<8x256xbf16>
    %c0_12 = arith.constant 0 : index
    %c0_13 = arith.constant 0 : index
    %18 = vector.load %arg6[%c0_12, %c0_13] : memref<256x128xbf16, #tpu.memory_space<vmem>>, vector<256x128xbf16>
    %cst_14 = arith.constant dense<0.000000e+00> : vector<8x128xf32>
    %19 = tpu.matmul %17, %18, %cst_14 {dimension_numbers = #tpu.dot_dimension_numbers<[1], [0], [0], [1], [0, 0, 1, 1], [], []>} : vector<8x256xbf16>, vector<256x128xbf16>, vector<8x128xf32> -> vector<8x128xf32>
    %c0_15 = arith.constant 0 : index
    %c0_16 = arith.constant 0 : index
    %20 = vector.load %arg7[%c0_15, %c0_16] : memref<1x128xf32, #tpu.memory_space<vmem>>, vector<1x128xf32>
    %21 = vector.broadcast %20 : vector<1x128xf32> to vector<8x128xf32>
    %22 = arith.addf %19, %21 : vector<8x128xf32>
    %c0_17 = arith.constant 0 : index
    %c0_18 = arith.constant 0 : index
    %23 = vector.load %arg8[%c0_17, %c0_18] : memref<8x128xf32, #tpu.memory_space<vmem>>, vector<8x128xf32>
    tpu.vector_store %arg8[%c0_17, %c0_18], %22 {strides = array<i32>} : memref<8x128xf32, #tpu.memory_space<vmem>>, vector<8x128xf32>,
    return
  }
  func.func @transform_0(%arg0: i32) -> (i32, i32) {
    %c0_i32 = arith.constant 0 : i32
    %c0_i32_0 = arith.constant 0 : i32
    %c0_i32_1 = arith.constant 0 : i32
    return %c0_i32, %c0_i32_0 : i32, i32
  }
  func.func @transform_1(%arg0: i32) -> (i32, i32) {
    %c0_i32 = arith.constant 0 : i32
    %c0_i32_0 = arith.constant 0 : i32
    %c0_i32_1 = arith.constant 0 : i32
    return %c0_i32, %c0_i32_0 : i32, i32
  }
  func.func @transform_2(%arg0: i32) -> (i32, i32) {
    %c0_i32 = arith.constant 0 : i32
    %c0_i32_0 = arith.constant 0 : i32
    %c0_i32_1 = arith.constant 0 : i32
    return %c0_i32, %c0_i32_0 : i32, i32
  }
  func.func @transform_3(%arg0: i32) -> (i32, i32) {
    %c0_i32 = arith.constant 0 : i32
    %c0_i32_0 = arith.constant 0 : i32
    %c0_i32_1 = arith.constant 0 : i32
    return %c0_i32, %c0_i32_0 : i32, i32
  }
  func.func @transform_4(%arg0: i32) -> (i32, i32) {
    %c0_i32 = arith.constant 0 : i32
    %c0_i32_0 = arith.constant 0 : i32
    %c0_i32_1 = arith.constant 0 : i32
    return %c0_i32, %c0_i32_0 : i32, i32
  }
  func.func @transform_5(%arg0: i32) -> (i32, i32) {
    %c0_i32 = arith.constant 0 : i32
    %c0_i32_0 = arith.constant 0 : i32
    %c0_i32_1 = arith.constant 0 : i32
    return %c0_i32, %c0_i32_0 : i32, i32
  }
  func.func @transform_6(%arg0: i32) -> (i32, i32) {
    %c0_i32 = arith.constant 0 : i32
    %c0_i32_0 = arith.constant 0 : i32
    %c0_i32_1 = arith.constant 0 : i32
    return %c0_i32, %c0_i32_0 : i32, i32
  }
  func.func @transform_7(%arg0: i32) -> (i32, i32) {
    %c0_i32 = arith.constant 0 : i32
    %c0_i32_0 = arith.constant 0 : i32
    %c0_i32_1 = arith.constant 0 : i32
    return %c0_i32, %c0_i32_0 : i32, i32
  }
}

</mosaic_0001>

<llo_original>
// kernel: mlp_forward.1
$region0: #{mlp_forward.1}
  #allocation0 [shape = 'u32[]', space=smem, size = 0x4, offset = 0x4, fixed_abs, tag = 'smem constant byte address 0x4 - core index']
  #allocation1 [shape = 'u32[144,128]{1,0:T(1,128)}', space=vmem, size = 0x12000, scoped, tag = 'internal scratch']
  %s0 = inlined_call_operand.vmem [shape: f32[8,32], index: 0, kind: input, shape index: {}]
  %s1 = inlined_call_operand.vmem [shape: bf16[32,4096], index: 1, kind: input, shape index: {}]
  %s2 = inlined_call_operand.vmem [shape: f32[1,4096], index: 2, kind: input, shape index: {}]
  %s3 = inlined_call_operand.vmem [shape: bf16[4096,256], index: 3, kind: input, shape index: {}]
  %s4 = inlined_call_operand.vmem [shape: f32[1,256], index: 4, kind: input, shape index: {}]
  %s5 = inlined_call_operand.vmem [shape: bf16[256,128], index: 5, kind: input, shape index: {}]
  %s6 = inlined_call_operand.vmem [shape: f32[1,128], index: 6, kind: input, shape index: {}]
  %s7 = inlined_call_operand.hbm [shape: f32[8,128], index: 7, kind: output, shape index: {}]
  %s8 = sld [smem:[#allocation0]]
  $region38: #{mlp_forward.1} parent=0
    _
  %s10 = ssub.s32 1, %s8
  %s11 = scalar_select 0, %s10, %s8
  $region1: #{mlp_forward.1} parent=0
    #allocation2 [shape = 'u8[4096]{0}', space=vmem, size = 0x1000, scoped, tag = 'output window, operand 0, single buffered']
    #allocation3 [shape = 's32[1]{0}', space=sflag, size = 0x4, scoped, tag = 'scoped memory for mlp_forward.1']
    %12 = vsyncpa [#allocation3], 0
    // Predicated region
    $region2: #{mlp_forward.1} parent=1 // pred_check
      _
    $region3: #{mlp_forward.1} parent=1 // pred_check_branch
      %14 = sbr.rel (0) target = $region5
    $region4: #{mlp_forward.1} parent=1 // pred_region
      _
    $region5: #{mlp_forward.1} parent=1 // pred_fallthru
      _
    // Predicated region
    $region6: #{mlp_forward.1} parent=1 // pred_check
      _
    $region7: #{mlp_forward.1} parent=1 // pred_check_branch
      %16 = sbr.rel (0) target = $region9
    $region8: #{mlp_forward.1} parent=1 // pred_region
      _
    $region9: #{mlp_forward.1} parent=1 // pred_fallthru
      _
    // Predicated region
    $region10: #{mlp_forward.1} parent=1 // pred_check
      _
    $region11: #{mlp_forward.1} parent=1 // pred_check_branch
      %18 = sbr.rel (0) target = $region13
    $region12: #{mlp_forward.1} parent=1 // pred_region
      _
    $region13: #{mlp_forward.1} parent=1 // pred_fallthru
      _
    // Predicated region
    $region14: #{mlp_forward.1} parent=1 // pred_check
      _
    $region15: #{mlp_forward.1} parent=1 // pred_check_branch
      %20 = sbr.rel (0) target = $region17
    $region16: #{mlp_forward.1} parent=1 // pred_region
      _
    $region17: #{mlp_forward.1} parent=1 // pred_fallthru
      _
    // Predicated region
    $region18: #{mlp_forward.1} parent=1 // pred_check
      _
    $region19: #{mlp_forward.1} parent=1 // pred_check_branch
      %22 = sbr.rel (0) target = $region21
    $region20: #{mlp_forward.1} parent=1 // pred_region
      _
    $region21: #{mlp_forward.1} parent=1 // pred_fallthru
      _
    // Predicated region
    $region22: #{mlp_forward.1} parent=1 // pred_check
      _
    $region23: #{mlp_forward.1} parent=1 // pred_check_branch
      %24 = sbr.rel (0) target = $region25
    $region24: #{mlp_forward.1} parent=1 // pred_region
      _
    $region25: #{mlp_forward.1} parent=1 // pred_fallthru
      _
    // Predicated region
    $region26: #{mlp_forward.1} parent=1 // pred_check
      _
    $region27: #{mlp_forward.1} parent=1 // pred_check_branch
      %26 = sbr.rel (0) target = $region29
    $region28: #{mlp_forward.1} parent=1 // pred_region
      _
    $region29: #{mlp_forward.1} parent=1 // pred_fallthru
      _
    %v28 = vld [vmem:[%s0] sm:$0xff]
    %v29 = vpack.c.bf16 %v28, %v28
    %v30 = vld [vmem:[%s1] sm:$0xff]
    %v31 = vld [vmem:[%s1 + $0x8] sm:$0xff]
    %v32 = vld [vmem:[%s1 + $0x10] sm:$0xff]
    %v33 = vld [vmem:[%s1 + $0x18] sm:$0xff]
    %v34 = vld [vmem:[%s1 + $0x20] sm:$0xff]
    %v35 = vld [vmem:[%s1 + $0x28] sm:$0xff]
    %v36 = vld [vmem:[%s1 + $0x30] sm:$0xff]
    %v37 = vld [vmem:[%s1 + $0x38] sm:$0xff]
    %v38 = vld [vmem:[%s1 + $0x40] sm:$0xff]
    %v39 = vld [vmem:[%s1 + $0x48] sm:$0xff]
    %v40 = vld [vmem:[%s1 + $0x50] sm:$0xff]
    %v41 = vld [vmem:[%s1 + $0x58] sm:$0xff]
    %v42 = vld [vmem:[%s1 + $0x60] sm:$0xff]
    %v43 = vld [vmem:[%s1 + $0x68] sm:$0xff]
    %v44 = vld [vmem:[%s1 + $0x70] sm:$0xff]
    %v45 = vld [vmem:[%s1 + $0x78] sm:$0xff]
    %v46 = vld [vmem:[%s1 + $0x80] sm:$0xff]
    %v47 = vld [vmem:[%s1 + $0x88] sm:$0xff]
    %v48 = vld [vmem:[%s1 + $0x90] sm:$0xff]
    %v49 = vld [vmem:[%s1 + $0x98] sm:$0xff]
    %v50 = vld [vmem:[%s1 + $0xa0] sm:$0xff]
    %v51 = vld [vmem:[%s1 + $0xa8] sm:$0xff]
    %v52 = vld [vmem:[%s1 + $0xb0] sm:$0xff]
    %v53 = vld [vmem:[%s1 + $0xb8] sm:$0xff]
    %v54 = vld [vmem:[%s1 + $0xc0] sm:$0xff]
    %v55 = vld [vmem:[%s1 + $0xc8] sm:$0xff]
    %v56 = vld [vmem:[%s1 + $0xd0] sm:$0xff]
    %v57 = vld [vmem:[%s1 + $0xd8] sm:$0xff]
    %v58 = vld [vmem:[%s1 + $0xe0] sm:$0xff]
    %v59 = vld [vmem:[%s1 + $0xe8] sm:$0xff]
    %v60 = vld [vmem:[%s1 + $0xf0] sm:$0xff]
    %v61 = vld [vmem:[%s1 + $0xf8] sm:$0xff]
    %v62 = vld [vmem:[%s1 + $0x100] sm:$0xff]
    %v63 = vld [vmem:[%s1 + $0x108] sm:$0xff]
    %v64 = vld [vmem:[%s1 + $0x110] sm:$0xff]
    %v65 = vld [vmem:[%s1 + $0x118] sm:$0xff]
    %v66 = vld [vmem:[%s1 + $0x120] sm:$0xff]
    %v67 = vld [vmem:[%s1 + $0x128] sm:$0xff]
    %v68 = vld [vmem:[%s1 + $0x130] sm:$0xff]
    %v69 = vld [vmem:[%s1 + $0x138] sm:$0xff]
    %v70 = vld [vmem:[%s1 + $0x140] sm:$0xff]
    %v71 = vld [vmem:[%s1 + $0x148] sm:$0xff]
    %v72 = vld [vmem:[%s1 + $0x150] sm:$0xff]
    %v73 = vld [vmem:[%s1 + $0x158] sm:$0xff]
    %v74 = vld [vmem:[%s1 + $0x160] sm:$0xff]
    %v75 = vld [vmem:[%s1 + $0x168] sm:$0xff]
    %v76 = vld [vmem:[%s1 + $0x170] sm:$0xff]
    %v77 = vld [vmem:[%s1 + $0x178] sm:$0xff]
    %v78 = vld [vmem:[%s1 + $0x180] sm:$0xff]
    %v79 = vld [vmem:[%s1 + $0x188] sm:$0xff]
    %v80 = vld [vmem:[%s1 + $0x190] sm:$0xff]
    %v81 = vld [vmem:[%s1 + $0x198] sm:$0xff]
    %v82 = vld [vmem:[%s1 + $0x1a0] sm:$0xff]
    %v83 = vld [vmem:[%s1 + $0x1a8] sm:$0xff]
    %v84 = vld [vmem:[%s1 + $0x1b0] sm:$0xff]
    %v85 = vld [vmem:[%s1 + $0x1b8] sm:$0xff]
    %v86 = vld [vmem:[%s1 + $0x1c0] sm:$0xff]
    %v87 = vld [vmem:[%s1 + $0x1c8] sm:$0xff]
    %v88 = vld [vmem:[%s1 + $0x1d0] sm:$0xff]
    %v89 = vld [vmem:[%s1 + $0x1d8] sm:$0xff]
    %v90 = vld [vmem:[%s1 + $0x1e0] sm:$0xff]
    %v91 = vld [vmem:[%s1 + $0x1e8] sm:$0xff]
    %v92 = vld [vmem:[%s1 + $0x1f0] sm:$0xff]
    %v93 = vld [vmem:[%s1 + $0x1f8] sm:$0xff]
    %v94 = vld [vmem:[%s2] sm:$0xff]
    %v95 = vld [vmem:[%s2 + $0x8] sm:$0xff]
    %v96 = vld [vmem:[%s2 + $0x10] sm:$0xff]
    %v97 = vld [vmem:[%s2 + $0x18] sm:$0xff]
    %v102 = vlaneseq
    %v103 = vshrl.u32 %v102, 7
    %v104 = vsub.s32 0, %v103
    %v105 = vrot.slane %v94, %v104
    %v106 = vlaneseq
    %v107 = vshrl.u32 %v106, 7
    %v108 = vsub.s32 1, %v107
    %v109 = vrot.slane %v94, %v108
    %v110 = vlaneseq
    %v111 = vshrl.u32 %v110, 7
    %v112 = vsub.s32 2, %v111
    %v113 = vrot.slane %v94, %v112
    %v114 = vlaneseq
    %v115 = vshrl.u32 %v114, 7
    %v116 = vsub.s32 3, %v115
    %v117 = vrot.slane %v94, %v116
    %v118 = vlaneseq
    %v119 = vshrl.u32 %v118, 7
    %v120 = vsub.s32 4, %v119
    %v121 = vrot.slane %v94, %v120
    %v122 = vlaneseq
    %v123 = vshrl.u32 %v122, 7
    %v124 = vsub.s32 5, %v123
    %v125 = vrot.slane %v94, %v124
    %v126 = vlaneseq
    %v127 = vshrl.u32 %v126, 7
    %v128 = vsub.s32 6, %v127
    %v129 = vrot.slane %v94, %v128
    %v130 = vlaneseq
    %v131 = vshrl.u32 %v130, 7
    %v132 = vsub.s32 7, %v131
    %v133 = vrot.slane %v94, %v132
    %v134 = vlaneseq
    %v135 = vshrl.u32 %v134, 7
    %v136 = vsub.s32 0, %v135
    %v137 = vrot.slane %v95, %v136
    %v138 = vlaneseq
    %v139 = vshrl.u32 %v138, 7
    %v140 = vsub.s32 1, %v139
    %v141 = vrot.slane %v95, %v140
    %v142 = vlaneseq
    %v143 = vshrl.u32 %v142, 7
    %v144 = vsub.s32 2, %v143
    %v145 = vrot.slane %v95, %v144
    %v146 = vlaneseq
    %v147 = vshrl.u32 %v146, 7
    %v148 = vsub.s32 3, %v147
    %v149 = vrot.slane %v95, %v148
    %v150 = vlaneseq
    %v151 = vshrl.u32 %v150, 7
    %v152 = vsub.s32 4, %v151
    %v153 = vrot.slane %v95, %v152
    %v154 = vlaneseq
    %v155 = vshrl.u32 %v154, 7
    %v156 = vsub.s32 5, %v155
    %v157 = vrot.slane %v95, %v156
    %v158 = vlaneseq
    %v159 = vshrl.u32 %v158, 7
    %v160 = vsub.s32 6, %v159
    %v161 = vrot.slane %v95, %v160
    %v162 = vlaneseq
    %v163 = vshrl.u32 %v162, 7
    %v164 = vsub.s32 7, %v163
    %v165 = vrot.slane %v95, %v164
    %v166 = vlaneseq
    %v167 = vshrl.u32 %v166, 7
    %v168 = vsub.s32 0, %v167
    %v169 = vrot.slane %v96, %v168
    %v170 = vlaneseq
    %v171 = vshrl.u32 %v170, 7
    %v172 = vsub.s32 1, %v171
    %v173 = vrot.slane %v96, %v172
    %v174 = vlaneseq
    %v175 = vshrl.u32 %v174, 7
    %v176 = vsub.s32 2, %v175
    %v177 = vrot.slane %v96, %v176
    %v178 = vlaneseq
    %v179 = vshrl.u32 %v178, 7
    %v180 = vsub.s32 3, %v179
    %v181 = vrot.slane %v96, %v180
    %v182 = vlaneseq
    %v183 = vshrl.u32 %v182, 7
    %v184 = vsub.s32 4, %v183
    %v185 = vrot.slane %v96, %v184
    %v186 = vlaneseq
    %v187 = vshrl.u32 %v186, 7
    %v188 = vsub.s32 5, %v187
    %v189 = vrot.slane %v96, %v188
    %v190 = vlaneseq
    %v191 = vshrl.u32 %v190, 7
    %v192 = vsub.s32 6, %v191
    %v193 = vrot.slane %v96, %v192
    %v194 = vlaneseq
    %v195 = vshrl.u32 %v194, 7
    %v196 = vsub.s32 7, %v195
    %v197 = vrot.slane %v96, %v196
    %v198 = vlaneseq
    %v199 = vshrl.u32 %v198, 7
    %v200 = vsub.s32 0, %v199
    %v201 = vrot.slane %v97, %v200
    %v202 = vlaneseq
    %v203 = vshrl.u32 %v202, 7
    %v204 = vsub.s32 1, %v203
    %v205 = vrot.slane %v97, %v204
    %v206 = vlaneseq
    %v207 = vshrl.u32 %v206, 7
    %v208 = vsub.s32 2, %v207
    %v209 = vrot.slane %v97, %v208
    %v210 = vlaneseq
    %v211 = vshrl.u32 %v210, 7
    %v212 = vsub.s32 3, %v211
    %v213 = vrot.slane %v97, %v212
    %v214 = vlaneseq
    %v215 = vshrl.u32 %v214, 7
    %v216 = vsub.s32 4, %v215
    %v217 = vrot.slane %v97, %v216
    %v218 = vlaneseq
    %v219 = vshrl.u32 %v218, 7
    %v220 = vsub.s32 5, %v219
    %v221 = vrot.slane %v97, %v220
    %v222 = vlaneseq
    %v223 = vshrl.u32 %v222, 7
    %v224 = vsub.s32 6, %v223
    %v225 = vrot.slane %v97, %v224
    %v226 = vlaneseq
    %v227 = vshrl.u32 %v226, 7
    %v228 = vsub.s32 7, %v227
    %v229 = vrot.slane %v97, %v228
    %v326 = vunpack.c.l.b16 %v30
    %v327 = vunpack.c.h.b16 %v30
    %v328 = vunpack.c.l.b16 %v31
    %v329 = vunpack.c.h.b16 %v31
    %v330 = vunpack.c.l.b16 %v32
    %v331 = vunpack.c.h.b16 %v32
    %v332 = vunpack.c.l.b16 %v33
    %v333 = vunpack.c.h.b16 %v33
    %v334 = vunpack.c.l.b16 %v34
    %v335 = vunpack.c.h.b16 %v34
    %v336 = vunpack.c.l.b16 %v35
    %v337 = vunpack.c.h.b16 %v35
    %v338 = vunpack.c.l.b16 %v36
    %v339 = vunpack.c.h.b16 %v36
    %v340 = vunpack.c.l.b16 %v37
    %v341 = vunpack.c.h.b16 %v37
    %v342 = vunpack.c.l.b16 %v38
    %v343 = vunpack.c.h.b16 %v38
    %v344 = vunpack.c.l.b16 %v39
    %v345 = vunpack.c.h.b16 %v39
    %v346 = vunpack.c.l.b16 %v40
    %v347 = vunpack.c.h.b16 %v40
    %v348 = vunpack.c.l.b16 %v41
    %v349 = vunpack.c.h.b16 %v41
    %v350 = vunpack.c.l.b16 %v42
    %v351 = vunpack.c.h.b16 %v42
    %v352 = vunpack.c.l.b16 %v43
    %v353 = vunpack.c.h.b16 %v43
    %v354 = vunpack.c.l.b16 %v44
    %v355 = vunpack.c.h.b16 %v44
    %v356 = vunpack.c.l.b16 %v45
    %v357 = vunpack.c.h.b16 %v45
    %v358 = vunpack.c.l.b16 %v46
    %v359 = vunpack.c.h.b16 %v46
    %v360 = vunpack.c.l.b16 %v47
    %v361 = vunpack.c.h.b16 %v47
    %v362 = vunpack.c.l.b16 %v48
    %v363 = vunpack.c.h.b16 %v48
    %v364 = vunpack.c.l.b16 %v49
    %v365 = vunpack.c.h.b16 %v49
    %v366 = vunpack.c.l.b16 %v50
    %v367 = vunpack.c.h.b16 %v50
    %v368 = vunpack.c.l.b16 %v51
    %v369 = vunpack.c.h.b16 %v51
    %v370 = vunpack.c.l.b16 %v52
    %v371 = vunpack.c.h.b16 %v52
    %v372 = vunpack.c.l.b16 %v53
    %v373 = vunpack.c.h.b16 %v53
    %v374 = vunpack.c.l.b16 %v54
    %v375 = vunpack.c.h.b16 %v54
    %v376 = vunpack.c.l.b16 %v55
    %v377 = vunpack.c.h.b16 %v55
    %v378 = vunpack.c.l.b16 %v56
    %v379 = vunpack.c.h.b16 %v56
    %v380 = vunpack.c.l.b16 %v57
    %v381 = vunpack.c.h.b16 %v57
    %v382 = vunpack.c.l.b16 %v58
    %v383 = vunpack.c.h.b16 %v58
    %v384 = vunpack.c.l.b16 %v59
    %v385 = vunpack.c.h.b16 %v59
    %v386 = vunpack.c.l.b16 %v60
    %v387 = vunpack.c.h.b16 %v60
    %v388 = vunpack.c.l.b16 %v61
    %v389 = vunpack.c.h.b16 %v61
    %v390 = vunpack.c.l.b16 %v62
    %v391 = vunpack.c.h.b16 %v62
    %v392 = vunpack.c.l.b16 %v63
    %v393 = vunpack.c.h.b16 %v63
    %v394 = vunpack.c.l.b16 %v64
    %v395 = vunpack.c.h.b16 %v64
    %v396 = vunpack.c.l.b16 %v65
    %v397 = vunpack.c.h.b16 %v65
    %v398 = vunpack.c.l.b16 %v66
    %v399 = vunpack.c.h.b16 %v66
    %v400 = vunpack.c.l.b16 %v67
    %v401 = vunpack.c.h.b16 %v67
    %v402 = vunpack.c.l.b16 %v68
    %v403 = vunpack.c.h.b16 %v68
    %v404 = vunpack.c.l.b16 %v69
    %v405 = vunpack.c.h.b16 %v69
    %v406 = vunpack.c.l.b16 %v70
    %v407 = vunpack.c.h.b16 %v70
    %v408 = vunpack.c.l.b16 %v71
    %v409 = vunpack.c.h.b16 %v71
    %v410 = vunpack.c.l.b16 %v72
    %v411 = vunpack.c.h.b16 %v72
    %v412 = vunpack.c.l.b16 %v73
    %v413 = vunpack.c.h.b16 %v73
    %v414 = vunpack.c.l.b16 %v74
    %v415 = vunpack.c.h.b16 %v74
    %v416 = vunpack.c.l.b16 %v75
    %v417 = vunpack.c.h.b16 %v75
    %v418 = vunpack.c.l.b16 %v76
    %v419 = vunpack.c.h.b16 %v76
    %v420 = vunpack.c.l.b16 %v77
    %v421 = vunpack.c.h.b16 %v77
    %v422 = vunpack.c.l.b16 %v78
    %v423 = vunpack.c.h.b16 %v78
    %v424 = vunpack.c.l.b16 %v79
    %v425 = vunpack.c.h.b16 %v79
    %v426 = vunpack.c.l.b16 %v80
    %v427 = vunpack.c.h.b16 %v80
    %v428 = vunpack.c.l.b16 %v81
    %v429 = vunpack.c.h.b16 %v81
    %v430 = vunpack.c.l.b16 %v82
    %v431 = vunpack.c.h.b16 %v82
    %v432 = vunpack.c.l.b16 %v83
    %v433 = vunpack.c.h.b16 %v83
    %v434 = vunpack.c.l.b16 %v84
    %v435 = vunpack.c.h.b16 %v84
    %v436 = vunpack.c.l.b16 %v85
    %v437 = vunpack.c.h.b16 %v85
    %v438 = vunpack.c.l.b16 %v86
    %v439 = vunpack.c.h.b16 %v86
    %v440 = vunpack.c.l.b16 %v87
    %v441 = vunpack.c.h.b16 %v87
    %v442 = vunpack.c.l.b16 %v88
    %v443 = vunpack.c.h.b16 %v88
    %v444 = vunpack.c.l.b16 %v89
    %v445 = vunpack.c.h.b16 %v89
    %v446 = vunpack.c.l.b16 %v90
    %v447 = vunpack.c.h.b16 %v90
    %v448 = vunpack.c.l.b16 %v91
    %v449 = vunpack.c.h.b16 %v91
    %v450 = vunpack.c.l.b16 %v92
    %v451 = vunpack.c.h.b16 %v92
    %v452 = vunpack.c.l.b16 %v93
    %v453 = vunpack.c.h.b16 %v93
    %v454 = vpack.c.b16 %v358, %v326
    %v455 = vpack.c.b16 %v359, %v327
    %v456 = vpack.c.b16 %v360, %v328
    %v457 = vpack.c.b16 %v361, %v329
    %v458 = vpack.c.b16 %v362, %v330
    %v459 = vpack.c.b16 %v363, %v331
    %v460 = vpack.c.b16 %v364, %v332
    %v461 = vpack.c.b16 %v365, %v333
    %v462 = vpack.c.b16 %v366, %v334
    %v463 = vpack.c.b16 %v367, %v335
    %v464 = vpack.c.b16 %v368, %v336
    %v465 = vpack.c.b16 %v369, %v337
    %v466 = vpack.c.b16 %v370, %v338
    %v467 = vpack.c.b16 %v371, %v339
    %v468 = vpack.c.b16 %v372, %v340
    %v469 = vpack.c.b16 %v373, %v341
    %v470 = vpack.c.b16 %v374, %v342
    %v471 = vpack.c.b16 %v375, %v343
    %v472 = vpack.c.b16 %v376, %v344
    %v473 = vpack.c.b16 %v377, %v345
    %v474 = vpack.c.b16 %v378, %v346
    %v475 = vpack.c.b16 %v379, %v347
    %v476 = vpack.c.b16 %v380, %v348
    %v477 = vpack.c.b16 %v381, %v349
    %v478 = vpack.c.b16 %v382, %v350
    %v479 = vpack.c.b16 %v383, %v351
    %v480 = vpack.c.b16 %v384, %v352
    %v481 = vpack.c.b16 %v385, %v353
    %v482 = vpack.c.b16 %v386, %v354
    %v483 = vpack.c.b16 %v387, %v355
    %v484 = vpack.c.b16 %v388, %v356
    %v485 = vpack.c.b16 %v389, %v357
    %v486 = vpack.c.b16 %v422, %v390
    %v487 = vpack.c.b16 %v423, %v391
    %v488 = vpack.c.b16 %v424, %v392
    %v489 = vpack.c.b16 %v425, %v393
    %v490 = vpack.c.b16 %v426, %v394
    %v491 = vpack.c.b16 %v427, %v395
    %v492 = vpack.c.b16 %v428, %v396
    %v493 = vpack.c.b16 %v429, %v397
    %v494 = vpack.c.b16 %v430, %v398
    %v495 = vpack.c.b16 %v431, %v399
    %v496 = vpack.c.b16 %v432, %v400
    %v497 = vpack.c.b16 %v433, %v401
    %v498 = vpack.c.b16 %v434, %v402
    %v499 = vpack.c.b16 %v435, %v403
    %v500 = vpack.c.b16 %v436, %v404
    %v501 = vpack.c.b16 %v437, %v405
    %v502 = vpack.c.b16 %v438, %v406
    %v503 = vpack.c.b16 %v439, %v407
    %v504 = vpack.c.b16 %v440, %v408
    %v505 = vpack.c.b16 %v441, %v409
    %v506 = vpack.c.b16 %v442, %v410
    %v507 = vpack.c.b16 %v443, %v411
    %v508 = vpack.c.b16 %v444, %v412
    %v509 = vpack.c.b16 %v445, %v413
    %v510 = vpack.c.b16 %v446, %v414
    %v511 = vpack.c.b16 %v447, %v415
    %v512 = vpack.c.b16 %v448, %v416
    %v513 = vpack.c.b16 %v449, %v417
    %v514 = vpack.c.b16 %v450, %v418
    %v515 = vpack.c.b16 %v451, %v419
    %v516 = vpack.c.b16 %v452, %v420
    %v517 = vpack.c.b16 %v453, %v421
    %vm582 = vcmask 261120
    %v584 = vsel %vm582, %v29, 0
    %586 = vmatprep.subr.bf16.mxu0 %v455
    %587 = vmatpush1.bf16.msra.mxu0 %v454
    %588 = vmatprep.subr.bf16.mxu0 %v487
    %589 = vmatpush1.bf16.msra.mxu0 %v486
    %590 = vmatprep.subr.bf16.mxu0 0
    %591 = vmatpush1.bf16.msra.mxu0 0
    %592 = vmatprep.subr.bf16.mxu0 0
    %593 = vmatpush1.bf16.msra.mxu0 0
    %594 = vmatprep.subr.bf16.mxu0 0
    %595 = vmatpush1.bf16.msra.mxu0 0
    %596 = vmatprep.subr.bf16.mxu0 0
    %597 = vmatpush1.bf16.msra.mxu0 0
    %598 = vmatprep.subr.bf16.mxu0 0
    %599 = vmatpush1.bf16.msra.mxu0 0
    %600 = vmatprep.subr.bf16.mxu0 0
    %601 = vmatpush1.bf16.msra.mxu0 0
    %602 = vmatprep.subr.bf16.mxu0 0
    %603 = vmatpush1.bf16.msra.mxu0 0
    %604 = vmatprep.subr.bf16.mxu0 0
    %605 = vmatpush1.bf16.msra.mxu0 0
    %606 = vmatprep.subr.bf16.mxu0 0
    %607 = vmatpush1.bf16.msra.mxu0 0
    %608 = vmatprep.subr.bf16.mxu0 0
    %609 = vmatpush1.bf16.msra.mxu0 0
    %610 = vmatprep.subr.bf16.mxu0 0
    %611 = vmatpush1.bf16.msra.mxu0 0
    %612 = vmatprep.subr.bf16.mxu0 0
    %613 = vmatpush1.bf16.msra.mxu0 0
    %614 = vmatprep.subr.bf16.mxu0 0
    %615 = vmatpush1.bf16.msra.mxu0 0
    %616 = vmatprep.subr.bf16.mxu0 0
    %617 = vmatpush1.bf16.msra.mxu0 0
    %618 = vmatprep.mubr.bf16.mxu0 0
    %619 = vmatmul.mubr.bf16.gmra.mrb[0].mxu0 %v584
    %v620 = vpop.f32.mrb[0].mxu0
    %v621 = vadd.f32 %v105, %v620
    %v622 = vpop.f32.mrb[0].mxu0
    %v623 = vadd.f32 %v109, %v622
    %v624 = vpop.f32.mrb[0].mxu0
    %v625 = vpop.f32.mrb[0].mxu0
    %626 = vdwg.mxu0
    %627 = vmatprep.subr.bf16.mxu0 %v457
    %628 = vmatpush1.bf16.msra.mxu0 %v456
    %629 = vmatprep.subr.bf16.mxu0 %v489
    %630 = vmatpush1.bf16.msra.mxu0 %v488
    %631 = vmatprep.subr.bf16.mxu0 0
    %632 = vmatpush1.bf16.msra.mxu0 0
    %633 = vmatprep.subr.bf16.mxu0 0
    %634 = vmatpush1.bf16.msra.mxu0 0
    %635 = vmatprep.subr.bf16.mxu0 0
    %636 = vmatpush1.bf16.msra.mxu0 0
    %637 = vmatprep.subr.bf16.mxu0 0
    %638 = vmatpush1.bf16.msra.mxu0 0
    %639 = vmatprep.subr.bf16.mxu0 0
    %640 = vmatpush1.bf16.msra.mxu0 0
    %641 = vmatprep.subr.bf16.mxu0 0
    %642 = vmatpush1.bf16.msra.mxu0 0
    %643 = vmatprep.subr.bf16.mxu0 0
    %644 = vmatpush1.bf16.msra.mxu0 0
    %645 = vmatprep.subr.bf16.mxu0 0
    %646 = vmatpush1.bf16.msra.mxu0 0
    %647 = vmatprep.subr.bf16.mxu0 0
    %648 = vmatpush1.bf16.msra.mxu0 0
    %649 = vmatprep.subr.bf16.mxu0 0
    %650 = vmatpush1.bf16.msra.mxu0 0
    %651 = vmatprep.subr.bf16.mxu0 0
    %652 = vmatpush1.bf16.msra.mxu0 0
    %653 = vmatprep.subr.bf16.mxu0 0
    %654 = vmatpush1.bf16.msra.mxu0 0
    %655 = vmatprep.subr.bf16.mxu0 0
    %656 = vmatpush1.bf16.msra.mxu0 0
    %657 = vmatprep.subr.bf16.mxu0 0
    %658 = vmatpush1.bf16.msra.mxu0 0
    %659 = vmatprep.mubr.bf16.mxu0 0
    %660 = vmatmul.mubr.bf16.gmra.mrb[0].mxu0 %v584
    %v661 = vpop.f32.mrb[0].mxu0
    %v662 = vadd.f32 %v113, %v661
    %v663 = vpop.f32.mrb[0].mxu0
    %v664 = vadd.f32 %v117, %v663
    %v665 = vpop.f32.mrb[0].mxu0
    %v666 = vpop.f32.mrb[0].mxu0
    %667 = vdwg.mxu0
    %668 = vmatprep.subr.bf16.mxu0 %v459
    %669 = vmatpush1.bf16.msra.mxu0 %v458
    %670 = vmatprep.subr.bf16.mxu0 %v491
    %671 = vmatpush1.bf16.msra.mxu0 %v490
    %672 = vmatprep.subr.bf16.mxu0 0
    %673 = vmatpush1.bf16.msra.mxu0 0
    %674 = vmatprep.subr.bf16.mxu0 0
    %675 = vmatpush1.bf16.msra.mxu0 0
    %676 = vmatprep.subr.bf16.mxu0 0
    %677 = vmatpush1.bf16.msra.mxu0 0
    %678 = vmatprep.subr.bf16.mxu0 0
    %679 = vmatpush1.bf16.msra.mxu0 0
    %680 = vmatprep.subr.bf16.mxu0 0
    %681 = vmatpush1.bf16.msra.mxu0 0
    %682 = vmatprep.subr.bf16.mxu0 0
    %683 = vmatpush1.bf16.msra.mxu0 0
    %684 = vmatprep.subr.bf16.mxu0 0
    %685 = vmatpush1.bf16.msra.mxu0 0
    %686 = vmatprep.subr.bf16.mxu0 0
    %687 = vmatpush1.bf16.msra.mxu0 0
    %688 = vmatprep.subr.bf16.mxu0 0
    %689 = vmatpush1.bf16.msra.mxu0 0
    %690 = vmatprep.subr.bf16.mxu0 0
    %691 = vmatpush1.bf16.msra.mxu0 0
    %692 = vmatprep.subr.bf16.mxu0 0
    %693 = vmatpush1.bf16.msra.mxu0 0
    %694 = vmatprep.subr.bf16.mxu0 0
    %695 = vmatpush1.bf16.msra.mxu0 0
    %696 = vmatprep.subr.bf16.mxu0 0
    %697 = vmatpush1.bf16.msra.mxu0 0
    %698 = vmatprep.subr.bf16.mxu0 0
    %699 = vmatpush1.bf16.msra.mxu0 0
    %700 = vmatprep.mubr.bf16.mxu0 0
    %701 = vmatmul.mubr.bf16.gmra.mrb[0].mxu0 %v584
    %v702 = vpop.f32.mrb[0].mxu0
    %v703 = vadd.f32 %v121, %v702
    %v704 = vpop.f32.mrb[0].mxu0
    %v705 = vadd.f32 %v125, %v704
    %v706 = vpop.f32.mrb[0].mxu0
    %v707 = vpop.f32.mrb[0].mxu0
    %708 = vdwg.mxu0
    %709 = vmatprep.subr.bf16.mxu0 %v461
    %710 = vmatpush1.bf16.msra.mxu0 %v460
    %711 = vmatprep.subr.bf16.mxu0 %v493
    %712 = vmatpush1.bf16.msra.mxu0 %v492
    %713 = vmatprep.subr.bf16.mxu0 0
    %714 = vmatpush1.bf16.msra.mxu0 0
    %715 = vmatprep.subr.bf16.mxu0 0
    %716 = vmatpush1.bf16.msra.mxu0 0
    %717 = vmatprep.subr.bf16.mxu0 0
    %718 = vmatpush1.bf16.msra.mxu0 0
    %719 = vmatprep.subr.bf16.mxu0 0
    %720 = vmatpush1.bf16.msra.mxu0 0
    %721 = vmatprep.subr.bf16.mxu0 0
    %722 = vmatpush1.bf16.msra.mxu0 0
    %723 = vmatprep.subr.bf16.mxu0 0
    %724 = vmatpush1.bf16.msra.mxu0 0
    %725 = vmatprep.subr.bf16.mxu0 0
    %726 = vmatpush1.bf16.msra.mxu0 0
    %727 = vmatprep.subr.bf16.mxu0 0
    %728 = vmatpush1.bf16.msra.mxu0 0
    %729 = vmatprep.subr.bf16.mxu0 0
    %730 = vmatpush1.bf16.msra.mxu0 0
    %731 = vmatprep.subr.bf16.mxu0 0
    %732 = vmatpush1.bf16.msra.mxu0 0
    %733 = vmatprep.subr.bf16.mxu0 0
    %734 = vmatpush1.bf16.msra.mxu0 0
    %735 = vmatprep.subr.bf16.mxu0 0
    %736 = vmatpush1.bf16.msra.mxu0 0
    %737 = vmatprep.subr.bf16.mxu0 0
    %738 = vmatpush1.bf16.msra.mxu0 0
    %739 = vmatprep.subr.bf16.mxu0 0
    %740 = vmatpush1.bf16.msra.mxu0 0
    %741 = vmatprep.mubr.bf16.mxu0 0
    %742 = vmatmul.mubr.bf16.gmra.mrb[0].mxu0 %v584
    %v743 = vpop.f32.mrb[0].mxu0
    %v744 = vadd.f32 %v129, %v743
    %v745 = vpop.f32.mrb[0].mxu0
    %v746 = vadd.f32 %v133, %v745
    %v747 = vpop.f32.mrb[0].mxu0
    %v748 = vpop.f32.mrb[0].mxu0
    %749 = vdwg.mxu0
    %750 = vmatprep.subr.bf16.mxu0 %v463
    %751 = vmatpush1.bf16.msra.mxu0 %v462
    %752 = vmatprep.subr.bf16.mxu0 %v495
    %753 = vmatpush1.bf16.msra.mxu0 %v494
    %754 = vmatprep.subr.bf16.mxu0 0
    %755 = vmatpush1.bf16.msra.mxu0 0
    %756 = vmatprep.subr.bf16.mxu0 0
    %757 = vmatpush1.bf16.msra.mxu0 0
    %758 = vmatprep.subr.bf16.mxu0 0
    %759 = vmatpush1.bf16.msra.mxu0 0
    %760 = vmatprep.subr.bf16.mxu0 0
    %761 = vmatpush1.bf16.msra.mxu0 0
    %762 = vmatprep.subr.bf16.mxu0 0
    %763 = vmatpush1.bf16.msra.mxu0 0
    %764 = vmatprep.subr.bf16.mxu0 0
    %765 = vmatpush1.bf16.msra.mxu0 0
    %766 = vmatprep.subr.bf16.mxu0 0
    %767 = vmatpush1.bf16.msra.mxu0 0
    %768 = vmatprep.subr.bf16.mxu0 0
    %769 = vmatpush1.bf16.msra.mxu0 0
    %770 = vmatprep.subr.bf16.mxu0 0
    %771 = vmatpush1.bf16.msra.mxu0 0
    %772 = vmatprep.subr.bf16.mxu0 0
    %773 = vmatpush1.bf16.msra.mxu0 0
    %774 = vmatprep.subr.bf16.mxu0 0
    %775 = vmatpush1.bf16.msra.mxu0 0
    %776 = vmatprep.subr.bf16.mxu0 0
    %777 = vmatpush1.bf16.msra.mxu0 0
    %778 = vmatprep.subr.bf16.mxu0 0
    %779 = vmatpush1.bf16.msra.mxu0 0
    %780 = vmatprep.subr.bf16.mxu0 0
    %781 = vmatpush1.bf16.msra.mxu0 0
    %782 = vmatprep.mubr.bf16.mxu0 0
    %783 = vmatmul.mubr.bf16.gmra.mrb[0].mxu0 %v584
    %v784 = vpop.f32.mrb[0].mxu0
    %v785 = vadd.f32 %v137, %v784
    %v786 = vpop.f32.mrb[0].mxu0
    %v787 = vadd.f32 %v141, %v786
    %v788 = vpop.f32.mrb[0].mxu0
    %v789 = vpop.f32.mrb[0].mxu0
    %790 = vdwg.mxu0
    %791 = vmatprep.subr.bf16.mxu0 %v465
    %792 = vmatpush1.bf16.msra.mxu0 %v464
    %793 = vmatprep.subr.bf16.mxu0 %v497
    %794 = vmatpush1.bf16.msra.mxu0 %v496
    %795 = vmatprep.subr.bf16.mxu0 0
    %796 = vmatpush1.bf16.msra.mxu0 0
    %797 = vmatprep.subr.bf16.mxu0 0
    %798 = vmatpush1.bf16.msra.mxu0 0
    %799 = vmatprep.subr.bf16.mxu0 0
    %800 = vmatpush1.bf16.msra.mxu0 0
    %801 = vmatprep.subr.bf16.mxu0 0
    %802 = vmatpush1.bf16.msra.mxu0 0
    %803 = vmatprep.subr.bf16.mxu0 0
    %804 = vmatpush1.bf16.msra.mxu0 0
    %805 = vmatprep.subr.bf16.mxu0 0
    %806 = vmatpush1.bf16.msra.mxu0 0
    %807 = vmatprep.subr.bf16.mxu0 0
    %808 = vmatpush1.bf16.msra.mxu0 0
    %809 = vmatprep.subr.bf16.mxu0 0
    %810 = vmatpush1.bf16.msra.mxu0 0
    %811 = vmatprep.subr.bf16.mxu0 0
    %812 = vmatpush1.bf16.msra.mxu0 0
    %813 = vmatprep.subr.bf16.mxu0 0
    %814 = vmatpush1.bf16.msra.mxu0 0
    %815 = vmatprep.subr.bf16.mxu0 0
    %816 = vmatpush1.bf16.msra.mxu0 0
    %817 = vmatprep.subr.bf16.mxu0 0
    %818 = vmatpush1.bf16.msra.mxu0 0
    %819 = vmatprep.subr.bf16.mxu0 0
    %820 = vmatpush1.bf16.msra.mxu0 0
    %821 = vmatprep.subr.bf16.mxu0 0
    %822 = vmatpush1.bf16.msra.mxu0 0
    %823 = vmatprep.mubr.bf16.mxu0 0
    %824 = vmatmul.mubr.bf16.gmra.mrb[0].mxu0 %v584
    %v825 = vpop.f32.mrb[0].mxu0
    %v826 = vadd.f32 %v145, %v825
    %v827 = vpop.f32.mrb[0].mxu0
    %v828 = vadd.f32 %v149, %v827
    %v829 = vpop.f32.mrb[0].mxu0
    %v830 = vpop.f32.mrb[0].mxu0
    %831 = vdwg.mxu0
    %832 = vmatprep.subr.bf16.mxu0 %v467
    %833 = vmatpush1.bf16.msra.mxu0 %v466
    %834 = vmatprep.subr.bf16.mxu0 %v499
    %835 = vmatpush1.bf16.msra.mxu0 %v498
    %836 = vmatprep.subr.bf16.mxu0 0
    %837 = vmatpush1.bf16.msra.mxu0 0
    %838 = vmatprep.subr.bf16.mxu0 0
    %839 = vmatpush1.bf16.msra.mxu0 0
    %840 = vmatprep.subr.bf16.mxu0 0
    %841 = vmatpush1.bf16.msra.mxu0 0
    %842 = vmatprep.subr.bf16.mxu0 0
    %843 = vmatpush1.bf16.msra.mxu0 0
    %844 = vmatprep.subr.bf16.mxu0 0
    %845 = vmatpush1.bf16.msra.mxu0 0
    %846 = vmatprep.subr.bf16.mxu0 0
    %847 = vmatpush1.bf16.msra.mxu0 0
    %848 = vmatprep.subr.bf16.mxu0 0
    %849 = vmatpush1.bf16.msra.mxu0 0
    %850 = vmatprep.subr.bf16.mxu0 0
    %851 = vmatpush1.bf16.msra.mxu0 0
    %852 = vmatprep.subr.bf16.mxu0 0
    %853 = vmatpush1.bf16.msra.mxu0 0
    %854 = vmatprep.subr.bf16.mxu0 0
    %855 = vmatpush1.bf16.msra.mxu0 0
    %856 = vmatprep.subr.bf16.mxu0 0
    %857 = vmatpush1.bf16.msra.mxu0 0
    %858 = vmatprep.subr.bf16.mxu0 0
    %859 = vmatpush1.bf16.msra.mxu0 0
    %860 = vmatprep.subr.bf16.mxu0 0
    %861 = vmatpush1.bf16.msra.mxu0 0
    %862 = vmatprep.subr.bf16.mxu0 0
    %863 = vmatpush1.bf16.msra.mxu0 0
    %864 = vmatprep.mubr.bf16.mxu0 0
    %865 = vmatmul.mubr.bf16.gmra.mrb[0].mxu0 %v584
    %v866 = vpop.f32.mrb[0].mxu0
    %v867 = vadd.f32 %v153, %v866
    %v868 = vpop.f32.mrb[0].mxu0
    %v869 = vadd.f32 %v157, %v868
    %v870 = vpop.f32.mrb[0].mxu0
    %v871 = vpop.f32.mrb[0].mxu0
    %872 = vdwg.mxu0
    %873 = vmatprep.subr.bf16.mxu0 %v469
    %874 = vmatpush1.bf16.msra.mxu0 %v468
    %875 = vmatprep.subr.bf16.mxu0 %v501
    %876 = vmatpush1.bf16.msra.mxu0 %v500
    %877 = vmatprep.subr.bf16.mxu0 0
    %878 = vmatpush1.bf16.msra.mxu0 0
    %879 = vmatprep.subr.bf16.mxu0 0
    %880 = vmatpush1.bf16.msra.mxu0 0
    %881 = vmatprep.subr.bf16.mxu0 0
    %882 = vmatpush1.bf16.msra.mxu0 0
    %883 = vmatprep.subr.bf16.mxu0 0
    %884 = vmatpush1.bf16.msra.mxu0 0
    %885 = vmatprep.subr.bf16.mxu0 0
    %886 = vmatpush1.bf16.msra.mxu0 0
    %887 = vmatprep.subr.bf16.mxu0 0
    %888 = vmatpush1.bf16.msra.mxu0 0
    %889 = vmatprep.subr.bf16.mxu0 0
    %890 = vmatpush1.bf16.msra.mxu0 0
    %891 = vmatprep.subr.bf16.mxu0 0
    %892 = vmatpush1.bf16.msra.mxu0 0
    %893 = vmatprep.subr.bf16.mxu0 0
    %894 = vmatpush1.bf16.msra.mxu0 0
    %895 = vmatprep.subr.bf16.mxu0 0
    %896 = vmatpush1.bf16.msra.mxu0 0
    %897 = vmatprep.subr.bf16.mxu0 0
    %898 = vmatpush1.bf16.msra.mxu0 0
    %899 = vmatprep.subr.bf16.mxu0 0
    %900 = vmatpush1.bf16.msra.mxu0 0
    %901 = vmatprep.subr.bf16.mxu0 0
    %902 = vmatpush1.bf16.msra.mxu0 0
    %903 = vmatprep.subr.bf16.mxu0 0
    %904 = vmatpush1.bf16.msra.mxu0 0
    %905 = vmatprep.mubr.bf16.mxu0 0
    %906 = vmatmul.mubr.bf16.gmra.mrb[0].mxu0 %v584
    %v907 = vpop.f32.mrb[0].mxu0
    %v908 = vadd.f32 %v161, %v907
    %v909 = vpop.f32.mrb[0].mxu0
    %v910 = vadd.f32 %v165, %v909
    %v911 = vpop.f32.mrb[0].mxu0
    %v912 = vpop.f32.mrb[0].mxu0
    %913 = vdwg.mxu0
    %914 = vmatprep.subr.bf16.mxu0 %v471
    %915 = vmatpush1.bf16.msra.mxu0 %v470
    %916 = vmatprep.subr.bf16.mxu0 %v503
    %917 = vmatpush1.bf16.msra.mxu0 %v502
    %918 = vmatprep.subr.bf16.mxu0 0
    %919 = vmatpush1.bf16.msra.mxu0 0
    %920 = vmatprep.subr.bf16.mxu0 0
    %921 = vmatpush1.bf16.msra.mxu0 0
    %922 = vmatprep.subr.bf16.mxu0 0
    %923 = vmatpush1.bf16.msra.mxu0 0
    %924 = vmatprep.subr.bf16.mxu0 0
    %925 = vmatpush1.bf16.msra.mxu0 0
    %926 = vmatprep.subr.bf16.mxu0 0
    %927 = vmatpush1.bf16.msra.mxu0 0
    %928 = vmatprep.subr.bf16.mxu0 0
    %929 = vmatpush1.bf16.msra.mxu0 0
    %930 = vmatprep.subr.bf16.mxu0 0
    %931 = vmatpush1.bf16.msra.mxu0 0
    %932 = vmatprep.subr.bf16.mxu0 0
    %933 = vmatpush1.bf16.msra.mxu0 0
    %934 = vmatprep.subr.bf16.mxu0 0
    %935 = vmatpush1.bf16.msra.mxu0 0
    %936 = vmatprep.subr.bf16.mxu0 0
    %937 = vmatpush1.bf16.msra.mxu0 0
    %938 = vmatprep.subr.bf16.mxu0 0
    %939 = vmatpush1.bf16.msra.mxu0 0
    %940 = vmatprep.subr.bf16.mxu0 0
    %941 = vmatpush1.bf16.msra.mxu0 0
    %942 = vmatprep.subr.bf16.mxu0 0
    %943 = vmatpush1.bf16.msra.mxu0 0
    %944 = vmatprep.subr.bf16.mxu0 0
    %945 = vmatpush1.bf16.msra.mxu0 0
    %946 = vmatprep.mubr.bf16.mxu0 0
    %947 = vmatmul.mubr.bf16.gmra.mrb[0].mxu0 %v584
    %v948 = vpop.f32.mrb[0].mxu0
    %v949 = vadd.f32 %v169, %v948
    %v950 = vpop.f32.mrb[0].mxu0
    %v951 = vadd.f32 %v173, %v950
    %v952 = vpop.f32.mrb[0].mxu0
    %v953 = vpop.f32.mrb[0].mxu0
    %954 = vdwg.mxu0
    %955 = vmatprep.subr.bf16.mxu0 %v473
    %956 = vmatpush1.bf16.msra.mxu0 %v472
    %957 = vmatprep.subr.bf16.mxu0 %v505
    %958 = vmatpush1.bf16.msra.mxu0 %v504
    %959 = vmatprep.subr.bf16.mxu0 0
    %960 = vmatpush1.bf16.msra.mxu0 0
    %961 = vmatprep.subr.bf16.mxu0 0
    %962 = vmatpush1.bf16.msra.mxu0 0
    %963 = vmatprep.subr.bf16.mxu0 0
    %964 = vmatpush1.bf16.msra.mxu0 0
    %965 = vmatprep.subr.bf16.mxu0 0
    %966 = vmatpush1.bf16.msra.mxu0 0
    %967 = vmatprep.subr.bf16.mxu0 0
    %968 = vmatpush1.bf16.msra.mxu0 0
    %969 = vmatprep.subr.bf16.mxu0 0
    %970 = vmatpush1.bf16.msra.mxu0 0
    %971 = vmatprep.subr.bf16.mxu0 0
    %972 = vmatpush1.bf16.msra.mxu0 0
    %973 = vmatprep.subr.bf16.mxu0 0
    %974 = vmatpush1.bf16.msra.mxu0 0
    %975 = vmatprep.subr.bf16.mxu0 0
    %976 = vmatpush1.bf16.msra.mxu0 0
    %977 = vmatprep.subr.bf16.mxu0 0
    %978 = vmatpush1.bf16.msra.mxu0 0
    %979 = vmatprep.subr.bf16.mxu0 0
    %980 = vmatpush1.bf16.msra.mxu0 0
    %981 = vmatprep.subr.bf16.mxu0 0
    %982 = vmatpush1.bf16.msra.mxu0 0
    %983 = vmatprep.subr.bf16.mxu0 0
    %984 = vmatpush1.bf16.msra.mxu0 0
    %985 = vmatprep.subr.bf16.mxu0 0
    %986 = vmatpush1.bf16.msra.mxu0 0
    %987 = vmatprep.mubr.bf16.mxu0 0
    %988 = vmatmul.mubr.bf16.gmra.mrb[0].mxu0 %v584
    %v989 = vpop.f32.mrb[0].mxu0
    %v990 = vadd.f32 %v177, %v989
    %v991 = vpop.f32.mrb[0].mxu0
    %v992 = vadd.f32 %v181, %v991
    %v993 = vpop.f32.mrb[0].mxu0
    %v994 = vpop.f32.mrb[0].mxu0
    %995 = vdwg.mxu0
    %996 = vmatprep.subr.bf16.mxu0 %v475
    %997 = vmatpush1.bf16.msra.mxu0 %v474
    %998 = vmatprep.subr.bf16.mxu0 %v507
    %999 = vmatpush1.bf16.msra.mxu0 %v506
    %1000 = vmatprep.subr.bf16.mxu0 0
    %1001 = vmatpush1.bf16.msra.mxu0 0
    %1002 = vmatprep.subr.bf16.mxu0 0
    %1003 = vmatpush1.bf16.msra.mxu0 0
    %1004 = vmatprep.subr.bf16.mxu0 0
    %1005 = vmatpush1.bf16.msra.mxu0 0
    %1006 = vmatprep.subr.bf16.mxu0 0
    %1007 = vmatpush1.bf16.msra.mxu0 0
    %1008 = vmatprep.subr.bf16.mxu0 0
    %1009 = vmatpush1.bf16.msra.mxu0 0
    %1010 = vmatprep.subr.bf16.mxu0 0
    %1011 = vmatpush1.bf16.msra.mxu0 0
    %1012 = vmatprep.subr.bf16.mxu0 0
    %1013 = vmatpush1.bf16.msra.mxu0 0
    %1014 = vmatprep.subr.bf16.mxu0 0
    %1015 = vmatpush1.bf16.msra.mxu0 0
    %1016 = vmatprep.subr.bf16.mxu0 0
    %1017 = vmatpush1.bf16.msra.mxu0 0
    %1018 = vmatprep.subr.bf16.mxu0 0
    %1019 = vmatpush1.bf16.msra.mxu0 0
    %1020 = vmatprep.subr.bf16.mxu0 0
    %1021 = vmatpush1.bf16.msra.mxu0 0
    %1022 = vmatprep.subr.bf16.mxu0 0
    %1023 = vmatpush1.bf16.msra.mxu0 0
    %1024 = vmatprep.subr.bf16.mxu0 0
    %1025 = vmatpush1.bf16.msra.mxu0 0
    %1026 = vmatprep.subr.bf16.mxu0 0
    %1027 = vmatpush1.bf16.msra.mxu0 0
    %1028 = vmatprep.mubr.bf16.mxu0 0
    %1029 = vmatmul.mubr.bf16.gmra.mrb[0].mxu0 %v584
    %v1030 = vpop.f32.mrb[0].mxu0
    %v1031 = vadd.f32 %v185, %v1030
    %v1032 = vpop.f32.mrb[0].mxu0
    %v1033 = vadd.f32 %v189, %v1032
    %v1034 = vpop.f32.mrb[0].mxu0
    %v1035 = vpop.f32.mrb[0].mxu0
    %1036 = vdwg.mxu0
    %1037 = vmatprep.subr.bf16.mxu0 %v477
    %1038 = vmatpush1.bf16.msra.mxu0 %v476
    %1039 = vmatprep.subr.bf16.mxu0 %v509
    %1040 = vmatpush1.bf16.msra.mxu0 %v508
    %1041 = vmatprep.subr.bf16.mxu0 0
    %1042 = vmatpush1.bf16.msra.mxu0 0
    %1043 = vmatprep.subr.bf16.mxu0 0
    %1044 = vmatpush1.bf16.msra.mxu0 0
    %1045 = vmatprep.subr.bf16.mxu0 0
    %1046 = vmatpush1.bf16.msra.mxu0 0
    %1047 = vmatprep.subr.bf16.mxu0 0
    %1048 = vmatpush1.bf16.msra.mxu0 0
    %1049 = vmatprep.subr.bf16.mxu0 0
    %1050 = vmatpush1.bf16.msra.mxu0 0
    %1051 = vmatprep.subr.bf16.mxu0 0
    %1052 = vmatpush1.bf16.msra.mxu0 0
    %1053 = vmatprep.subr.bf16.mxu0 0
    %1054 = vmatpush1.bf16.msra.mxu0 0
    %1055 = vmatprep.subr.bf16.mxu0 0
    %1056 = vmatpush1.bf16.msra.mxu0 0
    %1057 = vmatprep.subr.bf16.mxu0 0
    %1058 = vmatpush1.bf16.msra.mxu0 0
    %1059 = vmatprep.subr.bf16.mxu0 0
    %1060 = vmatpush1.bf16.msra.mxu0 0
    %1061 = vmatprep.subr.bf16.mxu0 0
    %1062 = vmatpush1.bf16.msra.mxu0 0
    %1063 = vmatprep.subr.bf16.mxu0 0
    %1064 = vmatpush1.bf16.msra.mxu0 0
    %1065 = vmatprep.subr.bf16.mxu0 0
    %1066 = vmatpush1.bf16.msra.mxu0 0
    %1067 = vmatprep.subr.bf16.mxu0 0
    %1068 = vmatpush1.bf16.msra.mxu0 0
    %1069 = vmatprep.mubr.bf16.mxu0 0
    %1070 = vmatmul.mubr.bf16.gmra.mrb[0].mxu0 %v584
    %v1071 = vpop.f32.mrb[0].mxu0
    %v1072 = vadd.f32 %v193, %v1071
    %v1073 = vpop.f32.mrb[0].mxu0
    %v1074 = vadd.f32 %v197, %v1073
    %v1075 = vpop.f32.mrb[0].mxu0
    %v1076 = vpop.f32.mrb[0].mxu0
    %1077 = vdwg.mxu0
    %1078 = vmatprep.subr.bf16.mxu0 %v479
    %1079 = vmatpush1.bf16.msra.mxu0 %v478
    %1080 = vmatprep.subr.bf16.mxu0 %v511
    %1081 = vmatpush1.bf16.msra.mxu0 %v510
    %1082 = vmatprep.subr.bf16.mxu0 0
    %1083 = vmatpush1.bf16.msra.mxu0 0
    %1084 = vmatprep.subr.bf16.mxu0 0
    %1085 = vmatpush1.bf16.msra.mxu0 0
    %1086 = vmatprep.subr.bf16.mxu0 0
    %1087 = vmatpush1.bf16.msra.mxu0 0
    %1088 = vmatprep.subr.bf16.mxu0 0
    %1089 = vmatpush1.bf16.msra.mxu0 0
    %1090 = vmatprep.subr.bf16.mxu0 0
    %1091 = vmatpush1.bf16.msra.mxu0 0
    %1092 = vmatprep.subr.bf16.mxu0 0
    %1093 = vmatpush1.bf16.msra.mxu0 0
    %1094 = vmatprep.subr.bf16.mxu0 0
    %1095 = vmatpush1.bf16.msra.mxu0 0
    %1096 = vmatprep.subr.bf16.mxu0 0
    %1097 = vmatpush1.bf16.msra.mxu0 0
    %1098 = vmatprep.subr.bf16.mxu0 0
    %1099 = vmatpush1.bf16.msra.mxu0 0
    %1100 = vmatprep.subr.bf16.mxu0 0
    %1101 = vmatpush1.bf16.msra.mxu0 0
    %1102 = vmatprep.subr.bf16.mxu0 0
    %1103 = vmatpush1.bf16.msra.mxu0 0
    %1104 = vmatprep.subr.bf16.mxu0 0
    %1105 = vmatpush1.bf16.msra.mxu0 0
    %1106 = vmatprep.subr.bf16.mxu0 0
    %1107 = vmatpush1.bf16.msra.mxu0 0
    %1108 = vmatprep.subr.bf16.mxu0 0
    %1109 = vmatpush1.bf16.msra.mxu0 0
    %1110 = vmatprep.mubr.bf16.mxu0 0
    %1111 = vmatmul.mubr.bf16.gmra.mrb[0].mxu0 %v584
    %v1112 = vpop.f32.mrb[0].mxu0
    %v1113 = vadd.f32 %v201, %v1112
    %v1114 = vpop.f32.mrb[0].mxu0
    %v1115 = vadd.f32 %v205, %v1114
    %v1116 = vpop.f32.mrb[0].mxu0
    %v1117 = vpop.f32.mrb[0].mxu0
    %1118 = vdwg.mxu0
    %1119 = vmatprep.subr.bf16.mxu0 %v481
    %1120 = vmatpush1.bf16.msra.mxu0 %v480
    %1121 = vmatprep.subr.bf16.mxu0 %v513
    %1122 = vmatpush1.bf16.msra.mxu0 %v512
    %1123 = vmatprep.subr.bf16.mxu0 0
    %1124 = vmatpush1.bf16.msra.mxu0 0
    %1125 = vmatprep.subr.bf16.mxu0 0
    %1126 = vmatpush1.bf16.msra.mxu0 0
    %1127 = vmatprep.subr.bf16.mxu0 0
    %1128 = vmatpush1.bf16.msra.mxu0 0
    %1129 = vmatprep.subr.bf16.mxu0 0
    %1130 = vmatpush1.bf16.msra.mxu0 0
    %1131 = vmatprep.subr.bf16.mxu0 0
    %1132 = vmatpush1.bf16.msra.mxu0 0
    %1133 = vmatprep.subr.bf16.mxu0 0
    %1134 = vmatpush1.bf16.msra.mxu0 0
    %1135 = vmatprep.subr.bf16.mxu0 0
    %1136 = vmatpush1.bf16.msra.mxu0 0
    %1137 = vmatprep.subr.bf16.mxu0 0
    %1138 = vmatpush1.bf16.msra.mxu0 0
    %1139 = vmatprep.subr.bf16.mxu0 0
    %1140 = vmatpush1.bf16.msra.mxu0 0
    %1141 = vmatprep.subr.bf16.mxu0 0
    %1142 = vmatpush1.bf16.msra.mxu0 0
    %1143 = vmatprep.subr.bf16.mxu0 0
    %1144 = vmatpush1.bf16.msra.mxu0 0
    %1145 = vmatprep.subr.bf16.mxu0 0
    %1146 = vmatpush1.bf16.msra.mxu0 0
    %1147 = vmatprep.subr.bf16.mxu0 0
    %1148 = vmatpush1.bf16.msra.mxu0 0
    %1149 = vmatprep.subr.bf16.mxu0 0
    %1150 = vmatpush1.bf16.msra.mxu0 0
    %1151 = vmatprep.mubr.bf16.mxu0 0
    %1152 = vmatmul.mubr.bf16.gmra.mrb[0].mxu0 %v584
    %v1153 = vpop.f32.mrb[0].mxu0
    %v1154 = vadd.f32 %v209, %v1153
    %v1155 = vpop.f32.mrb[0].mxu0
    %v1156 = vadd.f32 %v213, %v1155
    %v1157 = vpop.f32.mrb[0].mxu0
    %v1158 = vpop.f32.mrb[0].mxu0
    %1159 = vdwg.mxu0
    %1160 = vmatprep.subr.bf16.mxu0 %v483
    %1161 = vmatpush1.bf16.msra.mxu0 %v482
    %1162 = vmatprep.subr.bf16.mxu0 %v515
    %1163 = vmatpush1.bf16.msra.mxu0 %v514
    %1164 = vmatprep.subr.bf16.mxu0 0
    %1165 = vmatpush1.bf16.msra.mxu0 0
    %1166 = vmatprep.subr.bf16.mxu0 0
    %1167 = vmatpush1.bf16.msra.mxu0 0
    %1168 = vmatprep.subr.bf16.mxu0 0
    %1169 = vmatpush1.bf16.msra.mxu0 0
    %1170 = vmatprep.subr.bf16.mxu0 0
    %1171 = vmatpush1.bf16.msra.mxu0 0
    %1172 = vmatprep.subr.bf16.mxu0 0
    %1173 = vmatpush1.bf16.msra.mxu0 0
    %1174 = vmatprep.subr.bf16.mxu0 0
    %1175 = vmatpush1.bf16.msra.mxu0 0
    %1176 = vmatprep.subr.bf16.mxu0 0
    %1177 = vmatpush1.bf16.msra.mxu0 0
    %1178 = vmatprep.subr.bf16.mxu0 0
    %1179 = vmatpush1.bf16.msra.mxu0 0
    %1180 = vmatprep.subr.bf16.mxu0 0
    %1181 = vmatpush1.bf16.msra.mxu0 0
    %1182 = vmatprep.subr.bf16.mxu0 0
    %1183 = vmatpush1.bf16.msra.mxu0 0
    %1184 = vmatprep.subr.bf16.mxu0 0
    %1185 = vmatpush1.bf16.msra.mxu0 0
    %1186 = vmatprep.subr.bf16.mxu0 0
    %1187 = vmatpush1.bf16.msra.mxu0 0
    %1188 = vmatprep.subr.bf16.mxu0 0
    %1189 = vmatpush1.bf16.msra.mxu0 0
    %1190 = vmatprep.subr.bf16.mxu0 0
    %1191 = vmatpush1.bf16.msra.mxu0 0
    %1192 = vmatprep.mubr.bf16.mxu0 0
    %1193 = vmatmul.mubr.bf16.gmra.mrb[0].mxu0 %v584
    %v1194 = vpop.f32.mrb[0].mxu0
    %v1195 = vadd.f32 %v217, %v1194
    %v1196 = vpop.f32.mrb[0].mxu0
    %v1197 = vadd.f32 %v221, %v1196
    %v1198 = vpop.f32.mrb[0].mxu0
    %v1199 = vpop.f32.mrb[0].mxu0
    %1200 = vdwg.mxu0
    %1201 = vmatprep.subr.bf16.mxu0 %v485
    %1202 = vmatpush1.bf16.msra.mxu0 %v484
    %1203 = vmatprep.subr.bf16.mxu0 %v517
    %1204 = vmatpush1.bf16.msra.mxu0 %v516
    %1205 = vmatprep.subr.bf16.mxu0 0
    %1206 = vmatpush1.bf16.msra.mxu0 0
    %1207 = vmatprep.subr.bf16.mxu0 0
    %1208 = vmatpush1.bf16.msra.mxu0 0
    %1209 = vmatprep.subr.bf16.mxu0 0
    %1210 = vmatpush1.bf16.msra.mxu0 0
    %1211 = vmatprep.subr.bf16.mxu0 0
    %1212 = vmatpush1.bf16.msra.mxu0 0
    %1213 = vmatprep.subr.bf16.mxu0 0
    %1214 = vmatpush1.bf16.msra.mxu0 0
    %1215 = vmatprep.subr.bf16.mxu0 0
    %1216 = vmatpush1.bf16.msra.mxu0 0
    %1217 = vmatprep.subr.bf16.mxu0 0
    %1218 = vmatpush1.bf16.msra.mxu0 0
    %1219 = vmatprep.subr.bf16.mxu0 0
    %1220 = vmatpush1.bf16.msra.mxu0 0
    %1221 = vmatprep.subr.bf16.mxu0 0
    %1222 = vmatpush1.bf16.msra.mxu0 0
    %1223 = vmatprep.subr.bf16.mxu0 0
    %1224 = vmatpush1.bf16.msra.mxu0 0
    %1225 = vmatprep.subr.bf16.mxu0 0
    %1226 = vmatpush1.bf16.msra.mxu0 0
    %1227 = vmatprep.subr.bf16.mxu0 0
    %1228 = vmatpush1.bf16.msra.mxu0 0
    %1229 = vmatprep.subr.bf16.mxu0 0
    %1230 = vmatpush1.bf16.msra.mxu0 0
    %1231 = vmatprep.subr.bf16.mxu0 0
    %1232 = vmatpush1.bf16.msra.mxu0 0
    %1233 = vmatprep.mubr.bf16.mxu0 0
    %1234 = vmatmul.mubr.bf16.gmra.mrb[0].mxu0 %v584
    %v1235 = vpop.f32.mrb[0].mxu0
    %v1236 = vadd.f32 %v225, %v1235
    %v1237 = vpop.f32.mrb[0].mxu0
    %v1238 = vadd.f32 %v229, %v1237
    %v1239 = vpop.f32.mrb[0].mxu0
    %v1240 = vpop.f32.mrb[0].mxu0
    %1241 = vdwg.mxu0
    %v1242 = vmax.f32 %v621, 0.0
    %v1243 = vmax.f32 %v623, 0.0
    %v1244 = vmax.f32 %v662, 0.0
    %v1245 = vmax.f32 %v664, 0.0
    %v1246 = vmax.f32 %v703, 0.0
    %v1247 = vmax.f32 %v705, 0.0
    %v1248 = vmax.f32 %v744, 0.0
    %v1249 = vmax.f32 %v746, 0.0
    %v1250 = vmax.f32 %v785, 0.0
    %v1251 = vmax.f32 %v787, 0.0
    %v1252 = vmax.f32 %v826, 0.0
    %v1253 = vmax.f32 %v828, 0.0
    %v1254 = vmax.f32 %v867, 0.0
    %v1255 = vmax.f32 %v869, 0.0
    %v1256 = vmax.f32 %v908, 0.0
    %v1257 = vmax.f32 %v910, 0.0
    %v1258 = vmax.f32 %v949, 0.0
    %v1259 = vmax.f32 %v951, 0.0
    %v1260 = vmax.f32 %v990, 0.0
    %v1261 = vmax.f32 %v992, 0.0
    %v1262 = vmax.f32 %v1031, 0.0
    %v1263 = vmax.f32 %v1033, 0.0
    %v1264 = vmax.f32 %v1072, 0.0
    %v1265 = vmax.f32 %v1074, 0.0
    %v1266 = vmax.f32 %v1113, 0.0
    %v1267 = vmax.f32 %v1115, 0.0
    %v1268 = vmax.f32 %v1154, 0.0
    %v1269 = vmax.f32 %v1156, 0.0
    %v1270 = vmax.f32 %v1195, 0.0
    %v1271 = vmax.f32 %v1197, 0.0
    %v1272 = vmax.f32 %v1236, 0.0
    %v1273 = vmax.f32 %v1238, 0.0
    %v1274 = vpack.c.bf16 %v1242, %v1242
    %v1275 = vpack.c.bf16 %v1243, %v1243
    %v1276 = vpack.c.bf16 %v1244, %v1244
    %v1277 = vpack.c.bf16 %v1245, %v1245
    %v1278 = vpack.c.bf16 %v1246, %v1246
    %v1279 = vpack.c.bf16 %v1247, %v1247
    %v1280 = vpack.c.bf16 %v1248, %v1248
    %v1281 = vpack.c.bf16 %v1249, %v1249
    %v1282 = vpack.c.bf16 %v1250, %v1250
    %v1283 = vpack.c.bf16 %v1251, %v1251
    %v1284 = vpack.c.bf16 %v1252, %v1252
    %v1285 = vpack.c.bf16 %v1253, %v1253
    %v1286 = vpack.c.bf16 %v1254, %v1254
    %v1287 = vpack.c.bf16 %v1255, %v1255
    %v1288 = vpack.c.bf16 %v1256, %v1256
    %v1289 = vpack.c.bf16 %v1257, %v1257
    %v1290 = vpack.c.bf16 %v1258, %v1258
    %v1291 = vpack.c.bf16 %v1259, %v1259
    %v1292 = vpack.c.bf16 %v1260, %v1260
    %v1293 = vpack.c.bf16 %v1261, %v1261
    %v1294 = vpack.c.bf16 %v1262, %v1262
    %v1295 = vpack.c.bf16 %v1263, %v1263
    %v1296 = vpack.c.bf16 %v1264, %v1264
    %v1297 = vpack.c.bf16 %v1265, %v1265
    %v1298 = vpack.c.bf16 %v1266, %v1266
    %v1299 = vpack.c.bf16 %v1267, %v1267
    %v1300 = vpack.c.bf16 %v1268, %v1268
    %v1301 = vpack.c.bf16 %v1269, %v1269
    %v1302 = vpack.c.bf16 %v1270, %v1270
    %v1303 = vpack.c.bf16 %v1271, %v1271
    %v1304 = vpack.c.bf16 %v1272, %v1272
    %v1305 = vpack.c.bf16 %v1273, %v1273
    %v1306 = vld [vmem:[%s3] sm:$0xff]
    %v1307 = vld [vmem:[%s3 + $0x8] sm:$0xff]
    %v1308 = vld [vmem:[%s3 + $0x10] sm:$0xff]
    %v1309 = vld [vmem:[%s3 + $0x18] sm:$0xff]
    %v1310 = vld [vmem:[%s3 + $0x20] sm:$0xff]
    %v1311 = vld [vmem:[%s3 + $0x28] sm:$0xff]
    %v1312 = vld [vmem:[%s3 + $0x30] sm:$0xff]
    %v1313 = vld [vmem:[%s3 + $0x38] sm:$0xff]
    %v1314 = vld [vmem:[%s3 + $0x40] sm:$0xff]
    %v1315 = vld [vmem:[%s3 + $0x48] sm:$0xff]
    %v1316 = vld [vmem:[%s3 + $0x50] sm:$0xff]
    %v1317 = vld [vmem:[%s3 + $0x58] sm:$0xff]
    %v1318 = vld [vmem:[%s3 + $0x60] sm:$0xff]
    %v1319 = vld [vmem:[%s3 + $0x68] sm:$0xff]
    %v1320 = vld [vmem:[%s3 + $0x70] sm:$0xff]
    %v1321 = vld [vmem:[%s3 + $0x78] sm:$0xff]
    %v1322 = vld [vmem:[%s3 + $0x80] sm:$0xff]
    %v1323 = vld [vmem:[%s3 + $0x88] sm:$0xff]
    %v1324 = vld [vmem:[%s3 + $0x90] sm:$0xff]
    %v1325 = vld [vmem:[%s3 + $0x98] sm:$0xff]
    %v1326 = vld [vmem:[%s3 + $0xa0] sm:$0xff]
    %v1327 = vld [vmem:[%s3 + $0xa8] sm:$0xff]
    %v1328 = vld [vmem:[%s3 + $0xb0] sm:$0xff]
    %v1329 = vld [vmem:[%s3 + $0xb8] sm:$0xff]
    %v1330 = vld [vmem:[%s3 + $0xc0] sm:$0xff]
    %v1331 = vld [vmem:[%s3 + $0xc8] sm:$0xff]
    %v1332 = vld [vmem:[%s3 + $0xd0] sm:$0xff]
    %v1333 = vld [vmem:[%s3 + $0xd8] sm:$0xff]
    %v1334 = vld [vmem:[%s3 + $0xe0] sm:$0xff]
    %v1335 = vld [vmem:[%s3 + $0xe8] sm:$0xff]
    %v1336 = vld [vmem:[%s3 + $0xf0] sm:$0xff]
    %v1337 = vld [vmem:[%s3 + $0xf8] sm:$0xff]
    %v1338 = vld [vmem:[%s3 + $0x100] sm:$0xff]
    %v1339 = vld [vmem:[%s3 + $0x108] sm:$0xff]
    %v1340 = vld [vmem:[%s3 + $0x110] sm:$0xff]
    %v1341 = vld [vmem:[%s3 + $0x118] sm:$0xff]
    %v1342 = vld [vmem:[%s3 + $0x120] sm:$0xff]
    %v1343 = vld [vmem:[%s3 + $0x128] sm:$0xff]
    %v1344 = vld [vmem:[%s3 + $0x130] sm:$0xff]
    %v1345 = vld [vmem:[%s3 + $0x138] sm:$0xff]
    %v1346 = vld [vmem:[%s3 + $0x140] sm:$0xff]
    %v1347 = vld [vmem:[%s3 + $0x148] sm:$0xff]
    %v1348 = vld [vmem:[%s3 + $0x150] sm:$0xff]
    %v1349 = vld [vmem:[%s3 + $0x158] sm:$0xff]
    %v1350 = vld [vmem:[%s3 + $0x160] sm:$0xff]
    %v1351 = vld [vmem:[%s3 + $0x168] sm:$0xff]
    %v1352 = vld [vmem:[%s3 + $0x170] sm:$0xff]
    %v1353 = vld [vmem:[%s3 + $0x178] sm:$0xff]
    %v1354 = vld [vmem:[%s3 + $0x180] sm:$0xff]
    %v1355 = vld [vmem:[%s3 + $0x188] sm:$0xff]
    %v1356 = vld [vmem:[%s3 + $0x190] sm:$0xff]
    %v1357 = vld [vmem:[%s3 + $0x198] sm:$0xff]
    %v1358 = vld [vmem:[%s3 + $0x1a0] sm:$0xff]
    %v1359 = vld [vmem:[%s3 + $0x1a8] sm:$0xff]
    %v1360 = vld [vmem:[%s3 + $0x1b0] sm:$0xff]
    %v1361 = vld [vmem:[%s3 + $0x1b8] sm:$0xff]
    %v1362 = vld [vmem:[%s3 + $0x1c0] sm:$0xff]
    %v1363 = vld [vmem:[%s3 + $0x1c8] sm:$0xff]
    %v1364 = vld [vmem:[%s3 + $0x1d0] sm:$0xff]
    %v1365 = vld [vmem:[%s3 + $0x1d8] sm:$0xff]
    %v1366 = vld [vmem:[%s3 + $0x1e0] sm:$0xff]
    %v1367 = vld [vmem:[%s3 + $0x1e8] sm:$0xff]
    %v1368 = vld [vmem:[%s3 + $0x1f0] sm:$0xff]
    %v1369 = vld [vmem:[%s3 + $0x1f8] sm:$0xff]
    %v1370 = vld [vmem:[%s3 + $0x200] sm:$0xff]
    %v1371 = vld [vmem:[%s3 + $0x208] sm:$0xff]
    %v1372 = vld [vmem:[%s3 + $0x210] sm:$0xff]
    %v1373 = vld [vmem:[%s3 + $0x218] sm:$0xff]
    %v1374 = vld [vmem:[%s3 + $0x220] sm:$0xff]
    %v1375 = vld [vmem:[%s3 + $0x228] sm:$0xff]
    %v1376 = vld [vmem:[%s3 + $0x230] sm:$0xff]
    %v1377 = vld [vmem:[%s3 + $0x238] sm:$0xff]
    %v1378 = vld [vmem:[%s3 + $0x240] sm:$0xff]
    %v1379 = vld [vmem:[%s3 + $0x248] sm:$0xff]
    %v1380 = vld [vmem:[%s3 + $0x250] sm:$0xff]
    %v1381 = vld [vmem:[%s3 + $0x258] sm:$0xff]
    %v1382 = vld [vmem:[%s3 + $0x260] sm:$0xff]
    %v1383 = vld [vmem:[%s3 + $0x268] sm:$0xff]
    %v1384 = vld [vmem:[%s3 + $0x270] sm:$0xff]
    %v1385 = vld [vmem:[%s3 + $0x278] sm:$0xff]
    %v1386 = vld [vmem:[%s3 + $0x280] sm:$0xff]
    %v1387 = vld [vmem:[%s3 + $0x288] sm:$0xff]
    %v1388 = vld [vmem:[%s3 + $0x290] sm:$0xff]
    %v1389 = vld [vmem:[%s3 + $0x298] sm:$0xff]
    %v1390 = vld [vmem:[%s3 + $0x2a0] sm:$0xff]
    %v1391 = vld [vmem:[%s3 + $0x2a8] sm:$0xff]
    %v1392 = vld [vmem:[%s3 + $0x2b0] sm:$0xff]
    %v1393 = vld [vmem:[%s3 + $0x2b8] sm:$0xff]
    %v1394 = vld [vmem:[%s3 + $0x2c0] sm:$0xff]
    %v1395 = vld [vmem:[%s3 + $0x2c8] sm:$0xff]
    %v1396 = vld [vmem:[%s3 + $0x2d0] sm:$0xff]
    %v1397 = vld [vmem:[%s3 + $0x2d8] sm:$0xff]
    %v1398 = vld [vmem:[%s3 + $0x2e0] sm:$0xff]
    %v1399 = vld [vmem:[%s3 + $0x2e8] sm:$0xff]
    %v1400 = vld [vmem:[%s3 + $0x2f0] sm:$0xff]
    %v1401 = vld [vmem:[%s3 + $0x2f8] sm:$0xff]
    %v1402 = vld [vmem:[%s3 + $0x300] sm:$0xff]
    %v1403 = vld [vmem:[%s3 + $0x308] sm:$0xff]
    %v1404 = vld [vmem:[%s3 + $0x310] sm:$0xff]
    %v1405 = vld [vmem:[%s3 + $0x318] sm:$0xff]
    %v1406 = vld [vmem:[%s3 + $0x320] sm:$0xff]
    %v1407 = vld [vmem:[%s3 + $0x328] sm:$0xff]
    %v1408 = vld [vmem:[%s3 + $0x330] sm:$0xff]
    %v1409 = vld [vmem:[%s3 + $0x338] sm:$0xff]
    %v1410 = vld [vmem:[%s3 + $0x340] sm:$0xff]
    %v1411 = vld [vmem:[%s3 + $0x348] sm:$0xff]
    %v1412 = vld [vmem:[%s3 + $0x350] sm:$0xff]
    %v1413 = vld [vmem:[%s3 + $0x358] sm:$0xff]
    %v1414 = vld [vmem:[%s3 + $0x360] sm:$0xff]
    %v1415 = vld [vmem:[%s3 + $0x368] sm:$0xff]
    %v1416 = vld [vmem:[%s3 + $0x370] sm:$0xff]
    %v1417 = vld [vmem:[%s3 + $0x378] sm:$0xff]
    %v1418 = vld [vmem:[%s3 + $0x380] sm:$0xff]
    %v1419 = vld [vmem:[%s3 + $0x388] sm:$0xff]
    %v1420 = vld [vmem:[%s3 + $0x390] sm:$0xff]
    %v1421 = vld [vmem:[%s3 + $0x398] sm:$0xff]
    %v1422 = vld [vmem:[%s3 + $0x3a0] sm:$0xff]
    %v1423 = vld [vmem:[%s3 + $0x3a8] sm:$0xff]
    %v1424 = vld [vmem:[%s3 + $0x3b0] sm:$0xff]
    %v1425 = vld [vmem:[%s3 + $0x3b8] sm:$0xff]
    %v1426 = vld [vmem:[%s3 + $0x3c0] sm:$0xff]
    %v1427 = vld [vmem:[%s3 + $0x3c8] sm:$0xff]
    %v1428 = vld [vmem:[%s3 + $0x3d0] sm:$0xff]
    %v1429 = vld [vmem:[%s3 + $0x3d8] sm:$0xff]
    %v1430 = vld [vmem:[%s3 + $0x3e0] sm:$0xff]
    %v1431 = vld [vmem:[%s3 + $0x3e8] sm:$0xff]
    %v1432 = vld [vmem:[%s3 + $0x3f0] sm:$0xff]
    %v1433 = vld [vmem:[%s3 + $0x3f8] sm:$0xff]
    %v1434 = vld [vmem:[%s3 + $0x400] sm:$0xff]
    %v1435 = vld [vmem:[%s3 + $0x408] sm:$0xff]
    %v1436 = vld [vmem:[%s3 + $0x410] sm:$0xff]
    %v1437 = vld [vmem:[%s3 + $0x418] sm:$0xff]
    %v1438 = vld [vmem:[%s3 + $0x420] sm:$0xff]
    %v1439 = vld [vmem:[%s3 + $0x428] sm:$0xff]
    %v1440 = vld [vmem:[%s3 + $0x430] sm:$0xff]
    %v1441 = vld [vmem:[%s3 + $0x438] sm:$0xff]
    %v1442 = vld [vmem:[%s3 + $0x440] sm:$0xff]
    %v1443 = vld [vmem:[%s3 + $0x448] sm:$0xff]
    %v1444 = vld [vmem:[%s3 + $0x450] sm:$0xff]
    %v1445 = vld [vmem:[%s3 + $0x458] sm:$0xff]
    %v1446 = vld [vmem:[%s3 + $0x460] sm:$0xff]
    %v1447 = vld [vmem:[%s3 + $0x468] sm:$0xff]
    %v1448 = vld [vmem:[%s3 + $0x470] sm:$0xff]
    %v1449 = vld [vmem:[%s3 + $0x478] sm:$0xff]
    %v1450 = vld [vmem:[%s3 + $0x480] sm:$0xff]
    %v1451 = vld [vmem:[%s3 + $0x488] sm:$0xff]
    %v1452 = vld [vmem:[%s3 + $0x490] sm:$0xff]
    %v1453 = vld [vmem:[%s3 + $0x498] sm:$0xff]
    %v1454 = vld [vmem:[%s3 + $0x4a0] sm:$0xff]
    %v1455 = vld [vmem:[%s3 + $0x4a8] sm:$0xff]
    %v1456 = vld [vmem:[%s3 + $0x4b0] sm:$0xff]
    %v1457 = vld [vmem:[%s3 + $0x4b8] sm:$0xff]
    %v1458 = vld [vmem:[%s3 + $0x4c0] sm:$0xff]
    %v1459 = vld [vmem:[%s3 + $0x4c8] sm:$0xff]
    %v1460 = vld [vmem:[%s3 + $0x4d0] sm:$0xff]
    %v1461 = vld [vmem:[%s3 + $0x4d8] sm:$0xff]
    %v1462 = vld [vmem:[%s3 + $0x4e0] sm:$0xff]
    %v1463 = vld [vmem:[%s3 + $0x4e8] sm:$0xff]
    %v1464 = vld [vmem:[%s3 + $0x4f0] sm:$0xff]
    %v1465 = vld [vmem:[%s3 + $0x4f8] sm:$0xff]
    %v1466 = vld [vmem:[%s3 + $0x500] sm:$0xff]
    %v1467 = vld [vmem:[%s3 + $0x508] sm:$0xff]
    %v1468 = vld [vmem:[%s3 + $0x510] sm:$0xff]
    %v1469 = vld [vmem:[%s3 + $0x518] sm:$0xff]
    %v1470 = vld [vmem:[%s3 + $0x520] sm:$0xff]
    %v1471 = vld [vmem:[%s3 + $0x528] sm:$0xff]
    %v1472 = vld [vmem:[%s3 + $0x530] sm:$0xff]
    %v1473 = vld [vmem:[%s3 + $0x538] sm:$0xff]
    %v1474 = vld [vmem:[%s3 + $0x540] sm:$0xff]
    %v1475 = vld [vmem:[%s3 + $0x548] sm:$0xff]
    %v1476 = vld [vmem:[%s3 + $0x550] sm:$0xff]
    %v1477 = vld [vmem:[%s3 + $0x558] sm:$0xff]
    %v1478 = vld [vmem:[%s3 + $0x560] sm:$0xff]
    %v1479 = vld [vmem:[%s3 + $0x568] sm:$0xff]
    %v1480 = vld [vmem:[%s3 + $0x570] sm:$0xff]
    %v1481 = vld [vmem:[%s3 + $0x578] sm:$0xff]
    %v1482 = vld [vmem:[%s3 + $0x580] sm:$0xff]
    %v1483 = vld [vmem:[%s3 + $0x588] sm:$0xff]
    %v1484 = vld [vmem:[%s3 + $0x590] sm:$0xff]
    %v1485 = vld [vmem:[%s3 + $0x598] sm:$0xff]
    %v1486 = vld [vmem:[%s3 + $0x5a0] sm:$0xff]
    %v1487 = vld [vmem:[%s3 + $0x5a8] sm:$0xff]
    %v1488 = vld [vmem:[%s3 + $0x5b0] sm:$0xff]
    %v1489 = vld [vmem:[%s3 + $0x5b8] sm:$0xff]
    %v1490 = vld [vmem:[%s3 + $0x5c0] sm:$0xff]
    %v1491 = vld [vmem:[%s3 + $0x5c8] sm:$0xff]
    %v1492 = vld [vmem:[%s3 + $0x5d0] sm:$0xff]
    %v1493 = vld [vmem:[%s3 + $0x5d8] sm:$0xff]
    %v1494 = vld [vmem:[%s3 + $0x5e0] sm:$0xff]
    %v1495 = vld [vmem:[%s3 + $0x5e8] sm:$0xff]
    %v1496 = vld [vmem:[%s3 + $0x5f0] sm:$0xff]
    %v1497 = vld [vmem:[%s3 + $0x5f8] sm:$0xff]
    %v1498 = vld [vmem:[%s3 + $0x600] sm:$0xff]
    %v1499 = vld [vmem:[%s3 + $0x608] sm:$0xff]
    %v1500 = vld [vmem:[%s3 + $0x610] sm:$0xff]
    %v1501 = vld [vmem:[%s3 + $0x618] sm:$0xff]
    %v1502 = vld [vmem:[%s3 + $0x620] sm:$0xff]
    %v1503 = vld [vmem:[%s3 + $0x628] sm:$0xff]
    %v1504 = vld [vmem:[%s3 + $0x630] sm:$0xff]
    %v1505 = vld [vmem:[%s3 + $0x638] sm:$0xff]
    %v1506 = vld [vmem:[%s3 + $0x640] sm:$0xff]
    %v1507 = vld [vmem:[%s3 + $0x648] sm:$0xff]
    %v1508 = vld [vmem:[%s3 + $0x650] sm:$0xff]
    %v1509 = vld [vmem:[%s3 + $0x658] sm:$0xff]
    %v1510 = vld [vmem:[%s3 + $0x660] sm:$0xff]
    %v1511 = vld [vmem:[%s3 + $0x668] sm:$0xff]
    %v1512 = vld [vmem:[%s3 + $0x670] sm:$0xff]
    %v1513 = vld [vmem:[%s3 + $0x678] sm:$0xff]
    %v1514 = vld [vmem:[%s3 + $0x680] sm:$0xff]
    %v1515 = vld [vmem:[%s3 + $0x688] sm:$0xff]
    %v1516 = vld [vmem:[%s3 + $0x690] sm:$0xff]
    %v1517 = vld [vmem:[%s3 + $0x698] sm:$0xff]
    %v1518 = vld [vmem:[%s3 + $0x6a0] sm:$0xff]
    %v1519 = vld [vmem:[%s3 + $0x6a8] sm:$0xff]
    %v1520 = vld [vmem:[%s3 + $0x6b0] sm:$0xff]
    %v1521 = vld [vmem:[%s3 + $0x6b8] sm:$0xff]
    %v1522 = vld [vmem:[%s3 + $0x6c0] sm:$0xff]
    %v1523 = vld [vmem:[%s3 + $0x6c8] sm:$0xff]
    %v1524 = vld [vmem:[%s3 + $0x6d0] sm:$0xff]
    %v1525 = vld [vmem:[%s3 + $0x6d8] sm:$0xff]
    %v1526 = vld [vmem:[%s3 + $0x6e0] sm:$0xff]
    %v1527 = vld [vmem:[%s3 + $0x6e8] sm:$0xff]
    %v1528 = vld [vmem:[%s3 + $0x6f0] sm:$0xff]
    %v1529 = vld [vmem:[%s3 + $0x6f8] sm:$0xff]
    %v1530 = vld [vmem:[%s3 + $0x700] sm:$0xff]
    %v1531 = vld [vmem:[%s3 + $0x708] sm:$0xff]
    %v1532 = vld [vmem:[%s3 + $0x710] sm:$0xff]
    %v1533 = vld [vmem:[%s3 + $0x718] sm:$0xff]
    %v1534 = vld [vmem:[%s3 + $0x720] sm:$0xff]
    %v1535 = vld [vmem:[%s3 + $0x728] sm:$0xff]
    %v1536 = vld [vmem:[%s3 + $0x730] sm:$0xff]
    %v1537 = vld [vmem:[%s3 + $0x738] sm:$0xff]
    %v1538 = vld [vmem:[%s3 + $0x740] sm:$0xff]
    %v1539 = vld [vmem:[%s3 + $0x748] sm:$0xff]
    %v1540 = vld [vmem:[%s3 + $0x750] sm:$0xff]
    %v1541 = vld [vmem:[%s3 + $0x758] sm:$0xff]
    %v1542 = vld [vmem:[%s3 + $0x760] sm:$0xff]
    %v1543 = vld [vmem:[%s3 + $0x768] sm:$0xff]
    %v1544 = vld [vmem:[%s3 + $0x770] sm:$0xff]
    %v1545 = vld [vmem:[%s3 + $0x778] sm:$0xff]
    %v1546 = vld [vmem:[%s3 + $0x780] sm:$0xff]
    %v1547 = vld [vmem:[%s3 + $0x788] sm:$0xff]
    %v1548 = vld [vmem:[%s3 + $0x790] sm:$0xff]
    %v1549 = vld [vmem:[%s3 + $0x798] sm:$0xff]
    %v1550 = vld [vmem:[%s3 + $0x7a0] sm:$0xff]
    %v1551 = vld [vmem:[%s3 + $0x7a8] sm:$0xff]
    %v1552 = vld [vmem:[%s3 + $0x7b0] sm:$0xff]
    %v1553 = vld [vmem:[%s3 + $0x7b8] sm:$0xff]
    %v1554 = vld [vmem:[%s3 + $0x7c0] sm:$0xff]
    %v1555 = vld [vmem:[%s3 + $0x7c8] sm:$0xff]
    %v1556 = vld [vmem:[%s3 + $0x7d0] sm:$0xff]
    %v1557 = vld [vmem:[%s3 + $0x7d8] sm:$0xff]
    %v1558 = vld [vmem:[%s3 + $0x7e0] sm:$0xff]
    %v1559 = vld [vmem:[%s3 + $0x7e8] sm:$0xff]
    %v1560 = vld [vmem:[%s3 + $0x7f0] sm:$0xff]
    %v1561 = vld [vmem:[%s3 + $0x7f8] sm:$0xff]
    %v1562 = vld [vmem:[%s3 + $0x800] sm:$0xff]
    %v1563 = vld [vmem:[%s3 + $0x808] sm:$0xff]
    %v1564 = vld [vmem:[%s3 + $0x810] sm:$0xff]
    %v1565 = vld [vmem:[%s3 + $0x818] sm:$0xff]
    %v1566 = vld [vmem:[%s3 + $0x820] sm:$0xff]
    %v1567 = vld [vmem:[%s3 + $0x828] sm:$0xff]
    %v1568 = vld [vmem:[%s3 + $0x830] sm:$0xff]
    %v1569 = vld [vmem:[%s3 + $0x838] sm:$0xff]
    %v1570 = vld [vmem:[%s3 + $0x840] sm:$0xff]
    %v1571 = vld [vmem:[%s3 + $0x848] sm:$0xff]
    %v1572 = vld [vmem:[%s3 + $0x850] sm:$0xff]
    %v1573 = vld [vmem:[%s3 + $0x858] sm:$0xff]
    %v1574 = vld [vmem:[%s3 + $0x860] sm:$0xff]
    %v1575 = vld [vmem:[%s3 + $0x868] sm:$0xff]
    %v1576 = vld [vmem:[%s3 + $0x870] sm:$0xff]
    %v1577 = vld [vmem:[%s3 + $0x878] sm:$0xff]
    %v1578 = vld [vmem:[%s3 + $0x880] sm:$0xff]
    %v1579 = vld [vmem:[%s3 + $0x888] sm:$0xff]
    %v1580 = vld [vmem:[%s3 + $0x890] sm:$0xff]
    %v1581 = vld [vmem:[%s3 + $0x898] sm:$0xff]
    %v1582 = vld [vmem:[%s3 + $0x8a0] sm:$0xff]
    %v1583 = vld [vmem:[%s3 + $0x8a8] sm:$0xff]
    %v1584 = vld [vmem:[%s3 + $0x8b0] sm:$0xff]
    %v1585 = vld [vmem:[%s3 + $0x8b8] sm:$0xff]
    %v1586 = vld [vmem:[%s3 + $0x8c0] sm:$0xff]
    %v1587 = vld [vmem:[%s3 + $0x8c8] sm:$0xff]
    %v1588 = vld [vmem:[%s3 + $0x8d0] sm:$0xff]
    %v1589 = vld [vmem:[%s3 + $0x8d8] sm:$0xff]
    %v1590 = vld [vmem:[%s3 + $0x8e0] sm:$0xff]
    %v1591 = vld [vmem:[%s3 + $0x8e8] sm:$0xff]
    %v1592 = vld [vmem:[%s3 + $0x8f0] sm:$0xff]
    %v1593 = vld [vmem:[%s3 + $0x8f8] sm:$0xff]
    %v1594 = vld [vmem:[%s3 + $0x900] sm:$0xff]
    %v1595 = vld [vmem:[%s3 + $0x908] sm:$0xff]
    %v1596 = vld [vmem:[%s3 + $0x910] sm:$0xff]
    %v1597 = vld [vmem:[%s3 + $0x918] sm:$0xff]
    %v1598 = vld [vmem:[%s3 + $0x920] sm:$0xff]
    %v1599 = vld [vmem:[%s3 + $0x928] sm:$0xff]
    %v1600 = vld [vmem:[%s3 + $0x930] sm:$0xff]
    %v1601 = vld [vmem:[%s3 + $0x938] sm:$0xff]
    %v1602 = vld [vmem:[%s3 + $0x940] sm:$0xff]
    %v1603 = vld [vmem:[%s3 + $0x948] sm:$0xff]
    %v1604 = vld [vmem:[%s3 + $0x950] sm:$0xff]
    %v1605 = vld [vmem:[%s3 + $0x958] sm:$0xff]
    %v1606 = vld [vmem:[%s3 + $0x960] sm:$0xff]
    %v1607 = vld [vmem:[%s3 + $0x968] sm:$0xff]
    %v1608 = vld [vmem:[%s3 + $0x970] sm:$0xff]
    %v1609 = vld [vmem:[%s3 + $0x978] sm:$0xff]
    %v1610 = vld [vmem:[%s3 + $0x980] sm:$0xff]
    %v1611 = vld [vmem:[%s3 + $0x988] sm:$0xff]
    %v1612 = vld [vmem:[%s3 + $0x990] sm:$0xff]
    %v1613 = vld [vmem:[%s3 + $0x998] sm:$0xff]
    %v1614 = vld [vmem:[%s3 + $0x9a0] sm:$0xff]
    %v1615 = vld [vmem:[%s3 + $0x9a8] sm:$0xff]
    %v1616 = vld [vmem:[%s3 + $0x9b0] sm:$0xff]
    %v1617 = vld [vmem:[%s3 + $0x9b8] sm:$0xff]
    %v1618 = vld [vmem:[%s3 + $0x9c0] sm:$0xff]
    %v1619 = vld [vmem:[%s3 + $0x9c8] sm:$0xff]
    %v1620 = vld [vmem:[%s3 + $0x9d0] sm:$0xff]
    %v1621 = vld [vmem:[%s3 + $0x9d8] sm:$0xff]
    %v1622 = vld [vmem:[%s3 + $0x9e0] sm:$0xff]
    %v1623 = vld [vmem:[%s3 + $0x9e8] sm:$0xff]
    %v1624 = vld [vmem:[%s3 + $0x9f0] sm:$0xff]
    %v1625 = vld [vmem:[%s3 + $0x9f8] sm:$0xff]
    %v1626 = vld [vmem:[%s3 + $0xa00] sm:$0xff]
    %v1627 = vld [vmem:[%s3 + $0xa08] sm:$0xff]
    %v1628 = vld [vmem:[%s3 + $0xa10] sm:$0xff]
    %v1629 = vld [vmem:[%s3 + $0xa18] sm:$0xff]
    %v1630 = vld [vmem:[%s3 + $0xa20] sm:$0xff]
    %v1631 = vld [vmem:[%s3 + $0xa28] sm:$0xff]
    %v1632 = vld [vmem:[%s3 + $0xa30] sm:$0xff]
    %v1633 = vld [vmem:[%s3 + $0xa38] sm:$0xff]
    %v1634 = vld [vmem:[%s3 + $0xa40] sm:$0xff]
    %v1635 = vld [vmem:[%s3 + $0xa48] sm:$0xff]
    %v1636 = vld [vmem:[%s3 + $0xa50] sm:$0xff]
    %v1637 = vld [vmem:[%s3 + $0xa58] sm:$0xff]
    %v1638 = vld [vmem:[%s3 + $0xa60] sm:$0xff]
    %v1639 = vld [vmem:[%s3 + $0xa68] sm:$0xff]
    %v1640 = vld [vmem:[%s3 + $0xa70] sm:$0xff]
    %v1641 = vld [vmem:[%s3 + $0xa78] sm:$0xff]
    %v1642 = vld [vmem:[%s3 + $0xa80] sm:$0xff]
    %v1643 = vld [vmem:[%s3 + $0xa88] sm:$0xff]
    %v1644 = vld [vmem:[%s3 + $0xa90] sm:$0xff]
    %v1645 = vld [vmem:[%s3 + $0xa98] sm:$0xff]
    %v1646 = vld [vmem:[%s3 + $0xaa0] sm:$0xff]
    %v1647 = vld [vmem:[%s3 + $0xaa8] sm:$0xff]
    %v1648 = vld [vmem:[%s3 + $0xab0] sm:$0xff]
    %v1649 = vld [vmem:[%s3 + $0xab8] sm:$0xff]
    %v1650 = vld [vmem:[%s3 + $0xac0] sm:$0xff]
    %v1651 = vld [vmem:[%s3 + $0xac8] sm:$0xff]
    %v1652 = vld [vmem:[%s3 + $0xad0] sm:$0xff]
    %v1653 = vld [vmem:[%s3 + $0xad8] sm:$0xff]
    %v1654 = vld [vmem:[%s3 + $0xae0] sm:$0xff]
    %v1655 = vld [vmem:[%s3 + $0xae8] sm:$0xff]
    %v1656 = vld [vmem:[%s3 + $0xaf0] sm:$0xff]
    %v1657 = vld [vmem:[%s3 + $0xaf8] sm:$0xff]
    %v1658 = vld [vmem:[%s3 + $0xb00] sm:$0xff]
    %v1659 = vld [vmem:[%s3 + $0xb08] sm:$0xff]
    %v1660 = vld [vmem:[%s3 + $0xb10] sm:$0xff]
    %v1661 = vld [vmem:[%s3 + $0xb18] sm:$0xff]
    %v1662 = vld [vmem:[%s3 + $0xb20] sm:$0xff]
    %v1663 = vld [vmem:[%s3 + $0xb28] sm:$0xff]
    %v1664 = vld [vmem:[%s3 + $0xb30] sm:$0xff]
    %v1665 = vld [vmem:[%s3 + $0xb38] sm:$0xff]
    %v1666 = vld [vmem:[%s3 + $0xb40] sm:$0xff]
    %v1667 = vld [vmem:[%s3 + $0xb48] sm:$0xff]
    %v1668 = vld [vmem:[%s3 + $0xb50] sm:$0xff]
    %v1669 = vld [vmem:[%s3 + $0xb58] sm:$0xff]
    %v1670 = vld [vmem:[%s3 + $0xb60] sm:$0xff]
    %v1671 = vld [vmem:[%s3 + $0xb68] sm:$0xff]
    %v1672 = vld [vmem:[%s3 + $0xb70] sm:$0xff]
    %v1673 = vld [vmem:[%s3 + $0xb78] sm:$0xff]
    %v1674 = vld [vmem:[%s3 + $0xb80] sm:$0xff]
    %v1675 = vld [vmem:[%s3 + $0xb88] sm:$0xff]
    %v1676 = vld [vmem:[%s3 + $0xb90] sm:$0xff]
    %v1677 = vld [vmem:[%s3 + $0xb98] sm:$0xff]
    %v1678 = vld [vmem:[%s3 + $0xba0] sm:$0xff]
    %v1679 = vld [vmem:[%s3 + $0xba8] sm:$0xff]
    %v1680 = vld [vmem:[%s3 + $0xbb0] sm:$0xff]
    %v1681 = vld [vmem:[%s3 + $0xbb8] sm:$0xff]
    %v1682 = vld [vmem:[%s3 + $0xbc0] sm:$0xff]
    %v1683 = vld [vmem:[%s3 + $0xbc8] sm:$0xff]
    %v1684 = vld [vmem:[%s3 + $0xbd0] sm:$0xff]
    %v1685 = vld [vmem:[%s3 + $0xbd8] sm:$0xff]
    %v1686 = vld [vmem:[%s3 + $0xbe0] sm:$0xff]
    %v1687 = vld [vmem:[%s3 + $0xbe8] sm:$0xff]
    %v1688 = vld [vmem:[%s3 + $0xbf0] sm:$0xff]
    %v1689 = vld [vmem:[%s3 + $0xbf8] sm:$0xff]
    %v1690 = vld [vmem:[%s3 + $0xc00] sm:$0xff]
    %v1691 = vld [vmem:[%s3 + $0xc08] sm:$0xff]
    %v1692 = vld [vmem:[%s3 + $0xc10] sm:$0xff]
    %v1693 = vld [vmem:[%s3 + $0xc18] sm:$0xff]
    %v1694 = vld [vmem:[%s3 + $0xc20] sm:$0xff]
    %v1695 = vld [vmem:[%s3 + $0xc28] sm:$0xff]
    %v1696 = vld [vmem:[%s3 + $0xc30] sm:$0xff]
    %v1697 = vld [vmem:[%s3 + $0xc38] sm:$0xff]
    %v1698 = vld [vmem:[%s3 + $0xc40] sm:$0xff]
    %v1699 = vld [vmem:[%s3 + $0xc48] sm:$0xff]
    %v1700 = vld [vmem:[%s3 + $0xc50] sm:$0xff]
    %v1701 = vld [vmem:[%s3 + $0xc58] sm:$0xff]
    %v1702 = vld [vmem:[%s3 + $0xc60] sm:$0xff]
    %v1703 = vld [vmem:[%s3 + $0xc68] sm:$0xff]
    %v1704 = vld [vmem:[%s3 + $0xc70] sm:$0xff]
    %v1705 = vld [vmem:[%s3 + $0xc78] sm:$0xff]
    %v1706 = vld [vmem:[%s3 + $0xc80] sm:$0xff]
    %v1707 = vld [vmem:[%s3 + $0xc88] sm:$0xff]
    %v1708 = vld [vmem:[%s3 + $0xc90] sm:$0xff]
    %v1709 = vld [vmem:[%s3 + $0xc98] sm:$0xff]
    %v1710 = vld [vmem:[%s3 + $0xca0] sm:$0xff]
    %v1711 = vld [vmem:[%s3 + $0xca8] sm:$0xff]
    %v1712 = vld [vmem:[%s3 + $0xcb0] sm:$0xff]
    %v1713 = vld [vmem:[%s3 + $0xcb8] sm:$0xff]
    %v1714 = vld [vmem:[%s3 + $0xcc0] sm:$0xff]
    %v1715 = vld [vmem:[%s3 + $0xcc8] sm:$0xff]
    %v1716 = vld [vmem:[%s3 + $0xcd0] sm:$0xff]
    %v1717 = vld [vmem:[%s3 + $0xcd8] sm:$0xff]
    %v1718 = vld [vmem:[%s3 + $0xce0] sm:$0xff]
    %v1719 = vld [vmem:[%s3 + $0xce8] sm:$0xff]
    %v1720 = vld [vmem:[%s3 + $0xcf0] sm:$0xff]
    %v1721 = vld [vmem:[%s3 + $0xcf8] sm:$0xff]
    %v1722 = vld [vmem:[%s3 + $0xd00] sm:$0xff]
    %v1723 = vld [vmem:[%s3 + $0xd08] sm:$0xff]
    %v1724 = vld [vmem:[%s3 + $0xd10] sm:$0xff]
    %v1725 = vld [vmem:[%s3 + $0xd18] sm:$0xff]
    %v1726 = vld [vmem:[%s3 + $0xd20] sm:$0xff]
    %v1727 = vld [vmem:[%s3 + $0xd28] sm:$0xff]
    %v1728 = vld [vmem:[%s3 + $0xd30] sm:$0xff]
    %v1729 = vld [vmem:[%s3 + $0xd38] sm:$0xff]
    %v1730 = vld [vmem:[%s3 + $0xd40] sm:$0xff]
    %v1731 = vld [vmem:[%s3 + $0xd48] sm:$0xff]
    %v1732 = vld [vmem:[%s3 + $0xd50] sm:$0xff]
    %v1733 = vld [vmem:[%s3 + $0xd58] sm:$0xff]
    %v1734 = vld [vmem:[%s3 + $0xd60] sm:$0xff]
    %v1735 = vld [vmem:[%s3 + $0xd68] sm:$0xff]
    %v1736 = vld [vmem:[%s3 + $0xd70] sm:$0xff]
    %v1737 = vld [vmem:[%s3 + $0xd78] sm:$0xff]
    %v1738 = vld [vmem:[%s3 + $0xd80] sm:$0xff]
    %v1739 = vld [vmem:[%s3 + $0xd88] sm:$0xff]
    %v1740 = vld [vmem:[%s3 + $0xd90] sm:$0xff]
    %v1741 = vld [vmem:[%s3 + $0xd98] sm:$0xff]
    %v1742 = vld [vmem:[%s3 + $0xda0] sm:$0xff]
    %v1743 = vld [vmem:[%s3 + $0xda8] sm:$0xff]
    %v1744 = vld [vmem:[%s3 + $0xdb0] sm:$0xff]
    %v1745 = vld [vmem:[%s3 + $0xdb8] sm:$0xff]
    %v1746 = vld [vmem:[%s3 + $0xdc0] sm:$0xff]
    %v1747 = vld [vmem:[%s3 + $0xdc8] sm:$0xff]
    %v1748 = vld [vmem:[%s3 + $0xdd0] sm:$0xff]
    %v1749 = vld [vmem:[%s3 + $0xdd8] sm:$0xff]
    %v1750 = vld [vmem:[%s3 + $0xde0] sm:$0xff]
    %v1751 = vld [vmem:[%s3 + $0xde8] sm:$0xff]
    %v1752 = vld [vmem:[%s3 + $0xdf0] sm:$0xff]
    %v1753 = vld [vmem:[%s3 + $0xdf8] sm:$0xff]
    %v1754 = vld [vmem:[%s3 + $0xe00] sm:$0xff]
    %v1755 = vld [vmem:[%s3 + $0xe08] sm:$0xff]
    %v1756 = vld [vmem:[%s3 + $0xe10] sm:$0xff]
    %v1757 = vld [vmem:[%s3 + $0xe18] sm:$0xff]
    %v1758 = vld [vmem:[%s3 + $0xe20] sm:$0xff]
    %v1759 = vld [vmem:[%s3 + $0xe28] sm:$0xff]
    %v1760 = vld [vmem:[%s3 + $0xe30] sm:$0xff]
    %v1761 = vld [vmem:[%s3 + $0xe38] sm:$0xff]
    %v1762 = vld [vmem:[%s3 + $0xe40] sm:$0xff]
    %v1763 = vld [vmem:[%s3 + $0xe48] sm:$0xff]
    %v1764 = vld [vmem:[%s3 + $0xe50] sm:$0xff]
    %v1765 = vld [vmem:[%s3 + $0xe58] sm:$0xff]
    %v1766 = vld [vmem:[%s3 + $0xe60] sm:$0xff]
    %v1767 = vld [vmem:[%s3 + $0xe68] sm:$0xff]
    %v1768 = vld [vmem:[%s3 + $0xe70] sm:$0xff]
    %v1769 = vld [vmem:[%s3 + $0xe78] sm:$0xff]
    %v1770 = vld [vmem:[%s3 + $0xe80] sm:$0xff]
    %v1771 = vld [vmem:[%s3 + $0xe88] sm:$0xff]
    %v1772 = vld [vmem:[%s3 + $0xe90] sm:$0xff]
    %v1773 = vld [vmem:[%s3 + $0xe98] sm:$0xff]
    %v1774 = vld [vmem:[%s3 + $0xea0] sm:$0xff]
    %v1775 = vld [vmem:[%s3 + $0xea8] sm:$0xff]
    %v1776 = vld [vmem:[%s3 + $0xeb0] sm:$0xff]
    %v1777 = vld [vmem:[%s3 + $0xeb8] sm:$0xff]
    %v1778 = vld [vmem:[%s3 + $0xec0] sm:$0xff]
    %v1779 = vld [vmem:[%s3 + $0xec8] sm:$0xff]
    %v1780 = vld [vmem:[%s3 + $0xed0] sm:$0xff]
    %v1781 = vld [vmem:[%s3 + $0xed8] sm:$0xff]
    %v1782 = vld [vmem:[%s3 + $0xee0] sm:$0xff]
    %v1783 = vld [vmem:[%s3 + $0xee8] sm:$0xff]
    %v1784 = vld [vmem:[%s3 + $0xef0] sm:$0xff]
    %v1785 = vld [vmem:[%s3 + $0xef8] sm:$0xff]
    %v1786 = vld [vmem:[%s3 + $0xf00] sm:$0xff]
    %v1787 = vld [vmem:[%s3 + $0xf08] sm:$0xff]
    %v1788 = vld [vmem:[%s3 + $0xf10] sm:$0xff]
    %v1789 = vld [vmem:[%s3 + $0xf18] sm:$0xff]
    %v1790 = vld [vmem:[%s3 + $0xf20] sm:$0xff]
    %v1791 = vld [vmem:[%s3 + $0xf28] sm:$0xff]
    %v1792 = vld [vmem:[%s3 + $0xf30] sm:$0xff]
    %v1793 = vld [vmem:[%s3 + $0xf38] sm:$0xff]
    %v1794 = vld [vmem:[%s3 + $0xf40] sm:$0xff]
    %v1795 = vld [vmem:[%s3 + $0xf48] sm:$0xff]
    %v1796 = vld [vmem:[%s3 + $0xf50] sm:$0xff]
    %v1797 = vld [vmem:[%s3 + $0xf58] sm:$0xff]
    %v1798 = vld [vmem:[%s3 + $0xf60] sm:$0xff]
    %v1799 = vld [vmem:[%s3 + $0xf68] sm:$0xff]
    %v1800 = vld [vmem:[%s3 + $0xf70] sm:$0xff]
    %v1801 = vld [vmem:[%s3 + $0xf78] sm:$0xff]
    %v1802 = vld [vmem:[%s3 + $0xf80] sm:$0xff]
    %v1803 = vld [vmem:[%s3 + $0xf88] sm:$0xff]
    %v1804 = vld [vmem:[%s3 + $0xf90] sm:$0xff]
    %v1805 = vld [vmem:[%s3 + $0xf98] sm:$0xff]
    %v1806 = vld [vmem:[%s3 + $0xfa0] sm:$0xff]
    %v1807 = vld [vmem:[%s3 + $0xfa8] sm:$0xff]
    %v1808 = vld [vmem:[%s3 + $0xfb0] sm:$0xff]
    %v1809 = vld [vmem:[%s3 + $0xfb8] sm:$0xff]
    %v1810 = vld [vmem:[%s3 + $0xfc0] sm:$0xff]
    %v1811 = vld [vmem:[%s3 + $0xfc8] sm:$0xff]
    %v1812 = vld [vmem:[%s3 + $0xfd0] sm:$0xff]
    %v1813 = vld [vmem:[%s3 + $0xfd8] sm:$0xff]
    %v1814 = vld [vmem:[%s3 + $0xfe0] sm:$0xff]
    %v1815 = vld [vmem:[%s3 + $0xfe8] sm:$0xff]
    %v1816 = vld [vmem:[%s3 + $0xff0] sm:$0xff]
    %v1817 = vld [vmem:[%s3 + $0xff8] sm:$0xff]
    %v1818 = vld [vmem:[%s4] sm:$0x3]
    %v1820 = vlaneseq
    %v1821 = vshrl.u32 %v1820, 7
    %v1822 = vsub.s32 0, %v1821
    %v1823 = vrot.slane %v1818, %v1822
    %v1824 = vlaneseq
    %v1825 = vshrl.u32 %v1824, 7
    %v1826 = vsub.s32 1, %v1825
    %v1827 = vrot.slane %v1818, %v1826
    %v2342 = vunpack.c.l.b16 %v1306
    %v2343 = vunpack.c.h.b16 %v1306
    %v2344 = vunpack.c.l.b16 %v1307
    %v2345 = vunpack.c.h.b16 %v1307
    %v2346 = vunpack.c.l.b16 %v1308
    %v2347 = vunpack.c.h.b16 %v1308
    %v2348 = vunpack.c.l.b16 %v1309
    %v2349 = vunpack.c.h.b16 %v1309
    %v2350 = vunpack.c.l.b16 %v1310
    %v2351 = vunpack.c.h.b16 %v1310
    %v2352 = vunpack.c.l.b16 %v1311
    %v2353 = vunpack.c.h.b16 %v1311
    %v2354 = vunpack.c.l.b16 %v1312
    %v2355 = vunpack.c.h.b16 %v1312
    %v2356 = vunpack.c.l.b16 %v1313
    %v2357 = vunpack.c.h.b16 %v1313
    %v2358 = vunpack.c.l.b16 %v1314
    %v2359 = vunpack.c.h.b16 %v1314
    %v2360 = vunpack.c.l.b16 %v1315
    %v2361 = vunpack.c.h.b16 %v1315
    %v2362 = vunpack.c.l.b16 %v1316
    %v2363 = vunpack.c.h.b16 %v1316
    %v2364 = vunpack.c.l.b16 %v1317
    %v2365 = vunpack.c.h.b16 %v1317
    %v2366 = vunpack.c.l.b16 %v1318
    %v2367 = vunpack.c.h.b16 %v1318
    %v2368 = vunpack.c.l.b16 %v1319
    %v2369 = vunpack.c.h.b16 %v1319
    %v2370 = vunpack.c.l.b16 %v1320
    %v2371 = vunpack.c.h.b16 %v1320
    %v2372 = vunpack.c.l.b16 %v1321
    %v2373 = vunpack.c.h.b16 %v1321
    %v2374 = vunpack.c.l.b16 %v1322
    %v2375 = vunpack.c.h.b16 %v1322
    %v2376 = vunpack.c.l.b16 %v1323
    %v2377 = vunpack.c.h.b16 %v1323
    %v2378 = vunpack.c.l.b16 %v1324
    %v2379 = vunpack.c.h.b16 %v1324
    %v2380 = vunpack.c.l.b16 %v1325
    %v2381 = vunpack.c.h.b16 %v1325
    %v2382 = vunpack.c.l.b16 %v1326
    %v2383 = vunpack.c.h.b16 %v1326
    %v2384 = vunpack.c.l.b16 %v1327
    %v2385 = vunpack.c.h.b16 %v1327
    %v2386 = vunpack.c.l.b16 %v1328
    %v2387 = vunpack.c.h.b16 %v1328
    %v2388 = vunpack.c.l.b16 %v1329
    %v2389 = vunpack.c.h.b16 %v1329
    %v2390 = vunpack.c.l.b16 %v1330
    %v2391 = vunpack.c.h.b16 %v1330
    %v2392 = vunpack.c.l.b16 %v1331
    %v2393 = vunpack.c.h.b16 %v1331
    %v2394 = vunpack.c.l.b16 %v1332
    %v2395 = vunpack.c.h.b16 %v1332
    %v2396 = vunpack.c.l.b16 %v1333
    %v2397 = vunpack.c.h.b16 %v1333
    %v2398 = vunpack.c.l.b16 %v1334
    %v2399 = vunpack.c.h.b16 %v1334
    %v2400 = vunpack.c.l.b16 %v1335
    %v2401 = vunpack.c.h.b16 %v1335
    %v2402 = vunpack.c.l.b16 %v1336
    %v2403 = vunpack.c.h.b16 %v1336
    %v2404 = vunpack.c.l.b16 %v1337
    %v2405 = vunpack.c.h.b16 %v1337
    %v2406 = vunpack.c.l.b16 %v1338
    %v2407 = vunpack.c.h.b16 %v1338
    %v2408 = vunpack.c.l.b16 %v1339
    %v2409 = vunpack.c.h.b16 %v1339
    %v2410 = vunpack.c.l.b16 %v1340
    %v2411 = vunpack.c.h.b16 %v1340
    %v2412 = vunpack.c.l.b16 %v1341
    %v2413 = vunpack.c.h.b16 %v1341
    %v2414 = vunpack.c.l.b16 %v1342
    %v2415 = vunpack.c.h.b16 %v1342
    %v2416 = vunpack.c.l.b16 %v1343
    %v2417 = vunpack.c.h.b16 %v1343
    %v2418 = vunpack.c.l.b16 %v1344
    %v2419 = vunpack.c.h.b16 %v1344
    %v2420 = vunpack.c.l.b16 %v1345
    %v2421 = vunpack.c.h.b16 %v1345
    %v2422 = vunpack.c.l.b16 %v1346
    %v2423 = vunpack.c.h.b16 %v1346
    %v2424 = vunpack.c.l.b16 %v1347
    %v2425 = vunpack.c.h.b16 %v1347
    %v2426 = vunpack.c.l.b16 %v1348
    %v2427 = vunpack.c.h.b16 %v1348
    %v2428 = vunpack.c.l.b16 %v1349
    %v2429 = vunpack.c.h.b16 %v1349
    %v2430 = vunpack.c.l.b16 %v1350
    %v2431 = vunpack.c.h.b16 %v1350
    %v2432 = vunpack.c.l.b16 %v1351
    %v2433 = vunpack.c.h.b16 %v1351
    %v2434 = vunpack.c.l.b16 %v1352
    %v2435 = vunpack.c.h.b16 %v1352
    %v2436 = vunpack.c.l.b16 %v1353
    %v2437 = vunpack.c.h.b16 %v1353
    %v2438 = vunpack.c.l.b16 %v1354
    %v2439 = vunpack.c.h.b16 %v1354
    %v2440 = vunpack.c.l.b16 %v1355
    %v2441 = vunpack.c.h.b16 %v1355
    %v2442 = vunpack.c.l.b16 %v1356
    %v2443 = vunpack.c.h.b16 %v1356
    %v2444 = vunpack.c.l.b16 %v1357
    %v2445 = vunpack.c.h.b16 %v1357
    %v2446 = vunpack.c.l.b16 %v1358
    %v2447 = vunpack.c.h.b16 %v1358
    %v2448 = vunpack.c.l.b16 %v1359
    %v2449 = vunpack.c.h.b16 %v1359
    %v2450 = vunpack.c.l.b16 %v1360
    %v2451 = vunpack.c.h.b16 %v1360
    %v2452 = vunpack.c.l.b16 %v1361
    %v2453 = vunpack.c.h.b16 %v1361
    %v2454 = vunpack.c.l.b16 %v1362
    %v2455 = vunpack.c.h.b16 %v1362
    %v2456 = vunpack.c.l.b16 %v1363
    %v2457 = vunpack.c.h.b16 %v1363
    %v2458 = vunpack.c.l.b16 %v1364
    %v2459 = vunpack.c.h.b16 %v1364
    %v2460 = vunpack.c.l.b16 %v1365
    %v2461 = vunpack.c.h.b16 %v1365
    %v2462 = vunpack.c.l.b16 %v1366
    %v2463 = vunpack.c.h.b16 %v1366
    %v2464 = vunpack.c.l.b16 %v1367
    %v2465 = vunpack.c.h.b16 %v1367
    %v2466 = vunpack.c.l.b16 %v1368
    %v2467 = vunpack.c.h.b16 %v1368
    %v2468 = vunpack.c.l.b16 %v1369
    %v2469 = vunpack.c.h.b16 %v1369
    %v2470 = vunpack.c.l.b16 %v1370
    %v2471 = vunpack.c.h.b16 %v1370
    %v2472 = vunpack.c.l.b16 %v1371
    %v2473 = vunpack.c.h.b16 %v1371
    %v2474 = vunpack.c.l.b16 %v1372
    %v2475 = vunpack.c.h.b16 %v1372
    %v2476 = vunpack.c.l.b16 %v1373
    %v2477 = vunpack.c.h.b16 %v1373
    %v2478 = vunpack.c.l.b16 %v1374
    %v2479 = vunpack.c.h.b16 %v1374
    %v2480 = vunpack.c.l.b16 %v1375
    %v2481 = vunpack.c.h.b16 %v1375
    %v2482 = vunpack.c.l.b16 %v1376
    %v2483 = vunpack.c.h.b16 %v1376
    %v2484 = vunpack.c.l.b16 %v1377
    %v2485 = vunpack.c.h.b16 %v1377
    %v2486 = vunpack.c.l.b16 %v1378
    %v2487 = vunpack.c.h.b16 %v1378
    %v2488 = vunpack.c.l.b16 %v1379
    %v2489 = vunpack.c.h.b16 %v1379
    %v2490 = vunpack.c.l.b16 %v1380
    %v2491 = vunpack.c.h.b16 %v1380
    %v2492 = vunpack.c.l.b16 %v1381
    %v2493 = vunpack.c.h.b16 %v1381
    %v2494 = vunpack.c.l.b16 %v1382
    %v2495 = vunpack.c.h.b16 %v1382
    %v2496 = vunpack.c.l.b16 %v1383
    %v2497 = vunpack.c.h.b16 %v1383
    %v2498 = vunpack.c.l.b16 %v1384
    %v2499 = vunpack.c.h.b16 %v1384
    %v2500 = vunpack.c.l.b16 %v1385
    %v2501 = vunpack.c.h.b16 %v1385
    %v2502 = vunpack.c.l.b16 %v1386
    %v2503 = vunpack.c.h.b16 %v1386
    %v2504 = vunpack.c.l.b16 %v1387
    %v2505 = vunpack.c.h.b16 %v1387
    %v2506 = vunpack.c.l.b16 %v1388
    %v2507 = vunpack.c.h.b16 %v1388
    %v2508 = vunpack.c.l.b16 %v1389
    %v2509 = vunpack.c.h.b16 %v1389
    %v2510 = vunpack.c.l.b16 %v1390
    %v2511 = vunpack.c.h.b16 %v1390
    %v2512 = vunpack.c.l.b16 %v1391
    %v2513 = vunpack.c.h.b16 %v1391
    %v2514 = vunpack.c.l.b16 %v1392
    %v2515 = vunpack.c.h.b16 %v1392
    %v2516 = vunpack.c.l.b16 %v1393
    %v2517 = vunpack.c.h.b16 %v1393
    %v2518 = vunpack.c.l.b16 %v1394
    %v2519 = vunpack.c.h.b16 %v1394
    %v2520 = vunpack.c.l.b16 %v1395
    %v2521 = vunpack.c.h.b16 %v1395
    %v2522 = vunpack.c.l.b16 %v1396
    %v2523 = vunpack.c.h.b16 %v1396
    %v2524 = vunpack.c.l.b16 %v1397
    %v2525 = vunpack.c.h.b16 %v1397
    %v2526 = vunpack.c.l.b16 %v1398
    %v2527 = vunpack.c.h.b16 %v1398
    %v2528 = vunpack.c.l.b16 %v1399
    %v2529 = vunpack.c.h.b16 %v1399
    %v2530 = vunpack.c.l.b16 %v1400
    %v2531 = vunpack.c.h.b16 %v1400
    %v2532 = vunpack.c.l.b16 %v1401
    %v2533 = vunpack.c.h.b16 %v1401
    %v2534 = vunpack.c.l.b16 %v1402
    %v2535 = vunpack.c.h.b16 %v1402
    %v2536 = vunpack.c.l.b16 %v1403
    %v2537 = vunpack.c.h.b16 %v1403
    %v2538 = vunpack.c.l.b16 %v1404
    %v2539 = vunpack.c.h.b16 %v1404
    %v2540 = vunpack.c.l.b16 %v1405
    %v2541 = vunpack.c.h.b16 %v1405
    %v2542 = vunpack.c.l.b16 %v1406
    %v2543 = vunpack.c.h.b16 %v1406
    %v2544 = vunpack.c.l.b16 %v1407
    %v2545 = vunpack.c.h.b16 %v1407
    %v2546 = vunpack.c.l.b16 %v1408
    %v2547 = vunpack.c.h.b16 %v1408
    %v2548 = vunpack.c.l.b16 %v1409
    %v2549 = vunpack.c.h.b16 %v1409
    %v2550 = vunpack.c.l.b16 %v1410
    %v2551 = vunpack.c.h.b16 %v1410
    %v2552 = vunpack.c.l.b16 %v1411
    %v2553 = vunpack.c.h.b16 %v1411
    %v2554 = vunpack.c.l.b16 %v1412
    %v2555 = vunpack.c.h.b16 %v1412
    %v2556 = vunpack.c.l.b16 %v1413
    %v2557 = vunpack.c.h.b16 %v1413
    %v2558 = vunpack.c.l.b16 %v1414
    %v2559 = vunpack.c.h.b16 %v1414
    %v2560 = vunpack.c.l.b16 %v1415
    %v2561 = vunpack.c.h.b16 %v1415
    %v2562 = vunpack.c.l.b16 %v1416
    %v2563 = vunpack.c.h.b16 %v1416
    %v2564 = vunpack.c.l.b16 %v1417
    %v2565 = vunpack.c.h.b16 %v1417
    %v2566 = vunpack.c.l.b16 %v1418
    %v2567 = vunpack.c.h.b16 %v1418
    %v2568 = vunpack.c.l.b16 %v1419
    %v2569 = vunpack.c.h.b16 %v1419
    %v2570 = vunpack.c.l.b16 %v1420
    %v2571 = vunpack.c.h.b16 %v1420
    %v2572 = vunpack.c.l.b16 %v1421
    %v2573 = vunpack.c.h.b16 %v1421
    %v2574 = vunpack.c.l.b16 %v1422
    %v2575 = vunpack.c.h.b16 %v1422
    %v2576 = vunpack.c.l.b16 %v1423
    %v2577 = vunpack.c.h.b16 %v1423
    %v2578 = vunpack.c.l.b16 %v1424
    %v2579 = vunpack.c.h.b16 %v1424
    %v2580 = vunpack.c.l.b16 %v1425
    %v2581 = vunpack.c.h.b16 %v1425
    %v2582 = vunpack.c.l.b16 %v1426
    %v2583 = vunpack.c.h.b16 %v1426
    %v2584 = vunpack.c.l.b16 %v1427
    %v2585 = vunpack.c.h.b16 %v1427
    %v2586 = vunpack.c.l.b16 %v1428
    %v2587 = vunpack.c.h.b16 %v1428
    %v2588 = vunpack.c.l.b16 %v1429
    %v2589 = vunpack.c.h.b16 %v1429
    %v2590 = vunpack.c.l.b16 %v1430
    %v2591 = vunpack.c.h.b16 %v1430
    %v2592 = vunpack.c.l.b16 %v1431
    %v2593 = vunpack.c.h.b16 %v1431
    %v2594 = vunpack.c.l.b16 %v1432
    %v2595 = vunpack.c.h.b16 %v1432
    %v2596 = vunpack.c.l.b16 %v1433
    %v2597 = vunpack.c.h.b16 %v1433
    %v2598 = vunpack.c.l.b16 %v1434
    %v2599 = vunpack.c.h.b16 %v1434
    %v2600 = vunpack.c.l.b16 %v1435
    %v2601 = vunpack.c.h.b16 %v1435
    %v2602 = vunpack.c.l.b16 %v1436
    %v2603 = vunpack.c.h.b16 %v1436
    %v2604 = vunpack.c.l.b16 %v1437
    %v2605 = vunpack.c.h.b16 %v1437
    %v2606 = vunpack.c.l.b16 %v1438
    %v2607 = vunpack.c.h.b16 %v1438
    %v2608 = vunpack.c.l.b16 %v1439
    %v2609 = vunpack.c.h.b16 %v1439
    %v2610 = vunpack.c.l.b16 %v1440
    %v2611 = vunpack.c.h.b16 %v1440
    %v2612 = vunpack.c.l.b16 %v1441
    %v2613 = vunpack.c.h.b16 %v1441
    %v2614 = vunpack.c.l.b16 %v1442
    %v2615 = vunpack.c.h.b16 %v1442
    %v2616 = vunpack.c.l.b16 %v1443
    %v2617 = vunpack.c.h.b16 %v1443
    %v2618 = vunpack.c.l.b16 %v1444
    %v2619 = vunpack.c.h.b16 %v1444
    %v2620 = vunpack.c.l.b16 %v1445
    %v2621 = vunpack.c.h.b16 %v1445
    %v2622 = vunpack.c.l.b16 %v1446
    %v2623 = vunpack.c.h.b16 %v1446
    %v2624 = vunpack.c.l.b16 %v1447
    %v2625 = vunpack.c.h.b16 %v1447
    %v2626 = vunpack.c.l.b16 %v1448
    %v2627 = vunpack.c.h.b16 %v1448
    %v2628 = vunpack.c.l.b16 %v1449
    %v2629 = vunpack.c.h.b16 %v1449
    %v2630 = vunpack.c.l.b16 %v1450
    %v2631 = vunpack.c.h.b16 %v1450
    %v2632 = vunpack.c.l.b16 %v1451
    %v2633 = vunpack.c.h.b16 %v1451
    %v2634 = vunpack.c.l.b16 %v1452
    %v2635 = vunpack.c.h.b16 %v1452
    %v2636 = vunpack.c.l.b16 %v1453
    %v2637 = vunpack.c.h.b16 %v1453
    %v2638 = vunpack.c.l.b16 %v1454
    %v2639 = vunpack.c.h.b16 %v1454
    %v2640 = vunpack.c.l.b16 %v1455
    %v2641 = vunpack.c.h.b16 %v1455
    %v2642 = vunpack.c.l.b16 %v1456
    %v2643 = vunpack.c.h.b16 %v1456
    %v2644 = vunpack.c.l.b16 %v1457
    %v2645 = vunpack.c.h.b16 %v1457
    %v2646 = vunpack.c.l.b16 %v1458
    %v2647 = vunpack.c.h.b16 %v1458
    %v2648 = vunpack.c.l.b16 %v1459
    %v2649 = vunpack.c.h.b16 %v1459
    %v2650 = vunpack.c.l.b16 %v1460
    %v2651 = vunpack.c.h.b16 %v1460
    %v2652 = vunpack.c.l.b16 %v1461
    %v2653 = vunpack.c.h.b16 %v1461
    %v2654 = vunpack.c.l.b16 %v1462
    %v2655 = vunpack.c.h.b16 %v1462
    %v2656 = vunpack.c.l.b16 %v1463
    %v2657 = vunpack.c.h.b16 %v1463
    %v2658 = vunpack.c.l.b16 %v1464
    %v2659 = vunpack.c.h.b16 %v1464
    %v2660 = vunpack.c.l.b16 %v1465
    %v2661 = vunpack.c.h.b16 %v1465
    %v2662 = vunpack.c.l.b16 %v1466
    %v2663 = vunpack.c.h.b16 %v1466
    %v2664 = vunpack.c.l.b16 %v1467
    %v2665 = vunpack.c.h.b16 %v1467
    %v2666 = vunpack.c.l.b16 %v1468
    %v2667 = vunpack.c.h.b16 %v1468
    %v2668 = vunpack.c.l.b16 %v1469
    %v2669 = vunpack.c.h.b16 %v1469
    %v2670 = vunpack.c.l.b16 %v1470
    %v2671 = vunpack.c.h.b16 %v1470
    %v2672 = vunpack.c.l.b16 %v1471
    %v2673 = vunpack.c.h.b16 %v1471
    %v2674 = vunpack.c.l.b16 %v1472
    %v2675 = vunpack.c.h.b16 %v1472
    %v2676 = vunpack.c.l.b16 %v1473
    %v2677 = vunpack.c.h.b16 %v1473
    %v2678 = vunpack.c.l.b16 %v1474
    %v2679 = vunpack.c.h.b16 %v1474
    %v2680 = vunpack.c.l.b16 %v1475
    %v2681 = vunpack.c.h.b16 %v1475
    %v2682 = vunpack.c.l.b16 %v1476
    %v2683 = vunpack.c.h.b16 %v1476
    %v2684 = vunpack.c.l.b16 %v1477
    %v2685 = vunpack.c.h.b16 %v1477
    %v2686 = vunpack.c.l.b16 %v1478
    %v2687 = vunpack.c.h.b16 %v1478
    %v2688 = vunpack.c.l.b16 %v1479
    %v2689 = vunpack.c.h.b16 %v1479
    %v2690 = vunpack.c.l.b16 %v1480
    %v2691 = vunpack.c.h.b16 %v1480
    %v2692 = vunpack.c.l.b16 %v1481
    %v2693 = vunpack.c.h.b16 %v1481
    %v2694 = vunpack.c.l.b16 %v1482
    %v2695 = vunpack.c.h.b16 %v1482
    %v2696 = vunpack.c.l.b16 %v1483
    %v2697 = vunpack.c.h.b16 %v1483
    %v2698 = vunpack.c.l.b16 %v1484
    %v2699 = vunpack.c.h.b16 %v1484
    %v2700 = vunpack.c.l.b16 %v1485
    %v2701 = vunpack.c.h.b16 %v1485
    %v2702 = vunpack.c.l.b16 %v1486
    %v2703 = vunpack.c.h.b16 %v1486
    %v2704 = vunpack.c.l.b16 %v1487
    %v2705 = vunpack.c.h.b16 %v1487
    %v2706 = vunpack.c.l.b16 %v1488
    %v2707 = vunpack.c.h.b16 %v1488
    %v2708 = vunpack.c.l.b16 %v1489
    %v2709 = vunpack.c.h.b16 %v1489
    %v2710 = vunpack.c.l.b16 %v1490
    %v2711 = vunpack.c.h.b16 %v1490
    %v2712 = vunpack.c.l.b16 %v1491
    %v2713 = vunpack.c.h.b16 %v1491
    %v2714 = vunpack.c.l.b16 %v1492
    %v2715 = vunpack.c.h.b16 %v1492
    %v2716 = vunpack.c.l.b16 %v1493
    %v2717 = vunpack.c.h.b16 %v1493
    %v2718 = vunpack.c.l.b16 %v1494
    %v2719 = vunpack.c.h.b16 %v1494
    %v2720 = vunpack.c.l.b16 %v1495
    %v2721 = vunpack.c.h.b16 %v1495
    %v2722 = vunpack.c.l.b16 %v1496
    %v2723 = vunpack.c.h.b16 %v1496
    %v2724 = vunpack.c.l.b16 %v1497
    %v2725 = vunpack.c.h.b16 %v1497
    %v2726 = vunpack.c.l.b16 %v1498
    %v2727 = vunpack.c.h.b16 %v1498
    %v2728 = vunpack.c.l.b16 %v1499
    %v2729 = vunpack.c.h.b16 %v1499
    %v2730 = vunpack.c.l.b16 %v1500
    %v2731 = vunpack.c.h.b16 %v1500
    %v2732 = vunpack.c.l.b16 %v1501
    %v2733 = vunpack.c.h.b16 %v1501
    %v2734 = vunpack.c.l.b16 %v1502
    %v2735 = vunpack.c.h.b16 %v1502
    %v2736 = vunpack.c.l.b16 %v1503
    %v2737 = vunpack.c.h.b16 %v1503
    %v2738 = vunpack.c.l.b16 %v1504
    %v2739 = vunpack.c.h.b16 %v1504
    %v2740 = vunpack.c.l.b16 %v1505
    %v2741 = vunpack.c.h.b16 %v1505
    %v2742 = vunpack.c.l.b16 %v1506
    %v2743 = vunpack.c.h.b16 %v1506
    %v2744 = vunpack.c.l.b16 %v1507
    %v2745 = vunpack.c.h.b16 %v1507
    %v2746 = vunpack.c.l.b16 %v1508
    %v2747 = vunpack.c.h.b16 %v1508
    %v2748 = vunpack.c.l.b16 %v1509
    %v2749 = vunpack.c.h.b16 %v1509
    %v2750 = vunpack.c.l.b16 %v1510
    %v2751 = vunpack.c.h.b16 %v1510
    %v2752 = vunpack.c.l.b16 %v1511
    %v2753 = vunpack.c.h.b16 %v1511
    %v2754 = vunpack.c.l.b16 %v1512
    %v2755 = vunpack.c.h.b16 %v1512
    %v2756 = vunpack.c.l.b16 %v1513
    %v2757 = vunpack.c.h.b16 %v1513
    %v2758 = vunpack.c.l.b16 %v1514
    %v2759 = vunpack.c.h.b16 %v1514
    %v2760 = vunpack.c.l.b16 %v1515
    %v2761 = vunpack.c.h.b16 %v1515
    %v2762 = vunpack.c.l.b16 %v1516
    %v2763 = vunpack.c.h.b16 %v1516
    %v2764 = vunpack.c.l.b16 %v1517
    %v2765 = vunpack.c.h.b16 %v1517
    %v2766 = vunpack.c.l.b16 %v1518
    %v2767 = vunpack.c.h.b16 %v1518
    %v2768 = vunpack.c.l.b16 %v1519
    %v2769 = vunpack.c.h.b16 %v1519
    %v2770 = vunpack.c.l.b16 %v1520
    %v2771 = vunpack.c.h.b16 %v1520
    %v2772 = vunpack.c.l.b16 %v1521
    %v2773 = vunpack.c.h.b16 %v1521
    %v2774 = vunpack.c.l.b16 %v1522
    %v2775 = vunpack.c.h.b16 %v1522
    %v2776 = vunpack.c.l.b16 %v1523
    %v2777 = vunpack.c.h.b16 %v1523
    %v2778 = vunpack.c.l.b16 %v1524
    %v2779 = vunpack.c.h.b16 %v1524
    %v2780 = vunpack.c.l.b16 %v1525
    %v2781 = vunpack.c.h.b16 %v1525
    %v2782 = vunpack.c.l.b16 %v1526
    %v2783 = vunpack.c.h.b16 %v1526
    %v2784 = vunpack.c.l.b16 %v1527
    %v2785 = vunpack.c.h.b16 %v1527
    %v2786 = vunpack.c.l.b16 %v1528
    %v2787 = vunpack.c.h.b16 %v1528
    %v2788 = vunpack.c.l.b16 %v1529
    %v2789 = vunpack.c.h.b16 %v1529
    %v2790 = vunpack.c.l.b16 %v1530
    %v2791 = vunpack.c.h.b16 %v1530
    %v2792 = vunpack.c.l.b16 %v1531
    %v2793 = vunpack.c.h.b16 %v1531
    %v2794 = vunpack.c.l.b16 %v1532
    %v2795 = vunpack.c.h.b16 %v1532
    %v2796 = vunpack.c.l.b16 %v1533
    %v2797 = vunpack.c.h.b16 %v1533
    %v2798 = vunpack.c.l.b16 %v1534
    %v2799 = vunpack.c.h.b16 %v1534
    %v2800 = vunpack.c.l.b16 %v1535
    %v2801 = vunpack.c.h.b16 %v1535
    %v2802 = vunpack.c.l.b16 %v1536
    %v2803 = vunpack.c.h.b16 %v1536
    %v2804 = vunpack.c.l.b16 %v1537
    %v2805 = vunpack.c.h.b16 %v1537
    %v2806 = vunpack.c.l.b16 %v1538
    %v2807 = vunpack.c.h.b16 %v1538
    %v2808 = vunpack.c.l.b16 %v1539
    %v2809 = vunpack.c.h.b16 %v1539
    %v2810 = vunpack.c.l.b16 %v1540
    %v2811 = vunpack.c.h.b16 %v1540
    %v2812 = vunpack.c.l.b16 %v1541
    %v2813 = vunpack.c.h.b16 %v1541
    %v2814 = vunpack.c.l.b16 %v1542
    %v2815 = vunpack.c.h.b16 %v1542
    %v2816 = vunpack.c.l.b16 %v1543
    %v2817 = vunpack.c.h.b16 %v1543
    %v2818 = vunpack.c.l.b16 %v1544
    %v2819 = vunpack.c.h.b16 %v1544
    %v2820 = vunpack.c.l.b16 %v1545
    %v2821 = vunpack.c.h.b16 %v1545
    %v2822 = vunpack.c.l.b16 %v1546
    %v2823 = vunpack.c.h.b16 %v1546
    %v2824 = vunpack.c.l.b16 %v1547
    %v2825 = vunpack.c.h.b16 %v1547
    %v2826 = vunpack.c.l.b16 %v1548
    %v2827 = vunpack.c.h.b16 %v1548
    %v2828 = vunpack.c.l.b16 %v1549
    %v2829 = vunpack.c.h.b16 %v1549
    %v2830 = vunpack.c.l.b16 %v1550
    %v2831 = vunpack.c.h.b16 %v1550
    %v2832 = vunpack.c.l.b16 %v1551
    %v2833 = vunpack.c.h.b16 %v1551
    %v2834 = vunpack.c.l.b16 %v1552
    %v2835 = vunpack.c.h.b16 %v1552
    %v2836 = vunpack.c.l.b16 %v1553
    %v2837 = vunpack.c.h.b16 %v1553
    %v2838 = vunpack.c.l.b16 %v1554
    %v2839 = vunpack.c.h.b16 %v1554
    %v2840 = vunpack.c.l.b16 %v1555
    %v2841 = vunpack.c.h.b16 %v1555
    %v2842 = vunpack.c.l.b16 %v1556
    %v2843 = vunpack.c.h.b16 %v1556
    %v2844 = vunpack.c.l.b16 %v1557
    %v2845 = vunpack.c.h.b16 %v1557
    %v2846 = vunpack.c.l.b16 %v1558
    %v2847 = vunpack.c.h.b16 %v1558
    %v2848 = vunpack.c.l.b16 %v1559
    %v2849 = vunpack.c.h.b16 %v1559
    %v2850 = vunpack.c.l.b16 %v1560
    %v2851 = vunpack.c.h.b16 %v1560
    %v2852 = vunpack.c.l.b16 %v1561
    %v2853 = vunpack.c.h.b16 %v1561
    %v2854 = vunpack.c.l.b16 %v1562
    %v2855 = vunpack.c.h.b16 %v1562
    %v2856 = vunpack.c.l.b16 %v1563
    %v2857 = vunpack.c.h.b16 %v1563
    %v2858 = vunpack.c.l.b16 %v1564
    %v2859 = vunpack.c.h.b16 %v1564
    %v2860 = vunpack.c.l.b16 %v1565
    %v2861 = vunpack.c.h.b16 %v1565
    %v2862 = vunpack.c.l.b16 %v1566
    %v2863 = vunpack.c.h.b16 %v1566
    %v2864 = vunpack.c.l.b16 %v1567
    %v2865 = vunpack.c.h.b16 %v1567
    %v2866 = vunpack.c.l.b16 %v1568
    %v2867 = vunpack.c.h.b16 %v1568
    %v2868 = vunpack.c.l.b16 %v1569
    %v2869 = vunpack.c.h.b16 %v1569
    %v2870 = vunpack.c.l.b16 %v1570
    %v2871 = vunpack.c.h.b16 %v1570
    %v2872 = vunpack.c.l.b16 %v1571
    %v2873 = vunpack.c.h.b16 %v1571
    %v2874 = vunpack.c.l.b16 %v1572
    %v2875 = vunpack.c.h.b16 %v1572
    %v2876 = vunpack.c.l.b16 %v1573
    %v2877 = vunpack.c.h.b16 %v1573
    %v2878 = vunpack.c.l.b16 %v1574
    %v2879 = vunpack.c.h.b16 %v1574
    %v2880 = vunpack.c.l.b16 %v1575
    %v2881 = vunpack.c.h.b16 %v1575
    %v2882 = vunpack.c.l.b16 %v1576
    %v2883 = vunpack.c.h.b16 %v1576
    %v2884 = vunpack.c.l.b16 %v1577
    %v2885 = vunpack.c.h.b16 %v1577
    %v2886 = vunpack.c.l.b16 %v1578
    %v2887 = vunpack.c.h.b16 %v1578
    %v2888 = vunpack.c.l.b16 %v1579
    %v2889 = vunpack.c.h.b16 %v1579
    %v2890 = vunpack.c.l.b16 %v1580
    %v2891 = vunpack.c.h.b16 %v1580
    %v2892 = vunpack.c.l.b16 %v1581
    %v2893 = vunpack.c.h.b16 %v1581
    %v2894 = vunpack.c.l.b16 %v1582
    %v2895 = vunpack.c.h.b16 %v1582
    %v2896 = vunpack.c.l.b16 %v1583
    %v2897 = vunpack.c.h.b16 %v1583
    %v2898 = vunpack.c.l.b16 %v1584
    %v2899 = vunpack.c.h.b16 %v1584
    %v2900 = vunpack.c.l.b16 %v1585
    %v2901 = vunpack.c.h.b16 %v1585
    %v2902 = vunpack.c.l.b16 %v1586
    %v2903 = vunpack.c.h.b16 %v1586
    %v2904 = vunpack.c.l.b16 %v1587
    %v2905 = vunpack.c.h.b16 %v1587
    %v2906 = vunpack.c.l.b16 %v1588
    %v2907 = vunpack.c.h.b16 %v1588
    %v2908 = vunpack.c.l.b16 %v1589
    %v2909 = vunpack.c.h.b16 %v1589
    %v2910 = vunpack.c.l.b16 %v1590
    %v2911 = vunpack.c.h.b16 %v1590
    %v2912 = vunpack.c.l.b16 %v1591
    %v2913 = vunpack.c.h.b16 %v1591
    %v2914 = vunpack.c.l.b16 %v1592
    %v2915 = vunpack.c.h.b16 %v1592
    %v2916 = vunpack.c.l.b16 %v1593
    %v2917 = vunpack.c.h.b16 %v1593
    %v2918 = vunpack.c.l.b16 %v1594
    %v2919 = vunpack.c.h.b16 %v1594
    %v2920 = vunpack.c.l.b16 %v1595
    %v2921 = vunpack.c.h.b16 %v1595
    %v2922 = vunpack.c.l.b16 %v1596
    %v2923 = vunpack.c.h.b16 %v1596
    %v2924 = vunpack.c.l.b16 %v1597
    %v2925 = vunpack.c.h.b16 %v1597
    %v2926 = vunpack.c.l.b16 %v1598
    %v2927 = vunpack.c.h.b16 %v1598
    %v2928 = vunpack.c.l.b16 %v1599
    %v2929 = vunpack.c.h.b16 %v1599
    %v2930 = vunpack.c.l.b16 %v1600
    %v2931 = vunpack.c.h.b16 %v1600
    %v2932 = vunpack.c.l.b16 %v1601
    %v2933 = vunpack.c.h.b16 %v1601
    %v2934 = vunpack.c.l.b16 %v1602
    %v2935 = vunpack.c.h.b16 %v1602
    %v2936 = vunpack.c.l.b16 %v1603
    %v2937 = vunpack.c.h.b16 %v1603
    %v2938 = vunpack.c.l.b16 %v1604
    %v2939 = vunpack.c.h.b16 %v1604
    %v2940 = vunpack.c.l.b16 %v1605
    %v2941 = vunpack.c.h.b16 %v1605
    %v2942 = vunpack.c.l.b16 %v1606
    %v2943 = vunpack.c.h.b16 %v1606
    %v2944 = vunpack.c.l.b16 %v1607
    %v2945 = vunpack.c.h.b16 %v1607
    %v2946 = vunpack.c.l.b16 %v1608
    %v2947 = vunpack.c.h.b16 %v1608
    %v2948 = vunpack.c.l.b16 %v1609
    %v2949 = vunpack.c.h.b16 %v1609
    %v2950 = vunpack.c.l.b16 %v1610
    %v2951 = vunpack.c.h.b16 %v1610
    %v2952 = vunpack.c.l.b16 %v1611
    %v2953 = vunpack.c.h.b16 %v1611
    %v2954 = vunpack.c.l.b16 %v1612
    %v2955 = vunpack.c.h.b16 %v1612
    %v2956 = vunpack.c.l.b16 %v1613
    %v2957 = vunpack.c.h.b16 %v1613
    %v2958 = vunpack.c.l.b16 %v1614
    %v2959 = vunpack.c.h.b16 %v1614
    %v2960 = vunpack.c.l.b16 %v1615
    %v2961 = vunpack.c.h.b16 %v1615
    %v2962 = vunpack.c.l.b16 %v1616
    %v2963 = vunpack.c.h.b16 %v1616
    %v2964 = vunpack.c.l.b16 %v1617
    %v2965 = vunpack.c.h.b16 %v1617
    %v2966 = vunpack.c.l.b16 %v1618
    %v2967 = vunpack.c.h.b16 %v1618
    %v2968 = vunpack.c.l.b16 %v1619
    %v2969 = vunpack.c.h.b16 %v1619
    %v2970 = vunpack.c.l.b16 %v1620
    %v2971 = vunpack.c.h.b16 %v1620
    %v2972 = vunpack.c.l.b16 %v1621
    %v2973 = vunpack.c.h.b16 %v1621
    %v2974 = vunpack.c.l.b16 %v1622
    %v2975 = vunpack.c.h.b16 %v1622
    %v2976 = vunpack.c.l.b16 %v1623
    %v2977 = vunpack.c.h.b16 %v1623
    %v2978 = vunpack.c.l.b16 %v1624
    %v2979 = vunpack.c.h.b16 %v1624
    %v2980 = vunpack.c.l.b16 %v1625
    %v2981 = vunpack.c.h.b16 %v1625
    %v2982 = vunpack.c.l.b16 %v1626
    %v2983 = vunpack.c.h.b16 %v1626
    %v2984 = vunpack.c.l.b16 %v1627
    %v2985 = vunpack.c.h.b16 %v1627
    %v2986 = vunpack.c.l.b16 %v1628
    %v2987 = vunpack.c.h.b16 %v1628
    %v2988 = vunpack.c.l.b16 %v1629
    %v2989 = vunpack.c.h.b16 %v1629
    %v2990 = vunpack.c.l.b16 %v1630
    %v2991 = vunpack.c.h.b16 %v1630
    %v2992 = vunpack.c.l.b16 %v1631
    %v2993 = vunpack.c.h.b16 %v1631
    %v2994 = vunpack.c.l.b16 %v1632
    %v2995 = vunpack.c.h.b16 %v1632
    %v2996 = vunpack.c.l.b16 %v1633
    %v2997 = vunpack.c.h.b16 %v1633
    %v2998 = vunpack.c.l.b16 %v1634
    %v2999 = vunpack.c.h.b16 %v1634
    %v3000 = vunpack.c.l.b16 %v1635
    %v3001 = vunpack.c.h.b16 %v1635
    %v3002 = vunpack.c.l.b16 %v1636
    %v3003 = vunpack.c.h.b16 %v1636
    %v3004 = vunpack.c.l.b16 %v1637
    %v3005 = vunpack.c.h.b16 %v1637
    %v3006 = vunpack.c.l.b16 %v1638
    %v3007 = vunpack.c.h.b16 %v1638
    %v3008 = vunpack.c.l.b16 %v1639
    %v3009 = vunpack.c.h.b16 %v1639
    %v3010 = vunpack.c.l.b16 %v1640
    %v3011 = vunpack.c.h.b16 %v1640
    %v3012 = vunpack.c.l.b16 %v1641
    %v3013 = vunpack.c.h.b16 %v1641
    %v3014 = vunpack.c.l.b16 %v1642
    %v3015 = vunpack.c.h.b16 %v1642
    %v3016 = vunpack.c.l.b16 %v1643
    %v3017 = vunpack.c.h.b16 %v1643
    %v3018 = vunpack.c.l.b16 %v1644
    %v3019 = vunpack.c.h.b16 %v1644
    %v3020 = vunpack.c.l.b16 %v1645
    %v3021 = vunpack.c.h.b16 %v1645
    %v3022 = vunpack.c.l.b16 %v1646
    %v3023 = vunpack.c.h.b16 %v1646
    %v3024 = vunpack.c.l.b16 %v1647
    %v3025 = vunpack.c.h.b16 %v1647
    %v3026 = vunpack.c.l.b16 %v1648
    %v3027 = vunpack.c.h.b16 %v1648
    %v3028 = vunpack.c.l.b16 %v1649
    %v3029 = vunpack.c.h.b16 %v1649
    %v3030 = vunpack.c.l.b16 %v1650
    %v3031 = vunpack.c.h.b16 %v1650
    %v3032 = vunpack.c.l.b16 %v1651
    %v3033 = vunpack.c.h.b16 %v1651
    %v3034 = vunpack.c.l.b16 %v1652
    %v3035 = vunpack.c.h.b16 %v1652
    %v3036 = vunpack.c.l.b16 %v1653
    %v3037 = vunpack.c.h.b16 %v1653
    %v3038 = vunpack.c.l.b16 %v1654
    %v3039 = vunpack.c.h.b16 %v1654
    %v3040 = vunpack.c.l.b16 %v1655
    %v3041 = vunpack.c.h.b16 %v1655
    %v3042 = vunpack.c.l.b16 %v1656
    %v3043 = vunpack.c.h.b16 %v1656
    %v3044 = vunpack.c.l.b16 %v1657
    %v3045 = vunpack.c.h.b16 %v1657
    %v3046 = vunpack.c.l.b16 %v1658
    %v3047 = vunpack.c.h.b16 %v1658
    %v3048 = vunpack.c.l.b16 %v1659
    %v3049 = vunpack.c.h.b16 %v1659
    %v3050 = vunpack.c.l.b16 %v1660
    %v3051 = vunpack.c.h.b16 %v1660
    %v3052 = vunpack.c.l.b16 %v1661
    %v3053 = vunpack.c.h.b16 %v1661
    %v3054 = vunpack.c.l.b16 %v1662
    %v3055 = vunpack.c.h.b16 %v1662
    %v3056 = vunpack.c.l.b16 %v1663
    %v3057 = vunpack.c.h.b16 %v1663
    %v3058 = vunpack.c.l.b16 %v1664
    %v3059 = vunpack.c.h.b16 %v1664
    %v3060 = vunpack.c.l.b16 %v1665
    %v3061 = vunpack.c.h.b16 %v1665
    %v3062 = vunpack.c.l.b16 %v1666
    %v3063 = vunpack.c.h.b16 %v1666
    %v3064 = vunpack.c.l.b16 %v1667
    %v3065 = vunpack.c.h.b16 %v1667
    %v3066 = vunpack.c.l.b16 %v1668
    %v3067 = vunpack.c.h.b16 %v1668
    %v3068 = vunpack.c.l.b16 %v1669
    %v3069 = vunpack.c.h.b16 %v1669
    %v3070 = vunpack.c.l.b16 %v1670
    %v3071 = vunpack.c.h.b16 %v1670
    %v3072 = vunpack.c.l.b16 %v1671
    %v3073 = vunpack.c.h.b16 %v1671
    %v3074 = vunpack.c.l.b16 %v1672
    %v3075 = vunpack.c.h.b16 %v1672
    %v3076 = vunpack.c.l.b16 %v1673
    %v3077 = vunpack.c.h.b16 %v1673
    %v3078 = vunpack.c.l.b16 %v1674
    %v3079 = vunpack.c.h.b16 %v1674
    %v3080 = vunpack.c.l.b16 %v1675
    %v3081 = vunpack.c.h.b16 %v1675
    %v3082 = vunpack.c.l.b16 %v1676
    %v3083 = vunpack.c.h.b16 %v1676
    %v3084 = vunpack.c.l.b16 %v1677
    %v3085 = vunpack.c.h.b16 %v1677
    %v3086 = vunpack.c.l.b16 %v1678
    %v3087 = vunpack.c.h.b16 %v1678
    %v3088 = vunpack.c.l.b16 %v1679
    %v3089 = vunpack.c.h.b16 %v1679
    %v3090 = vunpack.c.l.b16 %v1680
    %v3091 = vunpack.c.h.b16 %v1680
    %v3092 = vunpack.c.l.b16 %v1681
    %v3093 = vunpack.c.h.b16 %v1681
    %v3094 = vunpack.c.l.b16 %v1682
    %v3095 = vunpack.c.h.b16 %v1682
    %v3096 = vunpack.c.l.b16 %v1683
    %v3097 = vunpack.c.h.b16 %v1683
    %v3098 = vunpack.c.l.b16 %v1684
    %v3099 = vunpack.c.h.b16 %v1684
    %v3100 = vunpack.c.l.b16 %v1685
    %v3101 = vunpack.c.h.b16 %v1685
    %v3102 = vunpack.c.l.b16 %v1686
    %v3103 = vunpack.c.h.b16 %v1686
    %v3104 = vunpack.c.l.b16 %v1687
    %v3105 = vunpack.c.h.b16 %v1687
    %v3106 = vunpack.c.l.b16 %v1688
    %v3107 = vunpack.c.h.b16 %v1688
    %v3108 = vunpack.c.l.b16 %v1689
    %v3109 = vunpack.c.h.b16 %v1689
    %v3110 = vunpack.c.l.b16 %v1690
    %v3111 = vunpack.c.h.b16 %v1690
    %v3112 = vunpack.c.l.b16 %v1691
    %v3113 = vunpack.c.h.b16 %v1691
    %v3114 = vunpack.c.l.b16 %v1692
    %v3115 = vunpack.c.h.b16 %v1692
    %v3116 = vunpack.c.l.b16 %v1693
    %v3117 = vunpack.c.h.b16 %v1693
    %v3118 = vunpack.c.l.b16 %v1694
    %v3119 = vunpack.c.h.b16 %v1694
    %v3120 = vunpack.c.l.b16 %v1695
    %v3121 = vunpack.c.h.b16 %v1695
    %v3122 = vunpack.c.l.b16 %v1696
    %v3123 = vunpack.c.h.b16 %v1696
    %v3124 = vunpack.c.l.b16 %v1697
    %v3125 = vunpack.c.h.b16 %v1697
    %v3126 = vunpack.c.l.b16 %v1698
    %v3127 = vunpack.c.h.b16 %v1698
    %v3128 = vunpack.c.l.b16 %v1699
    %v3129 = vunpack.c.h.b16 %v1699
    %v3130 = vunpack.c.l.b16 %v1700
    %v3131 = vunpack.c.h.b16 %v1700
    %v3132 = vunpack.c.l.b16 %v1701
    %v3133 = vunpack.c.h.b16 %v1701
    %v3134 = vunpack.c.l.b16 %v1702
    %v3135 = vunpack.c.h.b16 %v1702
    %v3136 = vunpack.c.l.b16 %v1703
    %v3137 = vunpack.c.h.b16 %v1703
    %v3138 = vunpack.c.l.b16 %v1704
    %v3139 = vunpack.c.h.b16 %v1704
    %v3140 = vunpack.c.l.b16 %v1705
    %v3141 = vunpack.c.h.b16 %v1705
    %v3142 = vunpack.c.l.b16 %v1706
    %v3143 = vunpack.c.h.b16 %v1706
    %v3144 = vunpack.c.l.b16 %v1707
    %v3145 = vunpack.c.h.b16 %v1707
    %v3146 = vunpack.c.l.b16 %v1708
    %v3147 = vunpack.c.h.b16 %v1708
    %v3148 = vunpack.c.l.b16 %v1709
    %v3149 = vunpack.c.h.b16 %v1709
    %v3150 = vunpack.c.l.b16 %v1710
    %v3151 = vunpack.c.h.b16 %v1710
    %v3152 = vunpack.c.l.b16 %v1711
    %v3153 = vunpack.c.h.b16 %v1711
    %v3154 = vunpack.c.l.b16 %v1712
    %v3155 = vunpack.c.h.b16 %v1712
    %v3156 = vunpack.c.l.b16 %v1713
    %v3157 = vunpack.c.h.b16 %v1713
    %v3158 = vunpack.c.l.b16 %v1714
    %v3159 = vunpack.c.h.b16 %v1714
    %v3160 = vunpack.c.l.b16 %v1715
    %v3161 = vunpack.c.h.b16 %v1715
    %v3162 = vunpack.c.l.b16 %v1716
    %v3163 = vunpack.c.h.b16 %v1716
    %v3164 = vunpack.c.l.b16 %v1717
    %v3165 = vunpack.c.h.b16 %v1717
    %v3166 = vunpack.c.l.b16 %v1718
    %v3167 = vunpack.c.h.b16 %v1718
    %v3168 = vunpack.c.l.b16 %v1719
    %v3169 = vunpack.c.h.b16 %v1719
    %v3170 = vunpack.c.l.b16 %v1720
    %v3171 = vunpack.c.h.b16 %v1720
    %v3172 = vunpack.c.l.b16 %v1721
    %v3173 = vunpack.c.h.b16 %v1721
    %v3174 = vunpack.c.l.b16 %v1722
    %v3175 = vunpack.c.h.b16 %v1722
    %v3176 = vunpack.c.l.b16 %v1723
    %v3177 = vunpack.c.h.b16 %v1723
    %v3178 = vunpack.c.l.b16 %v1724
    %v3179 = vunpack.c.h.b16 %v1724
    %v3180 = vunpack.c.l.b16 %v1725
    %v3181 = vunpack.c.h.b16 %v1725
    %v3182 = vunpack.c.l.b16 %v1726
    %v3183 = vunpack.c.h.b16 %v1726
    %v3184 = vunpack.c.l.b16 %v1727
    %v3185 = vunpack.c.h.b16 %v1727
    %v3186 = vunpack.c.l.b16 %v1728
    %v3187 = vunpack.c.h.b16 %v1728
    %v3188 = vunpack.c.l.b16 %v1729
    %v3189 = vunpack.c.h.b16 %v1729
    %v3190 = vunpack.c.l.b16 %v1730
    %v3191 = vunpack.c.h.b16 %v1730
    %v3192 = vunpack.c.l.b16 %v1731
    %v3193 = vunpack.c.h.b16 %v1731
    %v3194 = vunpack.c.l.b16 %v1732
    %v3195 = vunpack.c.h.b16 %v1732
    %v3196 = vunpack.c.l.b16 %v1733
    %v3197 = vunpack.c.h.b16 %v1733
    %v3198 = vunpack.c.l.b16 %v1734
    %v3199 = vunpack.c.h.b16 %v1734
    %v3200 = vunpack.c.l.b16 %v1735
    %v3201 = vunpack.c.h.b16 %v1735
    %v3202 = vunpack.c.l.b16 %v1736
    %v3203 = vunpack.c.h.b16 %v1736
    %v3204 = vunpack.c.l.b16 %v1737
    %v3205 = vunpack.c.h.b16 %v1737
    %v3206 = vunpack.c.l.b16 %v1738
    %v3207 = vunpack.c.h.b16 %v1738
    %v3208 = vunpack.c.l.b16 %v1739
    %v3209 = vunpack.c.h.b16 %v1739
    %v3210 = vunpack.c.l.b16 %v1740
    %v3211 = vunpack.c.h.b16 %v1740
    %v3212 = vunpack.c.l.b16 %v1741
    %v3213 = vunpack.c.h.b16 %v1741
    %v3214 = vunpack.c.l.b16 %v1742
    %v3215 = vunpack.c.h.b16 %v1742
    %v3216 = vunpack.c.l.b16 %v1743
    %v3217 = vunpack.c.h.b16 %v1743
    %v3218 = vunpack.c.l.b16 %v1744
    %v3219 = vunpack.c.h.b16 %v1744
    %v3220 = vunpack.c.l.b16 %v1745
    %v3221 = vunpack.c.h.b16 %v1745
    %v3222 = vunpack.c.l.b16 %v1746
    %v3223 = vunpack.c.h.b16 %v1746
    %v3224 = vunpack.c.l.b16 %v1747
    %v3225 = vunpack.c.h.b16 %v1747
    %v3226 = vunpack.c.l.b16 %v1748
    %v3227 = vunpack.c.h.b16 %v1748
    %v3228 = vunpack.c.l.b16 %v1749
    %v3229 = vunpack.c.h.b16 %v1749
    %v3230 = vunpack.c.l.b16 %v1750
    %v3231 = vunpack.c.h.b16 %v1750
    %v3232 = vunpack.c.l.b16 %v1751
    %v3233 = vunpack.c.h.b16 %v1751
    %v3234 = vunpack.c.l.b16 %v1752
    %v3235 = vunpack.c.h.b16 %v1752
    %v3236 = vunpack.c.l.b16 %v1753
    %v3237 = vunpack.c.h.b16 %v1753
    %v3238 = vunpack.c.l.b16 %v1754
    %v3239 = vunpack.c.h.b16 %v1754
    %v3240 = vunpack.c.l.b16 %v1755
    %v3241 = vunpack.c.h.b16 %v1755
    %v3242 = vunpack.c.l.b16 %v1756
    %v3243 = vunpack.c.h.b16 %v1756
    %v3244 = vunpack.c.l.b16 %v1757
    %v3245 = vunpack.c.h.b16 %v1757
    %v3246 = vunpack.c.l.b16 %v1758
    %v3247 = vunpack.c.h.b16 %v1758
    %v3248 = vunpack.c.l.b16 %v1759
    %v3249 = vunpack.c.h.b16 %v1759
    %v3250 = vunpack.c.l.b16 %v1760
    %v3251 = vunpack.c.h.b16 %v1760
    %v3252 = vunpack.c.l.b16 %v1761
    %v3253 = vunpack.c.h.b16 %v1761
    %v3254 = vunpack.c.l.b16 %v1762
    %v3255 = vunpack.c.h.b16 %v1762
    %v3256 = vunpack.c.l.b16 %v1763
    %v3257 = vunpack.c.h.b16 %v1763
    %v3258 = vunpack.c.l.b16 %v1764
    %v3259 = vunpack.c.h.b16 %v1764
    %v3260 = vunpack.c.l.b16 %v1765
    %v3261 = vunpack.c.h.b16 %v1765
    %v3262 = vunpack.c.l.b16 %v1766
    %v3263 = vunpack.c.h.b16 %v1766
    %v3264 = vunpack.c.l.b16 %v1767
    %v3265 = vunpack.c.h.b16 %v1767
    %v3266 = vunpack.c.l.b16 %v1768
    %v3267 = vunpack.c.h.b16 %v1768
    %v3268 = vunpack.c.l.b16 %v1769
    %v3269 = vunpack.c.h.b16 %v1769
    %v3270 = vunpack.c.l.b16 %v1770
    %v3271 = vunpack.c.h.b16 %v1770
    %v3272 = vunpack.c.l.b16 %v1771
    %v3273 = vunpack.c.h.b16 %v1771
    %v3274 = vunpack.c.l.b16 %v1772
    %v3275 = vunpack.c.h.b16 %v1772
    %v3276 = vunpack.c.l.b16 %v1773
    %v3277 = vunpack.c.h.b16 %v1773
    %v3278 = vunpack.c.l.b16 %v1774
    %v3279 = vunpack.c.h.b16 %v1774
    %v3280 = vunpack.c.l.b16 %v1775
    %v3281 = vunpack.c.h.b16 %v1775
    %v3282 = vunpack.c.l.b16 %v1776
    %v3283 = vunpack.c.h.b16 %v1776
    %v3284 = vunpack.c.l.b16 %v1777
    %v3285 = vunpack.c.h.b16 %v1777
    %v3286 = vunpack.c.l.b16 %v1778
    %v3287 = vunpack.c.h.b16 %v1778
    %v3288 = vunpack.c.l.b16 %v1779
    %v3289 = vunpack.c.h.b16 %v1779
    %v3290 = vunpack.c.l.b16 %v1780
    %v3291 = vunpack.c.h.b16 %v1780
    %v3292 = vunpack.c.l.b16 %v1781
    %v3293 = vunpack.c.h.b16 %v1781
    %v3294 = vunpack.c.l.b16 %v1782
    %v3295 = vunpack.c.h.b16 %v1782
    %v3296 = vunpack.c.l.b16 %v1783
    %v3297 = vunpack.c.h.b16 %v1783
    %v3298 = vunpack.c.l.b16 %v1784
    %v3299 = vunpack.c.h.b16 %v1784
    %v3300 = vunpack.c.l.b16 %v1785
    %v3301 = vunpack.c.h.b16 %v1785
    %v3302 = vunpack.c.l.b16 %v1786
    %v3303 = vunpack.c.h.b16 %v1786
    %v3304 = vunpack.c.l.b16 %v1787
    %v3305 = vunpack.c.h.b16 %v1787
    %v3306 = vunpack.c.l.b16 %v1788
    %v3307 = vunpack.c.h.b16 %v1788
    %v3308 = vunpack.c.l.b16 %v1789
    %v3309 = vunpack.c.h.b16 %v1789
    %v3310 = vunpack.c.l.b16 %v1790
    %v3311 = vunpack.c.h.b16 %v1790
    %v3312 = vunpack.c.l.b16 %v1791
    %v3313 = vunpack.c.h.b16 %v1791
    %v3314 = vunpack.c.l.b16 %v1792
    %v3315 = vunpack.c.h.b16 %v1792
    %v3316 = vunpack.c.l.b16 %v1793
    %v3317 = vunpack.c.h.b16 %v1793
    %v3318 = vunpack.c.l.b16 %v1794
    %v3319 = vunpack.c.h.b16 %v1794
    %v3320 = vunpack.c.l.b16 %v1795
    %v3321 = vunpack.c.h.b16 %v1795
    %v3322 = vunpack.c.l.b16 %v1796
    %v3323 = vunpack.c.h.b16 %v1796
    %v3324 = vunpack.c.l.b16 %v1797
    %v3325 = vunpack.c.h.b16 %v1797
    %v3326 = vunpack.c.l.b16 %v1798
    %v3327 = vunpack.c.h.b16 %v1798
    %v3328 = vunpack.c.l.b16 %v1799
    %v3329 = vunpack.c.h.b16 %v1799
    %v3330 = vunpack.c.l.b16 %v1800
    %v3331 = vunpack.c.h.b16 %v1800
    %v3332 = vunpack.c.l.b16 %v1801
    %v3333 = vunpack.c.h.b16 %v1801
    %v3334 = vunpack.c.l.b16 %v1802
    %v3335 = vunpack.c.h.b16 %v1802
    %v3336 = vunpack.c.l.b16 %v1803
    %v3337 = vunpack.c.h.b16 %v1803
    %v3338 = vunpack.c.l.b16 %v1804
    %v3339 = vunpack.c.h.b16 %v1804
    %v3340 = vunpack.c.l.b16 %v1805
    %v3341 = vunpack.c.h.b16 %v1805
    %v3342 = vunpack.c.l.b16 %v1806
    %v3343 = vunpack.c.h.b16 %v1806
    %v3344 = vunpack.c.l.b16 %v1807
    %v3345 = vunpack.c.h.b16 %v1807
    %v3346 = vunpack.c.l.b16 %v1808
    %v3347 = vunpack.c.h.b16 %v1808
    %v3348 = vunpack.c.l.b16 %v1809
    %v3349 = vunpack.c.h.b16 %v1809
    %v3350 = vunpack.c.l.b16 %v1810
    %v3351 = vunpack.c.h.b16 %v1810
    %v3352 = vunpack.c.l.b16 %v1811
    %v3353 = vunpack.c.h.b16 %v1811
    %v3354 = vunpack.c.l.b16 %v1812
    %v3355 = vunpack.c.h.b16 %v1812
    %v3356 = vunpack.c.l.b16 %v1813
    %v3357 = vunpack.c.h.b16 %v1813
    %v3358 = vunpack.c.l.b16 %v1814
    %v3359 = vunpack.c.h.b16 %v1814
    %v3360 = vunpack.c.l.b16 %v1815
    %v3361 = vunpack.c.h.b16 %v1815
    %v3362 = vunpack.c.l.b16 %v1816
    %v3363 = vunpack.c.h.b16 %v1816
    %v3364 = vunpack.c.l.b16 %v1817
    %v3365 = vunpack.c.h.b16 %v1817
    %v3366 = vpack.c.b16 %v2344, %v2342
    %v3367 = vpack.c.b16 %v2345, %v2343
    %v3368 = vpack.c.b16 %v2348, %v2346
    %v3369 = vpack.c.b16 %v2349, %v2347
    %v3370 = vpack.c.b16 %v2352, %v2350
    %v3371 = vpack.c.b16 %v2353, %v2351
    %v3372 = vpack.c.b16 %v2356, %v2354
    %v3373 = vpack.c.b16 %v2357, %v2355
    %v3374 = vpack.c.b16 %v2360, %v2358
    %v3375 = vpack.c.b16 %v2361, %v2359
    %v3376 = vpack.c.b16 %v2364, %v2362
    %v3377 = vpack.c.b16 %v2365, %v2363
    %v3378 = vpack.c.b16 %v2368, %v2366
    %v3379 = vpack.c.b16 %v2369, %v2367
    %v3380 = vpack.c.b16 %v2372, %v2370
    %v3381 = vpack.c.b16 %v2373, %v2371
    %v3382 = vpack.c.b16 %v2376, %v2374
    %v3383 = vpack.c.b16 %v2377, %v2375
    %v3384 = vpack.c.b16 %v2380, %v2378
    %v3385 = vpack.c.b16 %v2381, %v2379
    %v3386 = vpack.c.b16 %v2384, %v2382
    %v3387 = vpack.c.b16 %v2385, %v2383
    %v3388 = vpack.c.b16 %v2388, %v2386
    %v3389 = vpack.c.b16 %v2389, %v2387
    %v3390 = vpack.c.b16 %v2392, %v2390
    %v3391 = vpack.c.b16 %v2393, %v2391
    %v3392 = vpack.c.b16 %v2396, %v2394
    %v3393 = vpack.c.b16 %v2397, %v2395
    %v3394 = vpack.c.b16 %v2400, %v2398
    %v3395 = vpack.c.b16 %v2401, %v2399
    %v3396 = vpack.c.b16 %v2404, %v2402
    %v3397 = vpack.c.b16 %v2405, %v2403
    %v3398 = vpack.c.b16 %v2408, %v2406
    %v3399 = vpack.c.b16 %v2409, %v2407
    %v3400 = vpack.c.b16 %v2412, %v2410
    %v3401 = vpack.c.b16 %v2413, %v2411
    %v3402 = vpack.c.b16 %v2416, %v2414
    %v3403 = vpack.c.b16 %v2417, %v2415
    %v3404 = vpack.c.b16 %v2420, %v2418
    %v3405 = vpack.c.b16 %v2421, %v2419
    %v3406 = vpack.c.b16 %v2424, %v2422
    %v3407 = vpack.c.b16 %v2425, %v2423
    %v3408 = vpack.c.b16 %v2428, %v2426
    %v3409 = vpack.c.b16 %v2429, %v2427
    %v3410 = vpack.c.b16 %v2432, %v2430
    %v3411 = vpack.c.b16 %v2433, %v2431
    %v3412 = vpack.c.b16 %v2436, %v2434
    %v3413 = vpack.c.b16 %v2437, %v2435
    %v3414 = vpack.c.b16 %v2440, %v2438
    %v3415 = vpack.c.b16 %v2441, %v2439
    %v3416 = vpack.c.b16 %v2444, %v2442
    %v3417 = vpack.c.b16 %v2445, %v2443
    %v3418 = vpack.c.b16 %v2448, %v2446
    %v3419 = vpack.c.b16 %v2449, %v2447
    %v3420 = vpack.c.b16 %v2452, %v2450
    %v3421 = vpack.c.b16 %v2453, %v2451
    %v3422 = vpack.c.b16 %v2456, %v2454
    %v3423 = vpack.c.b16 %v2457, %v2455
    %v3424 = vpack.c.b16 %v2460, %v2458
    %v3425 = vpack.c.b16 %v2461, %v2459
    %v3426 = vpack.c.b16 %v2464, %v2462
    %v3427 = vpack.c.b16 %v2465, %v2463
    %v3428 = vpack.c.b16 %v2468, %v2466
    %v3429 = vpack.c.b16 %v2469, %v2467
    %v3430 = vpack.c.b16 %v2472, %v2470
    %v3431 = vpack.c.b16 %v2473, %v2471
    %v3432 = vpack.c.b16 %v2476, %v2474
    %v3433 = vpack.c.b16 %v2477, %v2475
    %v3434 = vpack.c.b16 %v2480, %v2478
    %v3435 = vpack.c.b16 %v2481, %v2479
    %v3436 = vpack.c.b16 %v2484, %v2482
    %v3437 = vpack.c.b16 %v2485, %v2483
    %v3438 = vpack.c.b16 %v2488, %v2486
    %v3439 = vpack.c.b16 %v2489, %v2487
    %v3440 = vpack.c.b16 %v2492, %v2490
    %v3441 = vpack.c.b16 %v2493, %v2491
    %v3442 = vpack.c.b16 %v2496, %v2494
    %v3443 = vpack.c.b16 %v2497, %v2495
    %v3444 = vpack.c.b16 %v2500, %v2498
    %v3445 = vpack.c.b16 %v2501, %v2499
    %v3446 = vpack.c.b16 %v2504, %v2502
    %v3447 = vpack.c.b16 %v2505, %v2503
    %v3448 = vpack.c.b16 %v2508, %v2506
    %v3449 = vpack.c.b16 %v2509, %v2507
    %v3450 = vpack.c.b16 %v2512, %v2510
    %v3451 = vpack.c.b16 %v2513, %v2511
    %v3452 = vpack.c.b16 %v2516, %v2514
    %v3453 = vpack.c.b16 %v2517, %v2515
    %v3454 = vpack.c.b16 %v2520, %v2518
    %v3455 = vpack.c.b16 %v2521, %v2519
    %v3456 = vpack.c.b16 %v2524, %v2522
    %v3457 = vpack.c.b16 %v2525, %v2523
    %v3458 = vpack.c.b16 %v2528, %v2526
    %v3459 = vpack.c.b16 %v2529, %v2527
    %v3460 = vpack.c.b16 %v2532, %v2530
    %v3461 = vpack.c.b16 %v2533, %v2531
    %v3462 = vpack.c.b16 %v2536, %v2534
    %v3463 = vpack.c.b16 %v2537, %v2535
    %v3464 = vpack.c.b16 %v2540, %v2538
    %v3465 = vpack.c.b16 %v2541, %v2539
    %v3466 = vpack.c.b16 %v2544, %v2542
    %v3467 = vpack.c.b16 %v2545, %v2543
    %v3468 = vpack.c.b16 %v2548, %v2546
    %v3469 = vpack.c.b16 %v2549, %v2547
    %v3470 = vpack.c.b16 %v2552, %v2550
    %v3471 = vpack.c.b16 %v2553, %v2551
    %v3472 = vpack.c.b16 %v2556, %v2554
    %v3473 = vpack.c.b16 %v2557, %v2555
    %v3474 = vpack.c.b16 %v2560, %v2558
    %v3475 = vpack.c.b16 %v2561, %v2559
    %v3476 = vpack.c.b16 %v2564, %v2562
    %v3477 = vpack.c.b16 %v2565, %v2563
    %v3478 = vpack.c.b16 %v2568, %v2566
    %v3479 = vpack.c.b16 %v2569, %v2567
    %v3480 = vpack.c.b16 %v2572, %v2570
    %v3481 = vpack.c.b16 %v2573, %v2571
    %v3482 = vpack.c.b16 %v2576, %v2574
    %v3483 = vpack.c.b16 %v2577, %v2575
    %v3484 = vpack.c.b16 %v2580, %v2578
    %v3485 = vpack.c.b16 %v2581, %v2579
    %v3486 = vpack.c.b16 %v2584, %v2582
    %v3487 = vpack.c.b16 %v2585, %v2583
    %v3488 = vpack.c.b16 %v2588, %v2586
    %v3489 = vpack.c.b16 %v2589, %v2587
    %v3490 = vpack.c.b16 %v2592, %v2590
    %v3491 = vpack.c.b16 %v2593, %v2591
    %v3492 = vpack.c.b16 %v2596, %v2594
    %v3493 = vpack.c.b16 %v2597, %v2595
    %v3494 = vpack.c.b16 %v2600, %v2598
    %v3495 = vpack.c.b16 %v2601, %v2599
    %v3496 = vpack.c.b16 %v2604, %v2602
    %v3497 = vpack.c.b16 %v2605, %v2603
    %v3498 = vpack.c.b16 %v2608, %v2606
    %v3499 = vpack.c.b16 %v2609, %v2607
    %v3500 = vpack.c.b16 %v2612, %v2610
    %v3501 = vpack.c.b16 %v2613, %v2611
    %v3502 = vpack.c.b16 %v2616, %v2614
    %v3503 = vpack.c.b16 %v2617, %v2615
    %v3504 = vpack.c.b16 %v2620, %v2618
    %v3505 = vpack.c.b16 %v2621, %v2619
    %v3506 = vpack.c.b16 %v2624, %v2622
    %v3507 = vpack.c.b16 %v2625, %v2623
    %v3508 = vpack.c.b16 %v2628, %v2626
    %v3509 = vpack.c.b16 %v2629, %v2627
    %v3510 = vpack.c.b16 %v2632, %v2630
    %v3511 = vpack.c.b16 %v2633, %v2631
    %v3512 = vpack.c.b16 %v2636, %v2634
    %v3513 = vpack.c.b16 %v2637, %v2635
    %v3514 = vpack.c.b16 %v2640, %v2638
    %v3515 = vpack.c.b16 %v2641, %v2639
    %v3516 = vpack.c.b16 %v2644, %v2642
    %v3517 = vpack.c.b16 %v2645, %v2643
    %v3518 = vpack.c.b16 %v2648, %v2646
    %v3519 = vpack.c.b16 %v2649, %v2647
    %v3520 = vpack.c.b16 %v2652, %v2650
    %v3521 = vpack.c.b16 %v2653, %v2651
    %v3522 = vpack.c.b16 %v2656, %v2654
    %v3523 = vpack.c.b16 %v2657, %v2655
    %v3524 = vpack.c.b16 %v2660, %v2658
    %v3525 = vpack.c.b16 %v2661, %v2659
    %v3526 = vpack.c.b16 %v2664, %v2662
    %v3527 = vpack.c.b16 %v2665, %v2663
    %v3528 = vpack.c.b16 %v2668, %v2666
    %v3529 = vpack.c.b16 %v2669, %v2667
    %v3530 = vpack.c.b16 %v2672, %v2670
    %v3531 = vpack.c.b16 %v2673, %v2671
    %v3532 = vpack.c.b16 %v2676, %v2674
    %v3533 = vpack.c.b16 %v2677, %v2675
    %v3534 = vpack.c.b16 %v2680, %v2678
    %v3535 = vpack.c.b16 %v2681, %v2679
    %v3536 = vpack.c.b16 %v2684, %v2682
    %v3537 = vpack.c.b16 %v2685, %v2683
    %v3538 = vpack.c.b16 %v2688, %v2686
    %v3539 = vpack.c.b16 %v2689, %v2687
    %v3540 = vpack.c.b16 %v2692, %v2690
    %v3541 = vpack.c.b16 %v2693, %v2691
    %v3542 = vpack.c.b16 %v2696, %v2694
    %v3543 = vpack.c.b16 %v2697, %v2695
    %v3544 = vpack.c.b16 %v2700, %v2698
    %v3545 = vpack.c.b16 %v2701, %v2699
    %v3546 = vpack.c.b16 %v2704, %v2702
    %v3547 = vpack.c.b16 %v2705, %v2703
    %v3548 = vpack.c.b16 %v2708, %v2706
    %v3549 = vpack.c.b16 %v2709, %v2707
    %v3550 = vpack.c.b16 %v2712, %v2710
    %v3551 = vpack.c.b16 %v2713, %v2711
    %v3552 = vpack.c.b16 %v2716, %v2714
    %v3553 = vpack.c.b16 %v2717, %v2715
    %v3554 = vpack.c.b16 %v2720, %v2718
    %v3555 = vpack.c.b16 %v2721, %v2719
    %v3556 = vpack.c.b16 %v2724, %v2722
    %v3557 = vpack.c.b16 %v2725, %v2723
    %v3558 = vpack.c.b16 %v2728, %v2726
    %v3559 = vpack.c.b16 %v2729, %v2727
    %v3560 = vpack.c.b16 %v2732, %v2730
    %v3561 = vpack.c.b16 %v2733, %v2731
    %v3562 = vpack.c.b16 %v2736, %v2734
    %v3563 = vpack.c.b16 %v2737, %v2735
    %v3564 = vpack.c.b16 %v2740, %v2738
    %v3565 = vpack.c.b16 %v2741, %v2739
    %v3566 = vpack.c.b16 %v2744, %v2742
    %v3567 = vpack.c.b16 %v2745, %v2743
    %v3568 = vpack.c.b16 %v2748, %v2746
    %v3569 = vpack.c.b16 %v2749, %v2747
    %v3570 = vpack.c.b16 %v2752, %v2750
    %v3571 = vpack.c.b16 %v2753, %v2751
    %v3572 = vpack.c.b16 %v2756, %v2754
    %v3573 = vpack.c.b16 %v2757, %v2755
    %v3574 = vpack.c.b16 %v2760, %v2758
    %v3575 = vpack.c.b16 %v2761, %v2759
    %v3576 = vpack.c.b16 %v2764, %v2762
    %v3577 = vpack.c.b16 %v2765, %v2763
    %v3578 = vpack.c.b16 %v2768, %v2766
    %v3579 = vpack.c.b16 %v2769, %v2767
    %v3580 = vpack.c.b16 %v2772, %v2770
    %v3581 = vpack.c.b16 %v2773, %v2771
    %v3582 = vpack.c.b16 %v2776, %v2774
    %v3583 = vpack.c.b16 %v2777, %v2775
    %v3584 = vpack.c.b16 %v2780, %v2778
    %v3585 = vpack.c.b16 %v2781, %v2779
    %v3586 = vpack.c.b16 %v2784, %v2782
    %v3587 = vpack.c.b16 %v2785, %v2783
    %v3588 = vpack.c.b16 %v2788, %v2786
    %v3589 = vpack.c.b16 %v2789, %v2787
    %v3590 = vpack.c.b16 %v2792, %v2790
    %v3591 = vpack.c.b16 %v2793, %v2791
    %v3592 = vpack.c.b16 %v2796, %v2794
    %v3593 = vpack.c.b16 %v2797, %v2795
    %v3594 = vpack.c.b16 %v2800, %v2798
    %v3595 = vpack.c.b16 %v2801, %v2799
    %v3596 = vpack.c.b16 %v2804, %v2802
    %v3597 = vpack.c.b16 %v2805, %v2803
    %v3598 = vpack.c.b16 %v2808, %v2806
    %v3599 = vpack.c.b16 %v2809, %v2807
    %v3600 = vpack.c.b16 %v2812, %v2810
    %v3601 = vpack.c.b16 %v2813, %v2811
    %v3602 = vpack.c.b16 %v2816, %v2814
    %v3603 = vpack.c.b16 %v2817, %v2815
    %v3604 = vpack.c.b16 %v2820, %v2818
    %v3605 = vpack.c.b16 %v2821, %v2819
    %v3606 = vpack.c.b16 %v2824, %v2822
    %v3607 = vpack.c.b16 %v2825, %v2823
    %v3608 = vpack.c.b16 %v2828, %v2826
    %v3609 = vpack.c.b16 %v2829, %v2827
    %v3610 = vpack.c.b16 %v2832, %v2830
    %v3611 = vpack.c.b16 %v2833, %v2831
    %v3612 = vpack.c.b16 %v2836, %v2834
    %v3613 = vpack.c.b16 %v2837, %v2835
    %v3614 = vpack.c.b16 %v2840, %v2838
    %v3615 = vpack.c.b16 %v2841, %v2839
    %v3616 = vpack.c.b16 %v2844, %v2842
    %v3617 = vpack.c.b16 %v2845, %v2843
    %v3618 = vpack.c.b16 %v2848, %v2846
    %v3619 = vpack.c.b16 %v2849, %v2847
    %v3620 = vpack.c.b16 %v2852, %v2850
    %v3621 = vpack.c.b16 %v2853, %v2851
    %v3622 = vpack.c.b16 %v2856, %v2854
    %v3623 = vpack.c.b16 %v2857, %v2855
    %v3624 = vpack.c.b16 %v2860, %v2858
    %v3625 = vpack.c.b16 %v2861, %v2859
    %v3626 = vpack.c.b16 %v2864, %v2862
    %v3627 = vpack.c.b16 %v2865, %v2863
    %v3628 = vpack.c.b16 %v2868, %v2866
    %v3629 = vpack.c.b16 %v2869, %v2867
    %v3630 = vpack.c.b16 %v2872, %v2870
    %v3631 = vpack.c.b16 %v2873, %v2871
    %v3632 = vpack.c.b16 %v2876, %v2874
    %v3633 = vpack.c.b16 %v2877, %v2875
    %v3634 = vpack.c.b16 %v2880, %v2878
    %v3635 = vpack.c.b16 %v2881, %v2879
    %v3636 = vpack.c.b16 %v2884, %v2882
    %v3637 = vpack.c.b16 %v2885, %v2883
    %v3638 = vpack.c.b16 %v2888, %v2886
    %v3639 = vpack.c.b16 %v2889, %v2887
    %v3640 = vpack.c.b16 %v2892, %v2890
    %v3641 = vpack.c.b16 %v2893, %v2891
    %v3642 = vpack.c.b16 %v2896, %v2894
    %v3643 = vpack.c.b16 %v2897, %v2895
    %v3644 = vpack.c.b16 %v2900, %v2898
    %v3645 = vpack.c.b16 %v2901, %v2899
    %v3646 = vpack.c.b16 %v2904, %v2902
    %v3647 = vpack.c.b16 %v2905, %v2903
    %v3648 = vpack.c.b16 %v2908, %v2906
    %v3649 = vpack.c.b16 %v2909, %v2907
    %v3650 = vpack.c.b16 %v2912, %v2910
    %v3651 = vpack.c.b16 %v2913, %v2911
    %v3652 = vpack.c.b16 %v2916, %v2914
    %v3653 = vpack.c.b16 %v2917, %v2915
    %v3654 = vpack.c.b16 %v2920, %v2918
    %v3655 = vpack.c.b16 %v2921, %v2919
    %v3656 = vpack.c.b16 %v2924, %v2922
    %v3657 = vpack.c.b16 %v2925, %v2923
    %v3658 = vpack.c.b16 %v2928, %v2926
    %v3659 = vpack.c.b16 %v2929, %v2927
    %v3660 = vpack.c.b16 %v2932, %v2930
    %v3661 = vpack.c.b16 %v2933, %v2931
    %v3662 = vpack.c.b16 %v2936, %v2934
    %v3663 = vpack.c.b16 %v2937, %v2935
    %v3664 = vpack.c.b16 %v2940, %v2938
    %v3665 = vpack.c.b16 %v2941, %v2939
    %v3666 = vpack.c.b16 %v2944, %v2942
    %v3667 = vpack.c.b16 %v2945, %v2943
    %v3668 = vpack.c.b16 %v2948, %v2946
    %v3669 = vpack.c.b16 %v2949, %v2947
    %v3670 = vpack.c.b16 %v2952, %v2950
    %v3671 = vpack.c.b16 %v2953, %v2951
    %v3672 = vpack.c.b16 %v2956, %v2954
    %v3673 = vpack.c.b16 %v2957, %v2955
    %v3674 = vpack.c.b16 %v2960, %v2958
    %v3675 = vpack.c.b16 %v2961, %v2959
    %v3676 = vpack.c.b16 %v2964, %v2962
    %v3677 = vpack.c.b16 %v2965, %v2963
    %v3678 = vpack.c.b16 %v2968, %v2966
    %v3679 = vpack.c.b16 %v2969, %v2967
    %v3680 = vpack.c.b16 %v2972, %v2970
    %v3681 = vpack.c.b16 %v2973, %v2971
    %v3682 = vpack.c.b16 %v2976, %v2974
    %v3683 = vpack.c.b16 %v2977, %v2975
    %v3684 = vpack.c.b16 %v2980, %v2978
    %v3685 = vpack.c.b16 %v2981, %v2979
    %v3686 = vpack.c.b16 %v2984, %v2982
    %v3687 = vpack.c.b16 %v2985, %v2983
    %v3688 = vpack.c.b16 %v2988, %v2986
    %v3689 = vpack.c.b16 %v2989, %v2987
    %v3690 = vpack.c.b16 %v2992, %v2990
    %v3691 = vpack.c.b16 %v2993, %v2991
    %v3692 = vpack.c.b16 %v2996, %v2994
    %v3693 = vpack.c.b16 %v2997, %v2995
    %v3694 = vpack.c.b16 %v3000, %v2998
    %v3695 = vpack.c.b16 %v3001, %v2999
    %v3696 = vpack.c.b16 %v3004, %v3002
    %v3697 = vpack.c.b16 %v3005, %v3003
    %v3698 = vpack.c.b16 %v3008, %v3006
    %v3699 = vpack.c.b16 %v3009, %v3007
    %v3700 = vpack.c.b16 %v3012, %v3010
    %v3701 = vpack.c.b16 %v3013, %v3011
    %v3702 = vpack.c.b16 %v3016, %v3014
    %v3703 = vpack.c.b16 %v3017, %v3015
    %v3704 = vpack.c.b16 %v3020, %v3018
    %v3705 = vpack.c.b16 %v3021, %v3019
    %v3706 = vpack.c.b16 %v3024, %v3022
    %v3707 = vpack.c.b16 %v3025, %v3023
    %v3708 = vpack.c.b16 %v3028, %v3026
    %v3709 = vpack.c.b16 %v3029, %v3027
    %v3710 = vpack.c.b16 %v3032, %v3030
    %v3711 = vpack.c.b16 %v3033, %v3031
    %v3712 = vpack.c.b16 %v3036, %v3034
    %v3713 = vpack.c.b16 %v3037, %v3035
    %v3714 = vpack.c.b16 %v3040, %v3038
    %v3715 = vpack.c.b16 %v3041, %v3039
    %v3716 = vpack.c.b16 %v3044, %v3042
    %v3717 = vpack.c.b16 %v3045, %v3043
    %v3718 = vpack.c.b16 %v3048, %v3046
    %v3719 = vpack.c.b16 %v3049, %v3047
    %v3720 = vpack.c.b16 %v3052, %v3050
    %v3721 = vpack.c.b16 %v3053, %v3051
    %v3722 = vpack.c.b16 %v3056, %v3054
    %v3723 = vpack.c.b16 %v3057, %v3055
    %v3724 = vpack.c.b16 %v3060, %v3058
    %v3725 = vpack.c.b16 %v3061, %v3059
    %v3726 = vpack.c.b16 %v3064, %v3062
    %v3727 = vpack.c.b16 %v3065, %v3063
    %v3728 = vpack.c.b16 %v3068, %v3066
    %v3729 = vpack.c.b16 %v3069, %v3067
    %v3730 = vpack.c.b16 %v3072, %v3070
    %v3731 = vpack.c.b16 %v3073, %v3071
    %v3732 = vpack.c.b16 %v3076, %v3074
    %v3733 = vpack.c.b16 %v3077, %v3075
    %v3734 = vpack.c.b16 %v3080, %v3078
    %v3735 = vpack.c.b16 %v3081, %v3079
    %v3736 = vpack.c.b16 %v3084, %v3082
    %v3737 = vpack.c.b16 %v3085, %v3083
    %v3738 = vpack.c.b16 %v3088, %v3086
    %v3739 = vpack.c.b16 %v3089, %v3087
    %v3740 = vpack.c.b16 %v3092, %v3090
    %v3741 = vpack.c.b16 %v3093, %v3091
    %v3742 = vpack.c.b16 %v3096, %v3094
    %v3743 = vpack.c.b16 %v3097, %v3095
    %v3744 = vpack.c.b16 %v3100, %v3098
    %v3745 = vpack.c.b16 %v3101, %v3099
    %v3746 = vpack.c.b16 %v3104, %v3102
    %v3747 = vpack.c.b16 %v3105, %v3103
    %v3748 = vpack.c.b16 %v3108, %v3106
    %v3749 = vpack.c.b16 %v3109, %v3107
    %v3750 = vpack.c.b16 %v3112, %v3110
    %v3751 = vpack.c.b16 %v3113, %v3111
    %v3752 = vpack.c.b16 %v3116, %v3114
    %v3753 = vpack.c.b16 %v3117, %v3115
    %v3754 = vpack.c.b16 %v3120, %v3118
    %v3755 = vpack.c.b16 %v3121, %v3119
    %v3756 = vpack.c.b16 %v3124, %v3122
    %v3757 = vpack.c.b16 %v3125, %v3123
    %v3758 = vpack.c.b16 %v3128, %v3126
    %v3759 = vpack.c.b16 %v3129, %v3127
    %v3760 = vpack.c.b16 %v3132, %v3130
    %v3761 = vpack.c.b16 %v3133, %v3131
    %v3762 = vpack.c.b16 %v3136, %v3134
    %v3763 = vpack.c.b16 %v3137, %v3135
    %v3764 = vpack.c.b16 %v3140, %v3138
    %v3765 = vpack.c.b16 %v3141, %v3139
    %v3766 = vpack.c.b16 %v3144, %v3142
    %v3767 = vpack.c.b16 %v3145, %v3143
    %v3768 = vpack.c.b16 %v3148, %v3146
    %v3769 = vpack.c.b16 %v3149, %v3147
    %v3770 = vpack.c.b16 %v3152, %v3150
    %v3771 = vpack.c.b16 %v3153, %v3151
    %v3772 = vpack.c.b16 %v3156, %v3154
    %v3773 = vpack.c.b16 %v3157, %v3155
    %v3774 = vpack.c.b16 %v3160, %v3158
    %v3775 = vpack.c.b16 %v3161, %v3159
    %v3776 = vpack.c.b16 %v3164, %v3162
    %v3777 = vpack.c.b16 %v3165, %v3163
    %v3778 = vpack.c.b16 %v3168, %v3166
    %v3779 = vpack.c.b16 %v3169, %v3167
    %v3780 = vpack.c.b16 %v3172, %v3170
    %v3781 = vpack.c.b16 %v3173, %v3171
    %v3782 = vpack.c.b16 %v3176, %v3174
    %v3783 = vpack.c.b16 %v3177, %v3175
    %v3784 = vpack.c.b16 %v3180, %v3178
    %v3785 = vpack.c.b16 %v3181, %v3179
    %v3786 = vpack.c.b16 %v3184, %v3182
    %v3787 = vpack.c.b16 %v3185, %v3183
    %v3788 = vpack.c.b16 %v3188, %v3186
    %v3789 = vpack.c.b16 %v3189, %v3187
    %v3790 = vpack.c.b16 %v3192, %v3190
    %v3791 = vpack.c.b16 %v3193, %v3191
    %v3792 = vpack.c.b16 %v3196, %v3194
    %v3793 = vpack.c.b16 %v3197, %v3195
    %v3794 = vpack.c.b16 %v3200, %v3198
    %v3795 = vpack.c.b16 %v3201, %v3199
    %v3796 = vpack.c.b16 %v3204, %v3202
    %v3797 = vpack.c.b16 %v3205, %v3203
    %v3798 = vpack.c.b16 %v3208, %v3206
    %v3799 = vpack.c.b16 %v3209, %v3207
    %v3800 = vpack.c.b16 %v3212, %v3210
    %v3801 = vpack.c.b16 %v3213, %v3211
    %v3802 = vpack.c.b16 %v3216, %v3214
    %v3803 = vpack.c.b16 %v3217, %v3215
    %v3804 = vpack.c.b16 %v3220, %v3218
    %v3805 = vpack.c.b16 %v3221, %v3219
    %v3806 = vpack.c.b16 %v3224, %v3222
    %v3807 = vpack.c.b16 %v3225, %v3223
    %v3808 = vpack.c.b16 %v3228, %v3226
    %v3809 = vpack.c.b16 %v3229, %v3227
    %v3810 = vpack.c.b16 %v3232, %v3230
    %v3811 = vpack.c.b16 %v3233, %v3231
    %v3812 = vpack.c.b16 %v3236, %v3234
    %v3813 = vpack.c.b16 %v3237, %v3235
    %v3814 = vpack.c.b16 %v3240, %v3238
    %v3815 = vpack.c.b16 %v3241, %v3239
    %v3816 = vpack.c.b16 %v3244, %v3242
    %v3817 = vpack.c.b16 %v3245, %v3243
    %v3818 = vpack.c.b16 %v3248, %v3246
    %v3819 = vpack.c.b16 %v3249, %v3247
    %v3820 = vpack.c.b16 %v3252, %v3250
    %v3821 = vpack.c.b16 %v3253, %v3251
    %v3822 = vpack.c.b16 %v3256, %v3254
    %v3823 = vpack.c.b16 %v3257, %v3255
    %v3824 = vpack.c.b16 %v3260, %v3258
    %v3825 = vpack.c.b16 %v3261, %v3259
    %v3826 = vpack.c.b16 %v3264, %v3262
    %v3827 = vpack.c.b16 %v3265, %v3263
    %v3828 = vpack.c.b16 %v3268, %v3266
    %v3829 = vpack.c.b16 %v3269, %v3267
    %v3830 = vpack.c.b16 %v3272, %v3270
    %v3831 = vpack.c.b16 %v3273, %v3271
    %v3832 = vpack.c.b16 %v3276, %v3274
    %v3833 = vpack.c.b16 %v3277, %v3275
    %v3834 = vpack.c.b16 %v3280, %v3278
    %v3835 = vpack.c.b16 %v3281, %v3279
    %v3836 = vpack.c.b16 %v3284, %v3282
    %v3837 = vpack.c.b16 %v3285, %v3283
    %v3838 = vpack.c.b16 %v3288, %v3286
    %v3839 = vpack.c.b16 %v3289, %v3287
    %v3840 = vpack.c.b16 %v3292, %v3290
    %v3841 = vpack.c.b16 %v3293, %v3291
    %v3842 = vpack.c.b16 %v3296, %v3294
    %v3843 = vpack.c.b16 %v3297, %v3295
    %v3844 = vpack.c.b16 %v3300, %v3298
    %v3845 = vpack.c.b16 %v3301, %v3299
    %v3846 = vpack.c.b16 %v3304, %v3302
    %v3847 = vpack.c.b16 %v3305, %v3303
    %v3848 = vpack.c.b16 %v3308, %v3306
    %v3849 = vpack.c.b16 %v3309, %v3307
    %v3850 = vpack.c.b16 %v3312, %v3310
    %v3851 = vpack.c.b16 %v3313, %v3311
    %v3852 = vpack.c.b16 %v3316, %v3314
    %v3853 = vpack.c.b16 %v3317, %v3315
    %v3854 = vpack.c.b16 %v3320, %v3318
    %v3855 = vpack.c.b16 %v3321, %v3319
    %v3856 = vpack.c.b16 %v3324, %v3322
    %v3857 = vpack.c.b16 %v3325, %v3323
    %v3858 = vpack.c.b16 %v3328, %v3326
    %v3859 = vpack.c.b16 %v3329, %v3327
    %v3860 = vpack.c.b16 %v3332, %v3330
    %v3861 = vpack.c.b16 %v3333, %v3331
    %v3862 = vpack.c.b16 %v3336, %v3334
    %v3863 = vpack.c.b16 %v3337, %v3335
    %v3864 = vpack.c.b16 %v3340, %v3338
    %v3865 = vpack.c.b16 %v3341, %v3339
    %v3866 = vpack.c.b16 %v3344, %v3342
    %v3867 = vpack.c.b16 %v3345, %v3343
    %v3868 = vpack.c.b16 %v3348, %v3346
    %v3869 = vpack.c.b16 %v3349, %v3347
    %v3870 = vpack.c.b16 %v3352, %v3350
    %v3871 = vpack.c.b16 %v3353, %v3351
    %v3872 = vpack.c.b16 %v3356, %v3354
    %v3873 = vpack.c.b16 %v3357, %v3355
    %v3874 = vpack.c.b16 %v3360, %v3358
    %v3875 = vpack.c.b16 %v3361, %v3359
    %v3876 = vpack.c.b16 %v3364, %v3362
    %v3877 = vpack.c.b16 %v3365, %v3363
    %4390 = vmatprep.subr.bf16.mxu0 %v3367
    %4391 = vmatpush1.bf16.msra.mxu0 %v3366
    %4392 = vmatprep.subr.bf16.mxu0 %v3369
    %4393 = vmatpush1.bf16.msra.mxu0 %v3368
    %4394 = vmatprep.subr.bf16.mxu0 %v3371
    %4395 = vmatpush1.bf16.msra.mxu0 %v3370
    %4396 = vmatprep.subr.bf16.mxu0 %v3373
    %4397 = vmatpush1.bf16.msra.mxu0 %v3372
    %4398 = vmatprep.subr.bf16.mxu0 %v3375
    %4399 = vmatpush1.bf16.msra.mxu0 %v3374
    %4400 = vmatprep.subr.bf16.mxu0 %v3377
    %4401 = vmatpush1.bf16.msra.mxu0 %v3376
    %4402 = vmatprep.subr.bf16.mxu0 %v3379
    %4403 = vmatpush1.bf16.msra.mxu0 %v3378
    %4404 = vmatprep.subr.bf16.mxu0 %v3381
    %4405 = vmatpush1.bf16.msra.mxu0 %v3380
    %4406 = vmatprep.subr.bf16.mxu0 %v3383
    %4407 = vmatpush1.bf16.msra.mxu0 %v3382
    %4408 = vmatprep.subr.bf16.mxu0 %v3385
    %4409 = vmatpush1.bf16.msra.mxu0 %v3384
    %4410 = vmatprep.subr.bf16.mxu0 %v3387
    %4411 = vmatpush1.bf16.msra.mxu0 %v3386
    %4412 = vmatprep.subr.bf16.mxu0 %v3389
    %4413 = vmatpush1.bf16.msra.mxu0 %v3388
    %4414 = vmatprep.subr.bf16.mxu0 %v3391
    %4415 = vmatpush1.bf16.msra.mxu0 %v3390
    %4416 = vmatprep.subr.bf16.mxu0 %v3393
    %4417 = vmatpush1.bf16.msra.mxu0 %v3392
    %4418 = vmatprep.subr.bf16.mxu0 %v3395
    %4419 = vmatpush1.bf16.msra.mxu0 %v3394
    %4420 = vmatprep.subr.bf16.mxu0 %v3397
    %4421 = vmatpush1.bf16.msra.mxu0 %v3396
    %4422 = vmatprep.mubr.bf16.mxu0 %v1275
    %4423 = vmatmul.mubr.bf16.gmra.mrb[0].mxu0 %v1274
    %v4424 = vpop.f32.mrb[0].mxu0
    %v4425 = vadd.f32 %v1823, %v4424
    %v4426 = vpop.f32.mrb[0].mxu0
    %v4427 = vadd.f32 %v1827, %v4426
    %v4428 = vpop.f32.mrb[0].mxu0
    %v4429 = vpop.f32.mrb[0].mxu0
    %4430 = vdwg.mxu0
    %4431 = vmatprep.subr.bf16.mxu0 %v3399
    %4432 = vmatpush1.bf16.msra.mxu0 %v3398
    %4433 = vmatprep.subr.bf16.mxu0 %v3401
    %4434 = vmatpush1.bf16.msra.mxu0 %v3400
    %4435 = vmatprep.subr.bf16.mxu0 %v3403
    %4436 = vmatpush1.bf16.msra.mxu0 %v3402
    %4437 = vmatprep.subr.bf16.mxu0 %v3405
    %4438 = vmatpush1.bf16.msra.mxu0 %v3404
    %4439 = vmatprep.subr.bf16.mxu0 %v3407
    %4440 = vmatpush1.bf16.msra.mxu0 %v3406
    %4441 = vmatprep.subr.bf16.mxu0 %v3409
    %4442 = vmatpush1.bf16.msra.mxu0 %v3408
    %4443 = vmatprep.subr.bf16.mxu0 %v3411
    %4444 = vmatpush1.bf16.msra.mxu0 %v3410
    %4445 = vmatprep.subr.bf16.mxu0 %v3413
    %4446 = vmatpush1.bf16.msra.mxu0 %v3412
    %4447 = vmatprep.subr.bf16.mxu0 %v3415
    %4448 = vmatpush1.bf16.msra.mxu0 %v3414
    %4449 = vmatprep.subr.bf16.mxu0 %v3417
    %4450 = vmatpush1.bf16.msra.mxu0 %v3416
    %4451 = vmatprep.subr.bf16.mxu0 %v3419
    %4452 = vmatpush1.bf16.msra.mxu0 %v3418
    %4453 = vmatprep.subr.bf16.mxu0 %v3421
    %4454 = vmatpush1.bf16.msra.mxu0 %v3420
    %4455 = vmatprep.subr.bf16.mxu0 %v3423
    %4456 = vmatpush1.bf16.msra.mxu0 %v3422
    %4457 = vmatprep.subr.bf16.mxu0 %v3425
    %4458 = vmatpush1.bf16.msra.mxu0 %v3424
    %4459 = vmatprep.subr.bf16.mxu0 %v3427
    %4460 = vmatpush1.bf16.msra.mxu0 %v3426
    %4461 = vmatprep.subr.bf16.mxu0 %v3429
    %4462 = vmatpush1.bf16.msra.mxu0 %v3428
    %4463 = vmatprep.mubr.bf16.mxu0 %v1277
    %4464 = vmatmul.mubr.bf16.gmra.mrb[0].mxu0 %v1276
    %v4465 = vpop.f32.mrb[0].mxu0
    %v4466 = vadd.f32 %v4425, %v4465
    %v4467 = vpop.f32.mrb[0].mxu0
    %v4468 = vadd.f32 %v4427, %v4467
    %v4469 = vpop.f32.mrb[0].mxu0
    %v4470 = vpop.f32.mrb[0].mxu0
    %4471 = vdwg.mxu0
    %4472 = vmatprep.subr.bf16.mxu0 %v3431
    %4473 = vmatpush1.bf16.msra.mxu0 %v3430
    %4474 = vmatprep.subr.bf16.mxu0 %v3433
    %4475 = vmatpush1.bf16.msra.mxu0 %v3432
    %4476 = vmatprep.subr.bf16.mxu0 %v3435
    %4477 = vmatpush1.bf16.msra.mxu0 %v3434
    %4478 = vmatprep.subr.bf16.mxu0 %v3437
    %4479 = vmatpush1.bf16.msra.mxu0 %v3436
    %4480 = vmatprep.subr.bf16.mxu0 %v3439
    %4481 = vmatpush1.bf16.msra.mxu0 %v3438
    %4482 = vmatprep.subr.bf16.mxu0 %v3441
    %4483 = vmatpush1.bf16.msra.mxu0 %v3440
    %4484 = vmatprep.subr.bf16.mxu0 %v3443
    %4485 = vmatpush1.bf16.msra.mxu0 %v3442
    %4486 = vmatprep.subr.bf16.mxu0 %v3445
    %4487 = vmatpush1.bf16.msra.mxu0 %v3444
    %4488 = vmatprep.subr.bf16.mxu0 %v3447
    %4489 = vmatpush1.bf16.msra.mxu0 %v3446
    %4490 = vmatprep.subr.bf16.mxu0 %v3449
    %4491 = vmatpush1.bf16.msra.mxu0 %v3448
    %4492 = vmatprep.subr.bf16.mxu0 %v3451
    %4493 = vmatpush1.bf16.msra.mxu0 %v3450
    %4494 = vmatprep.subr.bf16.mxu0 %v3453
    %4495 = vmatpush1.bf16.msra.mxu0 %v3452
    %4496 = vmatprep.subr.bf16.mxu0 %v3455
    %4497 = vmatpush1.bf16.msra.mxu0 %v3454
    %4498 = vmatprep.subr.bf16.mxu0 %v3457
    %4499 = vmatpush1.bf16.msra.mxu0 %v3456
    %4500 = vmatprep.subr.bf16.mxu0 %v3459
    %4501 = vmatpush1.bf16.msra.mxu0 %v3458
    %4502 = vmatprep.subr.bf16.mxu0 %v3461
    %4503 = vmatpush1.bf16.msra.mxu0 %v3460
    %4504 = vmatprep.mubr.bf16.mxu0 %v1279
    %4505 = vmatmul.mubr.bf16.gmra.mrb[0].mxu0 %v1278
    %v4506 = vpop.f32.mrb[0].mxu0
    %v4507 = vadd.f32 %v4466, %v4506
    %v4508 = vpop.f32.mrb[0].mxu0
    %v4509 = vadd.f32 %v4468, %v4508
    %v4510 = vpop.f32.mrb[0].mxu0
    %v4511 = vpop.f32.mrb[0].mxu0
    %4512 = vdwg.mxu0
    %4513 = vmatprep.subr.bf16.mxu0 %v3463
    %4514 = vmatpush1.bf16.msra.mxu0 %v3462
    %4515 = vmatprep.subr.bf16.mxu0 %v3465
    %4516 = vmatpush1.bf16.msra.mxu0 %v3464
    %4517 = vmatprep.subr.bf16.mxu0 %v3467
    %4518 = vmatpush1.bf16.msra.mxu0 %v3466
    %4519 = vmatprep.subr.bf16.mxu0 %v3469
    %4520 = vmatpush1.bf16.msra.mxu0 %v3468
    %4521 = vmatprep.subr.bf16.mxu0 %v3471
    %4522 = vmatpush1.bf16.msra.mxu0 %v3470
    %4523 = vmatprep.subr.bf16.mxu0 %v3473
    %4524 = vmatpush1.bf16.msra.mxu0 %v3472
    %4525 = vmatprep.subr.bf16.mxu0 %v3475
    %4526 = vmatpush1.bf16.msra.mxu0 %v3474
    %4527 = vmatprep.subr.bf16.mxu0 %v3477
    %4528 = vmatpush1.bf16.msra.mxu0 %v3476
    %4529 = vmatprep.subr.bf16.mxu0 %v3479
    %4530 = vmatpush1.bf16.msra.mxu0 %v3478
    %4531 = vmatprep.subr.bf16.mxu0 %v3481
    %4532 = vmatpush1.bf16.msra.mxu0 %v3480
    %4533 = vmatprep.subr.bf16.mxu0 %v3483
    %4534 = vmatpush1.bf16.msra.mxu0 %v3482
    %4535 = vmatprep.subr.bf16.mxu0 %v3485
    %4536 = vmatpush1.bf16.msra.mxu0 %v3484
    %4537 = vmatprep.subr.bf16.mxu0 %v3487
    %4538 = vmatpush1.bf16.msra.mxu0 %v3486
    %4539 = vmatprep.subr.bf16.mxu0 %v3489
    %4540 = vmatpush1.bf16.msra.mxu0 %v3488
    %4541 = vmatprep.subr.bf16.mxu0 %v3491
    %4542 = vmatpush1.bf16.msra.mxu0 %v3490
    %4543 = vmatprep.subr.bf16.mxu0 %v3493
    %4544 = vmatpush1.bf16.msra.mxu0 %v3492
    %4545 = vmatprep.mubr.bf16.mxu0 %v1281
    %4546 = vmatmul.mubr.bf16.gmra.mrb[0].mxu0 %v1280
    %v4547 = vpop.f32.mrb[0].mxu0
    %v4548 = vadd.f32 %v4507, %v4547
    %v4549 = vpop.f32.mrb[0].mxu0
    %v4550 = vadd.f32 %v4509, %v4549
    %v4551 = vpop.f32.mrb[0].mxu0
    %v4552 = vpop.f32.mrb[0].mxu0
    %4553 = vdwg.mxu0
    %4554 = vmatprep.subr.bf16.mxu0 %v3495
    %4555 = vmatpush1.bf16.msra.mxu0 %v3494
    %4556 = vmatprep.subr.bf16.mxu0 %v3497
    %4557 = vmatpush1.bf16.msra.mxu0 %v3496
    %4558 = vmatprep.subr.bf16.mxu0 %v3499
    %4559 = vmatpush1.bf16.msra.mxu0 %v3498
    %4560 = vmatprep.subr.bf16.mxu0 %v3501
    %4561 = vmatpush1.bf16.msra.mxu0 %v3500
    %4562 = vmatprep.subr.bf16.mxu0 %v3503
    %4563 = vmatpush1.bf16.msra.mxu0 %v3502
    %4564 = vmatprep.subr.bf16.mxu0 %v3505
    %4565 = vmatpush1.bf16.msra.mxu0 %v3504
    %4566 = vmatprep.subr.bf16.mxu0 %v3507
    %4567 = vmatpush1.bf16.msra.mxu0 %v3506
    %4568 = vmatprep.subr.bf16.mxu0 %v3509
    %4569 = vmatpush1.bf16.msra.mxu0 %v3508
    %4570 = vmatprep.subr.bf16.mxu0 %v3511
    %4571 = vmatpush1.bf16.msra.mxu0 %v3510
    %4572 = vmatprep.subr.bf16.mxu0 %v3513
    %4573 = vmatpush1.bf16.msra.mxu0 %v3512
    %4574 = vmatprep.subr.bf16.mxu0 %v3515
    %4575 = vmatpush1.bf16.msra.mxu0 %v3514
    %4576 = vmatprep.subr.bf16.mxu0 %v3517
    %4577 = vmatpush1.bf16.msra.mxu0 %v3516
    %4578 = vmatprep.subr.bf16.mxu0 %v3519
    %4579 = vmatpush1.bf16.msra.mxu0 %v3518
    %4580 = vmatprep.subr.bf16.mxu0 %v3521
    %4581 = vmatpush1.bf16.msra.mxu0 %v3520
    %4582 = vmatprep.subr.bf16.mxu0 %v3523
    %4583 = vmatpush1.bf16.msra.mxu0 %v3522
    %4584 = vmatprep.subr.bf16.mxu0 %v3525
    %4585 = vmatpush1.bf16.msra.mxu0 %v3524
    %4586 = vmatprep.mubr.bf16.mxu0 %v1283
    %4587 = vmatmul.mubr.bf16.gmra.mrb[0].mxu0 %v1282
    %v4588 = vpop.f32.mrb[0].mxu0
    %v4589 = vadd.f32 %v4548, %v4588
    %v4590 = vpop.f32.mrb[0].mxu0
    %v4591 = vadd.f32 %v4550, %v4590
    %v4592 = vpop.f32.mrb[0].mxu0
    %v4593 = vpop.f32.mrb[0].mxu0
    %4594 = vdwg.mxu0
    %4595 = vmatprep.subr.bf16.mxu0 %v3527
    %4596 = vmatpush1.bf16.msra.mxu0 %v3526
    %4597 = vmatprep.subr.bf16.mxu0 %v3529
    %4598 = vmatpush1.bf16.msra.mxu0 %v3528
    %4599 = vmatprep.subr.bf16.mxu0 %v3531
    %4600 = vmatpush1.bf16.msra.mxu0 %v3530
    %4601 = vmatprep.subr.bf16.mxu0 %v3533
    %4602 = vmatpush1.bf16.msra.mxu0 %v3532
    %4603 = vmatprep.subr.bf16.mxu0 %v3535
    %4604 = vmatpush1.bf16.msra.mxu0 %v3534
    %4605 = vmatprep.subr.bf16.mxu0 %v3537
    %4606 = vmatpush1.bf16.msra.mxu0 %v3536
    %4607 = vmatprep.subr.bf16.mxu0 %v3539
    %4608 = vmatpush1.bf16.msra.mxu0 %v3538
    %4609 = vmatprep.subr.bf16.mxu0 %v3541
    %4610 = vmatpush1.bf16.msra.mxu0 %v3540
    %4611 = vmatprep.subr.bf16.mxu0 %v3543
    %4612 = vmatpush1.bf16.msra.mxu0 %v3542
    %4613 = vmatprep.subr.bf16.mxu0 %v3545
    %4614 = vmatpush1.bf16.msra.mxu0 %v3544
    %4615 = vmatprep.subr.bf16.mxu0 %v3547
    %4616 = vmatpush1.bf16.msra.mxu0 %v3546
    %4617 = vmatprep.subr.bf16.mxu0 %v3549
    %4618 = vmatpush1.bf16.msra.mxu0 %v3548
    %4619 = vmatprep.subr.bf16.mxu0 %v3551
    %4620 = vmatpush1.bf16.msra.mxu0 %v3550
    %4621 = vmatprep.subr.bf16.mxu0 %v3553
    %4622 = vmatpush1.bf16.msra.mxu0 %v3552
    %4623 = vmatprep.subr.bf16.mxu0 %v3555
    %4624 = vmatpush1.bf16.msra.mxu0 %v3554
    %4625 = vmatprep.subr.bf16.mxu0 %v3557
    %4626 = vmatpush1.bf16.msra.mxu0 %v3556
    %4627 = vmatprep.mubr.bf16.mxu0 %v1285
    %4628 = vmatmul.mubr.bf16.gmra.mrb[0].mxu0 %v1284
    %v4629 = vpop.f32.mrb[0].mxu0
    %v4630 = vadd.f32 %v4589, %v4629
    %v4631 = vpop.f32.mrb[0].mxu0
    %v4632 = vadd.f32 %v4591, %v4631
    %v4633 = vpop.f32.mrb[0].mxu0
    %v4634 = vpop.f32.mrb[0].mxu0
    %4635 = vdwg.mxu0
    %4636 = vmatprep.subr.bf16.mxu0 %v3559
    %4637 = vmatpush1.bf16.msra.mxu0 %v3558
    %4638 = vmatprep.subr.bf16.mxu0 %v3561
    %4639 = vmatpush1.bf16.msra.mxu0 %v3560
    %4640 = vmatprep.subr.bf16.mxu0 %v3563
    %4641 = vmatpush1.bf16.msra.mxu0 %v3562
    %4642 = vmatprep.subr.bf16.mxu0 %v3565
    %4643 = vmatpush1.bf16.msra.mxu0 %v3564
    %4644 = vmatprep.subr.bf16.mxu0 %v3567
    %4645 = vmatpush1.bf16.msra.mxu0 %v3566
    %4646 = vmatprep.subr.bf16.mxu0 %v3569
    %4647 = vmatpush1.bf16.msra.mxu0 %v3568
    %4648 = vmatprep.subr.bf16.mxu0 %v3571
    %4649 = vmatpush1.bf16.msra.mxu0 %v3570
    %4650 = vmatprep.subr.bf16.mxu0 %v3573
    %4651 = vmatpush1.bf16.msra.mxu0 %v3572
    %4652 = vmatprep.subr.bf16.mxu0 %v3575
    %4653 = vmatpush1.bf16.msra.mxu0 %v3574
    %4654 = vmatprep.subr.bf16.mxu0 %v3577
    %4655 = vmatpush1.bf16.msra.mxu0 %v3576
    %4656 = vmatprep.subr.bf16.mxu0 %v3579
    %4657 = vmatpush1.bf16.msra.mxu0 %v3578
    %4658 = vmatprep.subr.bf16.mxu0 %v3581
    %4659 = vmatpush1.bf16.msra.mxu0 %v3580
    %4660 = vmatprep.subr.bf16.mxu0 %v3583
    %4661 = vmatpush1.bf16.msra.mxu0 %v3582
    %4662 = vmatprep.subr.bf16.mxu0 %v3585
    %4663 = vmatpush1.bf16.msra.mxu0 %v3584
    %4664 = vmatprep.subr.bf16.mxu0 %v3587
    %4665 = vmatpush1.bf16.msra.mxu0 %v3586
    %4666 = vmatprep.subr.bf16.mxu0 %v3589
    %4667 = vmatpush1.bf16.msra.mxu0 %v3588
    %4668 = vmatprep.mubr.bf16.mxu0 %v1287
    %4669 = vmatmul.mubr.bf16.gmra.mrb[0].mxu0 %v1286
    %v4670 = vpop.f32.mrb[0].mxu0
    %v4671 = vadd.f32 %v4630, %v4670
    %v4672 = vpop.f32.mrb[0].mxu0
    %v4673 = vadd.f32 %v4632, %v4672
    %v4674 = vpop.f32.mrb[0].mxu0
    %v4675 = vpop.f32.mrb[0].mxu0
    %4676 = vdwg.mxu0
    %4677 = vmatprep.subr.bf16.mxu0 %v3591
    %4678 = vmatpush1.bf16.msra.mxu0 %v3590
    %4679 = vmatprep.subr.bf16.mxu0 %v3593
    %4680 = vmatpush1.bf16.msra.mxu0 %v3592
    %4681 = vmatprep.subr.bf16.mxu0 %v3595
    %4682 = vmatpush1.bf16.msra.mxu0 %v3594
    %4683 = vmatprep.subr.bf16.mxu0 %v3597
    %4684 = vmatpush1.bf16.msra.mxu0 %v3596
    %4685 = vmatprep.subr.bf16.mxu0 %v3599
    %4686 = vmatpush1.bf16.msra.mxu0 %v3598
    %4687 = vmatprep.subr.bf16.mxu0 %v3601
    %4688 = vmatpush1.bf16.msra.mxu0 %v3600
    %4689 = vmatprep.subr.bf16.mxu0 %v3603
    %4690 = vmatpush1.bf16.msra.mxu0 %v3602
    %4691 = vmatprep.subr.bf16.mxu0 %v3605
    %4692 = vmatpush1.bf16.msra.mxu0 %v3604
    %4693 = vmatprep.subr.bf16.mxu0 %v3607
    %4694 = vmatpush1.bf16.msra.mxu0 %v3606
    %4695 = vmatprep.subr.bf16.mxu0 %v3609
    %4696 = vmatpush1.bf16.msra.mxu0 %v3608
    %4697 = vmatprep.subr.bf16.mxu0 %v3611
    %4698 = vmatpush1.bf16.msra.mxu0 %v3610
    %4699 = vmatprep.subr.bf16.mxu0 %v3613
    %4700 = vmatpush1.bf16.msra.mxu0 %v3612
    %4701 = vmatprep.subr.bf16.mxu0 %v3615
    %4702 = vmatpush1.bf16.msra.mxu0 %v3614
    %4703 = vmatprep.subr.bf16.mxu0 %v3617
    %4704 = vmatpush1.bf16.msra.mxu0 %v3616
    %4705 = vmatprep.subr.bf16.mxu0 %v3619
    %4706 = vmatpush1.bf16.msra.mxu0 %v3618
    %4707 = vmatprep.subr.bf16.mxu0 %v3621
    %4708 = vmatpush1.bf16.msra.mxu0 %v3620
    %4709 = vmatprep.mubr.bf16.mxu0 %v1289
    %4710 = vmatmul.mubr.bf16.gmra.mrb[0].mxu0 %v1288
    %v4711 = vpop.f32.mrb[0].mxu0
    %v4712 = vadd.f32 %v4671, %v4711
    %v4713 = vpop.f32.mrb[0].mxu0
    %v4714 = vadd.f32 %v4673, %v4713
    %v4715 = vpop.f32.mrb[0].mxu0
    %v4716 = vpop.f32.mrb[0].mxu0
    %4717 = vdwg.mxu0
    %4718 = vmatprep.subr.bf16.mxu0 %v3623
    %4719 = vmatpush1.bf16.msra.mxu0 %v3622
    %4720 = vmatprep.subr.bf16.mxu0 %v3625
    %4721 = vmatpush1.bf16.msra.mxu0 %v3624
    %4722 = vmatprep.subr.bf16.mxu0 %v3627
    %4723 = vmatpush1.bf16.msra.mxu0 %v3626
    %4724 = vmatprep.subr.bf16.mxu0 %v3629
    %4725 = vmatpush1.bf16.msra.mxu0 %v3628
    %4726 = vmatprep.subr.bf16.mxu0 %v3631
    %4727 = vmatpush1.bf16.msra.mxu0 %v3630
    %4728 = vmatprep.subr.bf16.mxu0 %v3633
    %4729 = vmatpush1.bf16.msra.mxu0 %v3632
    %4730 = vmatprep.subr.bf16.mxu0 %v3635
    %4731 = vmatpush1.bf16.msra.mxu0 %v3634
    %4732 = vmatprep.subr.bf16.mxu0 %v3637
    %4733 = vmatpush1.bf16.msra.mxu0 %v3636
    %4734 = vmatprep.subr.bf16.mxu0 %v3639
    %4735 = vmatpush1.bf16.msra.mxu0 %v3638
    %4736 = vmatprep.subr.bf16.mxu0 %v3641
    %4737 = vmatpush1.bf16.msra.mxu0 %v3640
    %4738 = vmatprep.subr.bf16.mxu0 %v3643
    %4739 = vmatpush1.bf16.msra.mxu0 %v3642
    %4740 = vmatprep.subr.bf16.mxu0 %v3645
    %4741 = vmatpush1.bf16.msra.mxu0 %v3644
    %4742 = vmatprep.subr.bf16.mxu0 %v3647
    %4743 = vmatpush1.bf16.msra.mxu0 %v3646
    %4744 = vmatprep.subr.bf16.mxu0 %v3649
    %4745 = vmatpush1.bf16.msra.mxu0 %v3648
    %4746 = vmatprep.subr.bf16.mxu0 %v3651
    %4747 = vmatpush1.bf16.msra.mxu0 %v3650
    %4748 = vmatprep.subr.bf16.mxu0 %v3653
    %4749 = vmatpush1.bf16.msra.mxu0 %v3652
    %4750 = vmatprep.mubr.bf16.mxu0 %v1291
    %4751 = vmatmul.mubr.bf16.gmra.mrb[0].mxu0 %v1290
    %v4752 = vpop.f32.mrb[0].mxu0
    %v4753 = vadd.f32 %v4712, %v4752
    %v4754 = vpop.f32.mrb[0].mxu0
    %v4755 = vadd.f32 %v4714, %v4754
    %v4756 = vpop.f32.mrb[0].mxu0
    %v4757 = vpop.f32.mrb[0].mxu0
    %4758 = vdwg.mxu0
    %4759 = vmatprep.subr.bf16.mxu0 %v3655
    %4760 = vmatpush1.bf16.msra.mxu0 %v3654
    %4761 = vmatprep.subr.bf16.mxu0 %v3657
    %4762 = vmatpush1.bf16.msra.mxu0 %v3656
    %4763 = vmatprep.subr.bf16.mxu0 %v3659
    %4764 = vmatpush1.bf16.msra.mxu0 %v3658
    %4765 = vmatprep.subr.bf16.mxu0 %v3661
    %4766 = vmatpush1.bf16.msra.mxu0 %v3660
    %4767 = vmatprep.subr.bf16.mxu0 %v3663
    %4768 = vmatpush1.bf16.msra.mxu0 %v3662
    %4769 = vmatprep.subr.bf16.mxu0 %v3665
    %4770 = vmatpush1.bf16.msra.mxu0 %v3664
    %4771 = vmatprep.subr.bf16.mxu0 %v3667
    %4772 = vmatpush1.bf16.msra.mxu0 %v3666
    %4773 = vmatprep.subr.bf16.mxu0 %v3669
    %4774 = vmatpush1.bf16.msra.mxu0 %v3668
    %4775 = vmatprep.subr.bf16.mxu0 %v3671
    %4776 = vmatpush1.bf16.msra.mxu0 %v3670
    %4777 = vmatprep.subr.bf16.mxu0 %v3673
    %4778 = vmatpush1.bf16.msra.mxu0 %v3672
    %4779 = vmatprep.subr.bf16.mxu0 %v3675
    %4780 = vmatpush1.bf16.msra.mxu0 %v3674
    %4781 = vmatprep.subr.bf16.mxu0 %v3677
    %4782 = vmatpush1.bf16.msra.mxu0 %v3676
    %4783 = vmatprep.subr.bf16.mxu0 %v3679
    %4784 = vmatpush1.bf16.msra.mxu0 %v3678
    %4785 = vmatprep.subr.bf16.mxu0 %v3681
    %4786 = vmatpush1.bf16.msra.mxu0 %v3680
    %4787 = vmatprep.subr.bf16.mxu0 %v3683
    %4788 = vmatpush1.bf16.msra.mxu0 %v3682
    %4789 = vmatprep.subr.bf16.mxu0 %v3685
    %4790 = vmatpush1.bf16.msra.mxu0 %v3684
    %4791 = vmatprep.mubr.bf16.mxu0 %v1293
    %4792 = vmatmul.mubr.bf16.gmra.mrb[0].mxu0 %v1292
    %v4793 = vpop.f32.mrb[0].mxu0
    %v4794 = vadd.f32 %v4753, %v4793
    %v4795 = vpop.f32.mrb[0].mxu0
    %v4796 = vadd.f32 %v4755, %v4795
    %v4797 = vpop.f32.mrb[0].mxu0
    %v4798 = vpop.f32.mrb[0].mxu0
    %4799 = vdwg.mxu0
    %4800 = vmatprep.subr.bf16.mxu0 %v3687
    %4801 = vmatpush1.bf16.msra.mxu0 %v3686
    %4802 = vmatprep.subr.bf16.mxu0 %v3689
    %4803 = vmatpush1.bf16.msra.mxu0 %v3688
    %4804 = vmatprep.subr.bf16.mxu0 %v3691
    %4805 = vmatpush1.bf16.msra.mxu0 %v3690
    %4806 = vmatprep.subr.bf16.mxu0 %v3693
    %4807 = vmatpush1.bf16.msra.mxu0 %v3692
    %4808 = vmatprep.subr.bf16.mxu0 %v3695
    %4809 = vmatpush1.bf16.msra.mxu0 %v3694
    %4810 = vmatprep.subr.bf16.mxu0 %v3697
    %4811 = vmatpush1.bf16.msra.mxu0 %v3696
    %4812 = vmatprep.subr.bf16.mxu0 %v3699
    %4813 = vmatpush1.bf16.msra.mxu0 %v3698
    %4814 = vmatprep.subr.bf16.mxu0 %v3701
    %4815 = vmatpush1.bf16.msra.mxu0 %v3700
    %4816 = vmatprep.subr.bf16.mxu0 %v3703
    %4817 = vmatpush1.bf16.msra.mxu0 %v3702
    %4818 = vmatprep.subr.bf16.mxu0 %v3705
    %4819 = vmatpush1.bf16.msra.mxu0 %v3704
    %4820 = vmatprep.subr.bf16.mxu0 %v3707
    %4821 = vmatpush1.bf16.msra.mxu0 %v3706
    %4822 = vmatprep.subr.bf16.mxu0 %v3709
    %4823 = vmatpush1.bf16.msra.mxu0 %v3708
    %4824 = vmatprep.subr.bf16.mxu0 %v3711
    %4825 = vmatpush1.bf16.msra.mxu0 %v3710
    %4826 = vmatprep.subr.bf16.mxu0 %v3713
    %4827 = vmatpush1.bf16.msra.mxu0 %v3712
    %4828 = vmatprep.subr.bf16.mxu0 %v3715
    %4829 = vmatpush1.bf16.msra.mxu0 %v3714
    %4830 = vmatprep.subr.bf16.mxu0 %v3717
    %4831 = vmatpush1.bf16.msra.mxu0 %v3716
    %4832 = vmatprep.mubr.bf16.mxu0 %v1295
    %4833 = vmatmul.mubr.bf16.gmra.mrb[0].mxu0 %v1294
    %v4834 = vpop.f32.mrb[0].mxu0
    %v4835 = vadd.f32 %v4794, %v4834
    %v4836 = vpop.f32.mrb[0].mxu0
    %v4837 = vadd.f32 %v4796, %v4836
    %v4838 = vpop.f32.mrb[0].mxu0
    %v4839 = vpop.f32.mrb[0].mxu0
    %4840 = vdwg.mxu0
    %4841 = vmatprep.subr.bf16.mxu0 %v3719
    %4842 = vmatpush1.bf16.msra.mxu0 %v3718
    %4843 = vmatprep.subr.bf16.mxu0 %v3721
    %4844 = vmatpush1.bf16.msra.mxu0 %v3720
    %4845 = vmatprep.subr.bf16.mxu0 %v3723
    %4846 = vmatpush1.bf16.msra.mxu0 %v3722
    %4847 = vmatprep.subr.bf16.mxu0 %v3725
    %4848 = vmatpush1.bf16.msra.mxu0 %v3724
    %4849 = vmatprep.subr.bf16.mxu0 %v3727
    %4850 = vmatpush1.bf16.msra.mxu0 %v3726
    %4851 = vmatprep.subr.bf16.mxu0 %v3729
    %4852 = vmatpush1.bf16.msra.mxu0 %v3728
    %4853 = vmatprep.subr.bf16.mxu0 %v3731
    %4854 = vmatpush1.bf16.msra.mxu0 %v3730
    %4855 = vmatprep.subr.bf16.mxu0 %v3733
    %4856 = vmatpush1.bf16.msra.mxu0 %v3732
    %4857 = vmatprep.subr.bf16.mxu0 %v3735
    %4858 = vmatpush1.bf16.msra.mxu0 %v3734
    %4859 = vmatprep.subr.bf16.mxu0 %v3737
    %4860 = vmatpush1.bf16.msra.mxu0 %v3736
    %4861 = vmatprep.subr.bf16.mxu0 %v3739
    %4862 = vmatpush1.bf16.msra.mxu0 %v3738
    %4863 = vmatprep.subr.bf16.mxu0 %v3741
    %4864 = vmatpush1.bf16.msra.mxu0 %v3740
    %4865 = vmatprep.subr.bf16.mxu0 %v3743
    %4866 = vmatpush1.bf16.msra.mxu0 %v3742
    %4867 = vmatprep.subr.bf16.mxu0 %v3745
    %4868 = vmatpush1.bf16.msra.mxu0 %v3744
    %4869 = vmatprep.subr.bf16.mxu0 %v3747
    %4870 = vmatpush1.bf16.msra.mxu0 %v3746
    %4871 = vmatprep.subr.bf16.mxu0 %v3749
    %4872 = vmatpush1.bf16.msra.mxu0 %v3748
    %4873 = vmatprep.mubr.bf16.mxu0 %v1297
    %4874 = vmatmul.mubr.bf16.gmra.mrb[0].mxu0 %v1296
    %v4875 = vpop.f32.mrb[0].mxu0
    %v4876 = vadd.f32 %v4835, %v4875
    %v4877 = vpop.f32.mrb[0].mxu0
    %v4878 = vadd.f32 %v4837, %v4877
    %v4879 = vpop.f32.mrb[0].mxu0
    %v4880 = vpop.f32.mrb[0].mxu0
    %4881 = vdwg.mxu0
    %4882 = vmatprep.subr.bf16.mxu0 %v3751
    %4883 = vmatpush1.bf16.msra.mxu0 %v3750
    %4884 = vmatprep.subr.bf16.mxu0 %v3753
    %4885 = vmatpush1.bf16.msra.mxu0 %v3752
    %4886 = vmatprep.subr.bf16.mxu0 %v3755
    %4887 = vmatpush1.bf16.msra.mxu0 %v3754
    %4888 = vmatprep.subr.bf16.mxu0 %v3757
    %4889 = vmatpush1.bf16.msra.mxu0 %v3756
    %4890 = vmatprep.subr.bf16.mxu0 %v3759
    %4891 = vmatpush1.bf16.msra.mxu0 %v3758
    %4892 = vmatprep.subr.bf16.mxu0 %v3761
    %4893 = vmatpush1.bf16.msra.mxu0 %v3760
    %4894 = vmatprep.subr.bf16.mxu0 %v3763
    %4895 = vmatpush1.bf16.msra.mxu0 %v3762
    %4896 = vmatprep.subr.bf16.mxu0 %v3765
    %4897 = vmatpush1.bf16.msra.mxu0 %v3764
    %4898 = vmatprep.subr.bf16.mxu0 %v3767
    %4899 = vmatpush1.bf16.msra.mxu0 %v3766
    %4900 = vmatprep.subr.bf16.mxu0 %v3769
    %4901 = vmatpush1.bf16.msra.mxu0 %v3768
    %4902 = vmatprep.subr.bf16.mxu0 %v3771
    %4903 = vmatpush1.bf16.msra.mxu0 %v3770
    %4904 = vmatprep.subr.bf16.mxu0 %v3773
    %4905 = vmatpush1.bf16.msra.mxu0 %v3772
    %4906 = vmatprep.subr.bf16.mxu0 %v3775
    %4907 = vmatpush1.bf16.msra.mxu0 %v3774
    %4908 = vmatprep.subr.bf16.mxu0 %v3777
    %4909 = vmatpush1.bf16.msra.mxu0 %v3776
    %4910 = vmatprep.subr.bf16.mxu0 %v3779
    %4911 = vmatpush1.bf16.msra.mxu0 %v3778
    %4912 = vmatprep.subr.bf16.mxu0 %v3781
    %4913 = vmatpush1.bf16.msra.mxu0 %v3780
    %4914 = vmatprep.mubr.bf16.mxu0 %v1299
    %4915 = vmatmul.mubr.bf16.gmra.mrb[0].mxu0 %v1298
    %v4916 = vpop.f32.mrb[0].mxu0
    %v4917 = vadd.f32 %v4876, %v4916
    %v4918 = vpop.f32.mrb[0].mxu0
    %v4919 = vadd.f32 %v4878, %v4918
    %v4920 = vpop.f32.mrb[0].mxu0
    %v4921 = vpop.f32.mrb[0].mxu0
    %4922 = vdwg.mxu0
    %4923 = vmatprep.subr.bf16.mxu0 %v3783
    %4924 = vmatpush1.bf16.msra.mxu0 %v3782
    %4925 = vmatprep.subr.bf16.mxu0 %v3785
    %4926 = vmatpush1.bf16.msra.mxu0 %v3784
    %4927 = vmatprep.subr.bf16.mxu0 %v3787
    %4928 = vmatpush1.bf16.msra.mxu0 %v3786
    %4929 = vmatprep.subr.bf16.mxu0 %v3789
    %4930 = vmatpush1.bf16.msra.mxu0 %v3788
    %4931 = vmatprep.subr.bf16.mxu0 %v3791
    %4932 = vmatpush1.bf16.msra.mxu0 %v3790
    %4933 = vmatprep.subr.bf16.mxu0 %v3793
    %4934 = vmatpush1.bf16.msra.mxu0 %v3792
    %4935 = vmatprep.subr.bf16.mxu0 %v3795
    %4936 = vmatpush1.bf16.msra.mxu0 %v3794
    %4937 = vmatprep.subr.bf16.mxu0 %v3797
    %4938 = vmatpush1.bf16.msra.mxu0 %v3796
    %4939 = vmatprep.subr.bf16.mxu0 %v3799
    %4940 = vmatpush1.bf16.msra.mxu0 %v3798
    %4941 = vmatprep.subr.bf16.mxu0 %v3801
    %4942 = vmatpush1.bf16.msra.mxu0 %v3800
    %4943 = vmatprep.subr.bf16.mxu0 %v3803
    %4944 = vmatpush1.bf16.msra.mxu0 %v3802
    %4945 = vmatprep.subr.bf16.mxu0 %v3805
    %4946 = vmatpush1.bf16.msra.mxu0 %v3804
    %4947 = vmatprep.subr.bf16.mxu0 %v3807
    %4948 = vmatpush1.bf16.msra.mxu0 %v3806
    %4949 = vmatprep.subr.bf16.mxu0 %v3809
    %4950 = vmatpush1.bf16.msra.mxu0 %v3808
    %4951 = vmatprep.subr.bf16.mxu0 %v3811
    %4952 = vmatpush1.bf16.msra.mxu0 %v3810
    %4953 = vmatprep.subr.bf16.mxu0 %v3813
    %4954 = vmatpush1.bf16.msra.mxu0 %v3812
    %4955 = vmatprep.mubr.bf16.mxu0 %v1301
    %4956 = vmatmul.mubr.bf16.gmra.mrb[0].mxu0 %v1300
    %v4957 = vpop.f32.mrb[0].mxu0
    %v4958 = vadd.f32 %v4917, %v4957
    %v4959 = vpop.f32.mrb[0].mxu0
    %v4960 = vadd.f32 %v4919, %v4959
    %v4961 = vpop.f32.mrb[0].mxu0
    %v4962 = vpop.f32.mrb[0].mxu0
    %4963 = vdwg.mxu0
    %4964 = vmatprep.subr.bf16.mxu0 %v3815
    %4965 = vmatpush1.bf16.msra.mxu0 %v3814
    %4966 = vmatprep.subr.bf16.mxu0 %v3817
    %4967 = vmatpush1.bf16.msra.mxu0 %v3816
    %4968 = vmatprep.subr.bf16.mxu0 %v3819
    %4969 = vmatpush1.bf16.msra.mxu0 %v3818
    %4970 = vmatprep.subr.bf16.mxu0 %v3821
    %4971 = vmatpush1.bf16.msra.mxu0 %v3820
    %4972 = vmatprep.subr.bf16.mxu0 %v3823
    %4973 = vmatpush1.bf16.msra.mxu0 %v3822
    %4974 = vmatprep.subr.bf16.mxu0 %v3825
    %4975 = vmatpush1.bf16.msra.mxu0 %v3824
    %4976 = vmatprep.subr.bf16.mxu0 %v3827
    %4977 = vmatpush1.bf16.msra.mxu0 %v3826
    %4978 = vmatprep.subr.bf16.mxu0 %v3829
    %4979 = vmatpush1.bf16.msra.mxu0 %v3828
    %4980 = vmatprep.subr.bf16.mxu0 %v3831
    %4981 = vmatpush1.bf16.msra.mxu0 %v3830
    %4982 = vmatprep.subr.bf16.mxu0 %v3833
    %4983 = vmatpush1.bf16.msra.mxu0 %v3832
    %4984 = vmatprep.subr.bf16.mxu0 %v3835
    %4985 = vmatpush1.bf16.msra.mxu0 %v3834
    %4986 = vmatprep.subr.bf16.mxu0 %v3837
    %4987 = vmatpush1.bf16.msra.mxu0 %v3836
    %4988 = vmatprep.subr.bf16.mxu0 %v3839
    %4989 = vmatpush1.bf16.msra.mxu0 %v3838
    %4990 = vmatprep.subr.bf16.mxu0 %v3841
    %4991 = vmatpush1.bf16.msra.mxu0 %v3840
    %4992 = vmatprep.subr.bf16.mxu0 %v3843
    %4993 = vmatpush1.bf16.msra.mxu0 %v3842
    %4994 = vmatprep.subr.bf16.mxu0 %v3845
    %4995 = vmatpush1.bf16.msra.mxu0 %v3844
    %4996 = vmatprep.mubr.bf16.mxu0 %v1303
    %4997 = vmatmul.mubr.bf16.gmra.mrb[0].mxu0 %v1302
    %v4998 = vpop.f32.mrb[0].mxu0
    %v4999 = vadd.f32 %v4958, %v4998
    %v5000 = vpop.f32.mrb[0].mxu0
    %v5001 = vadd.f32 %v4960, %v5000
    %v5002 = vpop.f32.mrb[0].mxu0
    %v5003 = vpop.f32.mrb[0].mxu0
    %5004 = vdwg.mxu0
    %5005 = vmatprep.subr.bf16.mxu0 %v3847
    %5006 = vmatpush1.bf16.msra.mxu0 %v3846
    %5007 = vmatprep.subr.bf16.mxu0 %v3849
    %5008 = vmatpush1.bf16.msra.mxu0 %v3848
    %5009 = vmatprep.subr.bf16.mxu0 %v3851
    %5010 = vmatpush1.bf16.msra.mxu0 %v3850
    %5011 = vmatprep.subr.bf16.mxu0 %v3853
    %5012 = vmatpush1.bf16.msra.mxu0 %v3852
    %5013 = vmatprep.subr.bf16.mxu0 %v3855
    %5014 = vmatpush1.bf16.msra.mxu0 %v3854
    %5015 = vmatprep.subr.bf16.mxu0 %v3857
    %5016 = vmatpush1.bf16.msra.mxu0 %v3856
    %5017 = vmatprep.subr.bf16.mxu0 %v3859
    %5018 = vmatpush1.bf16.msra.mxu0 %v3858
    %5019 = vmatprep.subr.bf16.mxu0 %v3861
    %5020 = vmatpush1.bf16.msra.mxu0 %v3860
    %5021 = vmatprep.subr.bf16.mxu0 %v3863
    %5022 = vmatpush1.bf16.msra.mxu0 %v3862
    %5023 = vmatprep.subr.bf16.mxu0 %v3865
    %5024 = vmatpush1.bf16.msra.mxu0 %v3864
    %5025 = vmatprep.subr.bf16.mxu0 %v3867
    %5026 = vmatpush1.bf16.msra.mxu0 %v3866
    %5027 = vmatprep.subr.bf16.mxu0 %v3869
    %5028 = vmatpush1.bf16.msra.mxu0 %v3868
    %5029 = vmatprep.subr.bf16.mxu0 %v3871
    %5030 = vmatpush1.bf16.msra.mxu0 %v3870
    %5031 = vmatprep.subr.bf16.mxu0 %v3873
    %5032 = vmatpush1.bf16.msra.mxu0 %v3872
    %5033 = vmatprep.subr.bf16.mxu0 %v3875
    %5034 = vmatpush1.bf16.msra.mxu0 %v3874
    %5035 = vmatprep.subr.bf16.mxu0 %v3877
    %5036 = vmatpush1.bf16.msra.mxu0 %v3876
    %5037 = vmatprep.mubr.bf16.mxu0 %v1305
    %5038 = vmatmul.mubr.bf16.gmra.mrb[0].mxu0 %v1304
    %v5039 = vpop.f32.mrb[0].mxu0
    %v5040 = vadd.f32 %v4999, %v5039
    %v5041 = vpop.f32.mrb[0].mxu0
    %v5042 = vadd.f32 %v5001, %v5041
    %v5043 = vpop.f32.mrb[0].mxu0
    %v5044 = vpop.f32.mrb[0].mxu0
    %5045 = vdwg.mxu0
    %v5046 = vmax.f32 %v5040, 0.0
    %v5047 = vmax.f32 %v5042, 0.0
    %v5048 = vpack.c.bf16 %v5046, %v5046
    %v5049 = vpack.c.bf16 %v5047, %v5047
    %v5050 = vld [vmem:[%s5] sm:$0xf]
    %v5051 = vld [vmem:[%s5 + $0x4] sm:$0xf]
    %v5052 = vld [vmem:[%s5 + $0x8] sm:$0xf]
    %v5053 = vld [vmem:[%s5 + $0xc] sm:$0xf]
    %v5054 = vld [vmem:[%s5 + $0x10] sm:$0xf]
    %v5055 = vld [vmem:[%s5 + $0x14] sm:$0xf]
    %v5056 = vld [vmem:[%s5 + $0x18] sm:$0xf]
    %v5057 = vld [vmem:[%s5 + $0x1c] sm:$0xf]
    %v5058 = vld [vmem:[%s5 + $0x20] sm:$0xf]
    %v5059 = vld [vmem:[%s5 + $0x24] sm:$0xf]
    %v5060 = vld [vmem:[%s5 + $0x28] sm:$0xf]
    %v5061 = vld [vmem:[%s5 + $0x2c] sm:$0xf]
    %v5062 = vld [vmem:[%s5 + $0x30] sm:$0xf]
    %v5063 = vld [vmem:[%s5 + $0x34] sm:$0xf]
    %v5064 = vld [vmem:[%s5 + $0x38] sm:$0xf]
    %v5065 = vld [vmem:[%s5 + $0x3c] sm:$0xf]
    %v5066 = vld [vmem:[%s5 + $0x40] sm:$0xf]
    %v5067 = vld [vmem:[%s5 + $0x44] sm:$0xf]
    %v5068 = vld [vmem:[%s5 + $0x48] sm:$0xf]
    %v5069 = vld [vmem:[%s5 + $0x4c] sm:$0xf]
    %v5070 = vld [vmem:[%s5 + $0x50] sm:$0xf]
    %v5071 = vld [vmem:[%s5 + $0x54] sm:$0xf]
    %v5072 = vld [vmem:[%s5 + $0x58] sm:$0xf]
    %v5073 = vld [vmem:[%s5 + $0x5c] sm:$0xf]
    %v5074 = vld [vmem:[%s5 + $0x60] sm:$0xf]
    %v5075 = vld [vmem:[%s5 + $0x64] sm:$0xf]
    %v5076 = vld [vmem:[%s5 + $0x68] sm:$0xf]
    %v5077 = vld [vmem:[%s5 + $0x6c] sm:$0xf]
    %v5078 = vld [vmem:[%s5 + $0x70] sm:$0xf]
    %v5079 = vld [vmem:[%s5 + $0x74] sm:$0xf]
    %v5080 = vld [vmem:[%s5 + $0x78] sm:$0xf]
    %v5081 = vld [vmem:[%s5 + $0x7c] sm:$0xf]
    %v5082 = vld [vmem:[%s6] sm:$0x1]
    %v5084 = vlaneseq
    %v5085 = vshrl.u32 %v5084, 7
    %v5086 = vsub.s32 0, %v5085
    %v5087 = vrot.slane %v5082, %v5086
    %v5121 = vunpack.c.l.b16 %v5050
    %v5122 = vunpack.c.l.b16 %v5051
    %v5123 = vunpack.c.l.b16 %v5052
    %v5124 = vunpack.c.l.b16 %v5053
    %v5125 = vunpack.c.l.b16 %v5054
    %v5126 = vunpack.c.l.b16 %v5055
    %v5127 = vunpack.c.l.b16 %v5056
    %v5128 = vunpack.c.l.b16 %v5057
    %v5129 = vunpack.c.l.b16 %v5058
    %v5130 = vunpack.c.l.b16 %v5059
    %v5131 = vunpack.c.l.b16 %v5060
    %v5132 = vunpack.c.l.b16 %v5061
    %v5133 = vunpack.c.l.b16 %v5062
    %v5134 = vunpack.c.l.b16 %v5063
    %v5135 = vunpack.c.l.b16 %v5064
    %v5136 = vunpack.c.l.b16 %v5065
    %v5137 = vunpack.c.l.b16 %v5066
    %v5138 = vunpack.c.l.b16 %v5067
    %v5139 = vunpack.c.l.b16 %v5068
    %v5140 = vunpack.c.l.b16 %v5069
    %v5141 = vunpack.c.l.b16 %v5070
    %v5142 = vunpack.c.l.b16 %v5071
    %v5143 = vunpack.c.l.b16 %v5072
    %v5144 = vunpack.c.l.b16 %v5073
    %v5145 = vunpack.c.l.b16 %v5074
    %v5146 = vunpack.c.l.b16 %v5075
    %v5147 = vunpack.c.l.b16 %v5076
    %v5148 = vunpack.c.l.b16 %v5077
    %v5149 = vunpack.c.l.b16 %v5078
    %v5150 = vunpack.c.l.b16 %v5079
    %v5151 = vunpack.c.l.b16 %v5080
    %v5152 = vunpack.c.l.b16 %v5081
    %v5153 = vpack.c.b16 %v5122, %v5121
    %v5154 = vpack.c.b16 %v5124, %v5123
    %v5155 = vpack.c.b16 %v5126, %v5125
    %v5156 = vpack.c.b16 %v5128, %v5127
    %v5157 = vpack.c.b16 %v5130, %v5129
    %v5158 = vpack.c.b16 %v5132, %v5131
    %v5159 = vpack.c.b16 %v5134, %v5133
    %v5160 = vpack.c.b16 %v5136, %v5135
    %v5161 = vpack.c.b16 %v5138, %v5137
    %v5162 = vpack.c.b16 %v5140, %v5139
    %v5163 = vpack.c.b16 %v5142, %v5141
    %v5164 = vpack.c.b16 %v5144, %v5143
    %v5165 = vpack.c.b16 %v5146, %v5145
    %v5166 = vpack.c.b16 %v5148, %v5147
    %v5167 = vpack.c.b16 %v5150, %v5149
    %v5168 = vpack.c.b16 %v5152, %v5151
    %5185 = vmatprep.subr.bf16.mxu0 0
    %5186 = vmatpush1.bf16.msra.mxu0 %v5153
    %5187 = vmatprep.subr.bf16.mxu0 0
    %5188 = vmatpush1.bf16.msra.mxu0 %v5154
    %5189 = vmatprep.subr.bf16.mxu0 0
    %5190 = vmatpush1.bf16.msra.mxu0 %v5155
    %5191 = vmatprep.subr.bf16.mxu0 0
    %5192 = vmatpush1.bf16.msra.mxu0 %v5156
    %5193 = vmatprep.subr.bf16.mxu0 0
    %5194 = vmatpush1.bf16.msra.mxu0 %v5157
    %5195 = vmatprep.subr.bf16.mxu0 0
    %5196 = vmatpush1.bf16.msra.mxu0 %v5158
    %5197 = vmatprep.subr.bf16.mxu0 0
    %5198 = vmatpush1.bf16.msra.mxu0 %v5159
    %5199 = vmatprep.subr.bf16.mxu0 0
    %5200 = vmatpush1.bf16.msra.mxu0 %v5160
    %5201 = vmatprep.subr.bf16.mxu0 0
    %5202 = vmatpush1.bf16.msra.mxu0 %v5161
    %5203 = vmatprep.subr.bf16.mxu0 0
    %5204 = vmatpush1.bf16.msra.mxu0 %v5162
    %5205 = vmatprep.subr.bf16.mxu0 0
    %5206 = vmatpush1.bf16.msra.mxu0 %v5163
    %5207 = vmatprep.subr.bf16.mxu0 0
    %5208 = vmatpush1.bf16.msra.mxu0 %v5164
    %5209 = vmatprep.subr.bf16.mxu0 0
    %5210 = vmatpush1.bf16.msra.mxu0 %v5165
    %5211 = vmatprep.subr.bf16.mxu0 0
    %5212 = vmatpush1.bf16.msra.mxu0 %v5166
    %5213 = vmatprep.subr.bf16.mxu0 0
    %5214 = vmatpush1.bf16.msra.mxu0 %v5167
    %5215 = vmatprep.subr.bf16.mxu0 0
    %5216 = vmatpush1.bf16.msra.mxu0 %v5168
    %5217 = vmatprep.mubr.bf16.mxu0 %v5049
    %5218 = vmatmul.mubr.bf16.gmra.mrb[0].mxu0 %v5048
    %v5219 = vpop.f32.mrb[0].mxu0
    %v5220 = vadd.f32 %v5087, %v5219
    %v5221 = vpop.f32.mrb[0].mxu0
    %v5222 = vpop.f32.mrb[0].mxu0
    %v5223 = vpop.f32.mrb[0].mxu0
    %5224 = vdwg.mxu0
    %5225 = vst [vmem:[#allocation2] sm:$0xff] %v5220
    // Predicated region
    $region30: #{mlp_forward.1} parent=1 // pred_check
      _
    $region31: #{mlp_forward.1} parent=1 // pred_check_branch
      %5227 = sbr.rel (0) target = $region33
    $region32: #{mlp_forward.1} parent=1 // pred_region
      %s5229 = ssub.s32 128, 128
      %5230 = vsyncadd [#allocation3], %s5229
      %s5232 = sshll.u32 [#allocation2], 4
      %s5233 = int_to_ptr.vmem [resolvable:$true] %s5232
      %5235 = dma.vmem_to_hbm [thread:$0]  %s5233, 128, %s7, [#allocation3]
    $region33: #{mlp_forward.1} parent=1 // pred_fallthru
      _
    // Predicated region
    $region34: #{mlp_forward.1} parent=1 // pred_check
      _
    $region35: #{mlp_forward.1} parent=1 // pred_check_branch
      %5237 = sbr.rel (0) target = $region37
    $region36: #{mlp_forward.1} parent=1 // pred_region
      %5238 = dma.done [#allocation3], 128
    $region37: #{mlp_forward.1} parent=1 // pred_fallthru
      _
    %5239 = vsyncpa [#allocation3], 1

</llo_original>
